<compile_context>
chip_gen: v7x
topology: tpu7x:2x2x1
jax: 0.10.0
libtpu: 0.0.40
codegen_flags: <defaults>
</compile_context>

<pallas_src>
import numpy as np
import jax
import jax.numpy as jnp
from jax import lax
from jax.experimental import pallas as pl
from jax.experimental.pallas import tpu as pltpu

# ----------------------------- configuration --------------------------------
D_IN = 4
HIDDEN = [32, 32, 32, 32]
D_OUT = 4
SKIP_IN = (2,)
GEOMETRIC_INIT = True
RADIUS_INIT = 0.3
BETA = 0.0                      # -> ReLU
OUTPUT_INIT_GAIN = 2.0
NUM_POSITION_INPUTS = 3
SDF_SCALE = 1.0
COMBINE_LAYER = 1000            # never reached with these defaults
# TODO(synk): vs_net.util.combine_interleaved (only used when combine_layer is
# hit) is not implemented; with the default combine_layer=1000 it never runs.

DIMS = [D_IN] + HIDDEN + [D_OUT]
NUM_LAYERS = len(DIMS)          # == 6  -> 5 linear layers
HPAD = int(np.ceil(max(DIMS[1:]) / 8) * 8)   # padded feature width (== 32)


# ----------------------------- parameter init -------------------------------
def init_params(key):
    """Replicates ImplicitNet.__init__ geometric init (PyTorch Linear layout:
    W has shape (out_dim, in_dim), b has shape (out_dim,))."""
    params = []
    for layer in range(NUM_LAYERS - 1):
        in_dim = DIMS[layer]
        if (layer + 1) in SKIP_IN:
            out_dim = DIMS[layer + 1] - D_IN
        else:
            out_dim = DIMS[layer + 1]
        key, k1, k2 = jax.random.split(key, 3)
        if GEOMETRIC_INIT:
            if layer == NUM_LAYERS - 2:
                w0 = (jax.random.normal(k1, (1, in_dim), jnp.float32) * 1e-5
                      + (-np.sqrt(np.pi) / np.sqrt(in_dim) * SDF_SCALE))
                b = jnp.zeros((out_dim,), jnp.float32).at[0].set(RADIUS_INIT)
                if D_OUT > 1:
                    wr = jax.random.normal(k2, (out_dim - 1, in_dim),
                                           jnp.float32) * OUTPUT_INIT_GAIN
                    W = jnp.concatenate([w0, wr], axis=0)
                else:
                    W = w0
            else:
                b = jnp.zeros((out_dim,), jnp.float32)
                W = jax.random.normal(k1, (out_dim, in_dim), jnp.float32) * (
                    np.sqrt(2.0) / np.sqrt(out_dim))
            if D_IN > NUM_POSITION_INPUTS and (layer == 0 or layer in SKIP_IN):
                W = W.at[:, -(D_IN - NUM_POSITION_INPUTS):].set(0.0)
        params.append((W, b))
    return params


# ----------------------------- Pallas kernel --------------------------------
def make_kernel(layer_kinds, use_bf16):
    """Fused MLP, channels-first compute.

    x_ref:   (tn, D_IN)        f32, row-major tile of the input points.
    wx_ref:  (n_x, HPAD, D_IN) weights that consume the raw input x.
    wh_ref:  (n_h, HPAD, HPAD) weights that consume the hidden activation h.
    b_ref:   (n_layers, HPAD, 1) biases (f32).
    out_ref: (D_OUT, tn)       channels-first output tile (lane-dense stores).

    Matmuls accumulate in f32; operands are cast to bf16 when use_bf16.  The
    skip layer's  cat([h, x], -1)/sqrt(2) @ W  is the mathematically identical
    split  W_h @ h + W_x @ x  with 1/sqrt(2) pre-folded into W_h / W_x.
    """
    cdt = jnp.bfloat16 if use_bf16 else jnp.float32
    n_lin = len(layer_kinds)

    def dot_h(w, h):                       # (HPAD,HPAD) @ (HPAD,tn) -> (HPAD,tn)
        return jnp.dot(w, h, preferred_element_type=jnp.float32)

    def dot_x(w, x):                       # (HPAD,D_IN) x (tn,D_IN) -> (HPAD,tn)
        # Contract the last dims of both operands (rhs-transposed matmul): this
        # consumes the row-major x tile directly, no explicit transpose needed.
        return lax.dot_general(w, x, (((1,), (1,)), ((), ())),
                               preferred_element_type=jnp.float32)

    def kernel(x_ref, wx_ref, wh_ref, b_ref, out_ref):
        xc = x_ref[...].astype(cdt)        # (tn, D_IN)
        h = None
        ix = ih = 0
        for li, kind in enumerate(layer_kinds):
            z = b_ref[li]                  # (HPAD, 1) -> lane-broadcast
            if kind in ("x", "skip"):
                z = z + dot_x(wx_ref[ix], xc)
                ix += 1
            if kind in ("h", "skip"):
                z = z + dot_h(wh_ref[ih], h.astype(cdt))
                ih += 1
            # beta = 0 -> ReLU; no activation on the last layer.
            h = z if li == n_lin - 1 else jnp.maximum(z, 0.0)
        # Only the first D_OUT rows of the padded activation are real.
        out_ref[...] = h[:out_ref.shape[0], :].astype(out_ref.dtype)

    return kernel


def _build_kernel_params(params, use_bf16):
    """Pack/pad/scale the torch-layout weights into three stacked slabs.

    Returns (wx_slab, wh_slab, b_slab, layer_kinds):
      wx_slab: (n_x, HPAD, D_IN)   weights applied to the raw input x
      wh_slab: (n_h, HPAD, HPAD)   weights applied to the hidden activation
      b_slab : (n_layers, HPAD, 1) biases (kept f32)
    Hidden widths are zero-padded to HPAD (28 -> 32) with matching zero weight
    columns in the consuming layer; the skip layer's 1/sqrt(2) is folded into
    its constant weights -- all bit-identical to the reference in f32.
    """
    w_dtype = jnp.bfloat16 if use_bf16 else jnp.float32
    inv_sqrt2 = np.float32(1.0 / np.sqrt(2.0))

    wx_list, wh_list, b_list, kinds = [], [], [], []
    h_dim = None
    for layer in range(NUM_LAYERS - 1):
        W, b = params[layer]                       # torch layout: (out, in)
        out_dim, in_dim = W.shape
        is_skip = (layer < COMBINE_LAYER) and (layer in SKIP_IN)
        if layer == 0:
            assert in_dim == D_IN
            wx_list.append(jnp.pad(W, ((0, HPAD - out_dim), (0, 0))))
            kinds.append("x")
        elif is_skip:
            split = in_dim - D_IN                  # columns acting on h
            assert split == h_dim
            wh_list.append(jnp.pad(W[:, :split] * inv_sqrt2,
                                   ((0, HPAD - out_dim), (0, HPAD - split))))
            wx_list.append(jnp.pad(W[:, split:] * inv_sqrt2,
                                   ((0, HPAD - out_dim), (0, 0))))
            kinds.append("skip")
        else:
            assert in_dim == h_dim
            wh_list.append(jnp.pad(W, ((0, HPAD - out_dim), (0, HPAD - in_dim))))
            kinds.append("h")
        b_list.append(jnp.pad(b, (0, HPAD - out_dim)).reshape(HPAD, 1))
        h_dim = out_dim

    wx_slab = jnp.stack(wx_list).astype(w_dtype)
    wh_slab = jnp.stack(wh_list).astype(w_dtype)
    b_slab = jnp.stack(b_list).astype(jnp.float32)
    return wx_slab, wh_slab, b_slab, tuple(kinds)


def implicit_net_pallas(x, params, *, tn=1024, use_bf16=True):
    """x: (N, D_IN) row-major (PyTorch layout). Returns (N, D_OUT) float32.

    use_bf16=True (default): bf16 MXU operands, f32 accumulation (fast path on
    v5e/v6e/v7x, ~1e-2 relative error).  use_bf16=False is bit-exact vs f32.
    """
    N, d_in = x.shape
    assert d_in == D_IN
    assert tn % 128 == 0 and tn > 0, "N-tile must be lane-aligned"

    # Shrink the tile for small problems: avoids excess padding and keeps the
    # 1-D "parallel" grid at >= 2 steps so both v7x TensorCores get work
    # (no-op at large N, where tn stays at the requested 1024+).
    tn = min(tn, max(128, -(-N // (2 * 128)) * 128))
    grid_n = -(-N // tn)
    N_pad = grid_n * tn

    x_p = x.astype(jnp.float32)
    if N_pad != N:
        x_p = jnp.pad(x_p, ((0, N_pad - N), (0, 0)))

    wx_slab, wh_slab, b_slab, kinds = _build_kernel_params(params, use_bf16)

    in_specs = [
        pl.BlockSpec((tn, D_IN), lambda i: (i, 0)),        # streamed x tile
        pl.BlockSpec(wx_slab.shape, lambda i: (0, 0, 0)),  # resident params
        pl.BlockSpec(wh_slab.shape, lambda i: (0, 0, 0)),
        pl.BlockSpec(b_slab.shape, lambda i: (0, 0, 0)),
    ]
    out_specs = pl.BlockSpec((D_OUT, tn), lambda i: (0, i))

    # Advisory cost estimate (per-point MXU flops + streamed HBM bytes).
    flops_pt = 0
    for kind in kinds:
        if kind in ("x", "skip"):
            flops_pt += 2 * HPAD * D_IN
        if kind in ("h", "skip"):
            flops_pt += 2 * HPAD * HPAD
    param_bytes = sum(int(np.prod(a.shape)) * a.dtype.itemsize
                      for a in (wx_slab, wh_slab, b_slab))
    cost = pl.CostEstimate(
        flops=int(flops_pt * N_pad),
        transcendentals=0,
        bytes_accessed=int(4 * N_pad * (D_IN + D_OUT) + param_bytes))

    # VMEM budget recomputed for the chosen tile: double-buffered x/out blocks,
    # lane-padded resident param slabs, headroom for live f32 intermediates.
    n_slices = wx_slab.shape[0] + wh_slab.shape[0] + b_slab.shape[0]
    vmem_est = (2 * 4 * tn * (D_IN + D_OUT)        # in/out blocks, double-buffered
                + 8 * HPAD * tn * 4                # live (HPAD, tn) intermediates
                + 2 * n_slices * HPAD * 128 * 4)   # param slabs incl. lane padding
    vmem_limit = int(min(max(vmem_est, 16 << 20), 32 << 20))

    out_t = pl.pallas_call(
        make_kernel(kinds, use_bf16),
        out_shape=jax.ShapeDtypeStruct((D_OUT, N_pad), jnp.float32),
        grid_spec=pltpu.PrefetchScalarGridSpec(
            num_scalar_prefetch=0,
            grid=(grid_n,),
            in_specs=in_specs,
            out_specs=out_specs,
        ),
        compiler_params=pltpu.CompilerParams(
            dimension_semantics=("parallel",),
            vmem_limit_bytes=vmem_limit),
        cost_estimate=cost,
    )(x_p, wx_slab, wh_slab, b_slab)

    # Kernel output is channels-first (lane-dense stores inside the kernel);
    # the tiny (D_OUT, N) -> (N, D_OUT) relayout is left to XLA (header note).
    return jnp.transpose(out_t[:, :N])


# ----------------------------- pure-JAX reference ---------------------------
def implicit_net_ref(x, params):
    h = x
    x_init = x
    for layer in range(NUM_LAYERS - 1):
        if layer < COMBINE_LAYER and layer in SKIP_IN:
            h = jnp.concatenate([h, x_init], axis=-1) / np.sqrt(2.0)
        W, b = params[layer]
        h = h @ W.T + b
        if layer < NUM_LAYERS - 2:
            h = jnp.maximum(h, 0.0)
    return h


# ----------------------------- main ------------------------------------------
if __name__ == "__main__":
    key = jax.random.PRNGKey(0)
    key_p, key_x = jax.random.split(key)

    params = init_params(key_p)

    # N=2048 with tn=1024 -> 2 grid steps (keeps both v7x TensorCores busy).
    # (For real benchmarking use N >= ~1M and xprof min-of-runs; this size is
    # launch-overhead bound and only meant as a correctness demo.)
    N = 2048
    x = jax.random.normal(key_x, (N, D_IN), jnp.float32)

    ref = jax.block_until_ready(implicit_net_ref(x, params))

    # Exact f32 path: validates the fused kernel math against the reference.
    out_f32 = jax.block_until_ready(
        implicit_net_pallas(x, params, use_bf16=False))
    np.testing.assert_allclose(np.asarray(out_f32), np.asarray(ref),
                               rtol=1e-5, atol=1e-5)

    # Default fast path: bf16 MXU operands with f32 accumulation.  Tolerance is
    # the expected bf16-operand error envelope for this net (outputs O(1-10)).
    out_bf16 = jax.block_until_ready(implicit_net_pallas(x, params))
    np.testing.assert_allclose(np.asarray(out_bf16), np.asarray(ref),
                               rtol=1e-1, atol=5e-1)

    print("KERNEL_OK")
</pallas_src>

<mosaic_0001>
module attributes {stable_mosaic.version = 11 : i64} {
  func.func @kernel(%arg0: i32, %arg1: memref<1024x4xf32, #tpu.memory_space<vmem>>, %arg2: memref<2x32x4xf32, #tpu.memory_space<vmem>>, %arg3: memref<4x32x32xf32, #tpu.memory_space<vmem>>, %arg4: memref<5x32x1xf32, #tpu.memory_space<vmem>>, %arg5: memref<4x1024xf32, #tpu.memory_space<vmem>>) attributes {dimension_semantics = [#tpu.dimension_semantics<parallel>], iteration_bounds = array<i64: 2>, scalar_prefetch = 0 : i64, scratch_operands = 0 : i64, tpu.core_type = #tpu.core_type<tc>, window_params = [{transform_indices = @transform_0, window_bounds = array<i64: 1024, 4>}, {pipeline_mode = #tpu.pipeline_mode<synchronous>, transform_indices = @transform_1, window_bounds = array<i64: 2, 32, 4>}, {pipeline_mode = #tpu.pipeline_mode<synchronous>, transform_indices = @transform_2, window_bounds = array<i64: 4, 32, 32>}, {pipeline_mode = #tpu.pipeline_mode<synchronous>, transform_indices = @transform_3, window_bounds = array<i64: 5, 32, 1>}, {transform_indices = @transform_4, window_bounds = array<i64: 4, 1024>}]} {
    %c0 = arith.constant 0 : index
    %c0_0 = arith.constant 0 : index
    %0 = vector.load %arg1[%c0, %c0_0] : memref<1024x4xf32, #tpu.memory_space<vmem>>, vector<1024x4xf32>
    %c0_1 = arith.constant 0 : index
    %c0_2 = arith.constant 0 : index
    %c0_3 = arith.constant 0 : index
    %1 = vector.load %arg4[%c0_1, %c0_2, %c0_3] : memref<5x32x1xf32, #tpu.memory_space<vmem>>, vector<1x32x1xf32>
    %2 = vector.shape_cast %1 : vector<1x32x1xf32> to vector<32x1xf32>
    %c0_4 = arith.constant 0 : index
    %c0_5 = arith.constant 0 : index
    %c0_6 = arith.constant 0 : index
    %3 = vector.load %arg2[%c0_4, %c0_5, %c0_6] : memref<2x32x4xf32, #tpu.memory_space<vmem>>, vector<1x32x4xf32>
    %4 = vector.shape_cast %3 : vector<1x32x4xf32> to vector<32x4xf32>
    %cst = arith.constant dense<0.000000e+00> : vector<32x1024xf32>
    %5 = tpu.matmul %4, %0, %cst {dimension_numbers = #tpu.dot_dimension_numbers<[1], [1], [0], [0], [0, 0, 1, 0], [], []>} : vector<32x4xf32>, vector<1024x4xf32>, vector<32x1024xf32> -> vector<32x1024xf32>
    %6 = vector.broadcast %2 : vector<32x1xf32> to vector<32x1024xf32>
    %7 = arith.addf %6, %5 : vector<32x1024xf32>
    %cst_7 = arith.constant 0.000000e+00 : f32
    %8 = vector.broadcast %cst_7 : f32 to vector<32x1024xf32>
    %9 = arith.maximumf %7, %8 : vector<32x1024xf32>
    %c1 = arith.constant 1 : index
    %c0_8 = arith.constant 0 : index
    %c0_9 = arith.constant 0 : index
    %10 = vector.load %arg4[%c1, %c0_8, %c0_9] : memref<5x32x1xf32, #tpu.memory_space<vmem>>, vector<1x32x1xf32>
    %11 = vector.shape_cast %10 : vector<1x32x1xf32> to vector<32x1xf32>
    %c0_10 = arith.constant 0 : index
    %c0_11 = arith.constant 0 : index
    %c0_12 = arith.constant 0 : index
    %12 = vector.load %arg3[%c0_10, %c0_11, %c0_12] : memref<4x32x32xf32, #tpu.memory_space<vmem>>, vector<1x32x32xf32>
    %13 = vector.shape_cast %12 : vector<1x32x32xf32> to vector<32x32xf32>
    %cst_13 = arith.constant dense<0.000000e+00> : vector<32x1024xf32>
    %14 = tpu.matmul %13, %9, %cst_13 {dimension_numbers = #tpu.dot_dimension_numbers<[1], [0], [0], [1], [0, 0, 1, 1], [], []>} : vector<32x32xf32>, vector<32x1024xf32>, vector<32x1024xf32> -> vector<32x1024xf32>
    %15 = vector.broadcast %11 : vector<32x1xf32> to vector<32x1024xf32>
    %16 = arith.addf %15, %14 : vector<32x1024xf32>
    %cst_14 = arith.constant 0.000000e+00 : f32
    %17 = vector.broadcast %cst_14 : f32 to vector<32x1024xf32>
    %18 = arith.maximumf %16, %17 : vector<32x1024xf32>
    %c2 = arith.constant 2 : index
    %c0_15 = arith.constant 0 : index
    %c0_16 = arith.constant 0 : index
    %19 = vector.load %arg4[%c2, %c0_15, %c0_16] : memref<5x32x1xf32, #tpu.memory_space<vmem>>, vector<1x32x1xf32>
    %20 = vector.shape_cast %19 : vector<1x32x1xf32> to vector<32x1xf32>
    %c1_17 = arith.constant 1 : index
    %c0_18 = arith.constant 0 : index
    %c0_19 = arith.constant 0 : index
    %21 = vector.load %arg2[%c1_17, %c0_18, %c0_19] : memref<2x32x4xf32, #tpu.memory_space<vmem>>, vector<1x32x4xf32>
    %22 = vector.shape_cast %21 : vector<1x32x4xf32> to vector<32x4xf32>
    %cst_20 = arith.constant dense<0.000000e+00> : vector<32x1024xf32>
    %23 = tpu.matmul %22, %0, %cst_20 {dimension_numbers = #tpu.dot_dimension_numbers<[1], [1], [0], [0], [0, 0, 1, 0], [], []>} : vector<32x4xf32>, vector<1024x4xf32>, vector<32x1024xf32> -> vector<32x1024xf32>
    %24 = vector.broadcast %20 : vector<32x1xf32> to vector<32x1024xf32>
    %25 = arith.addf %24, %23 : vector<32x1024xf32>
    %c1_21 = arith.constant 1 : index
    %c0_22 = arith.constant 0 : index
    %c0_23 = arith.constant 0 : index
    %26 = vector.load %arg3[%c1_21, %c0_22, %c0_23] : memref<4x32x32xf32, #tpu.memory_space<vmem>>, vector<1x32x32xf32>
    %27 = vector.shape_cast %26 : vector<1x32x32xf32> to vector<32x32xf32>
    %cst_24 = arith.constant dense<0.000000e+00> : vector<32x1024xf32>
    %28 = tpu.matmul %27, %18, %cst_24 {dimension_numbers = #tpu.dot_dimension_numbers<[1], [0], [0], [1], [0, 0, 1, 1], [], []>} : vector<32x32xf32>, vector<32x1024xf32>, vector<32x1024xf32> -> vector<32x1024xf32>
    %29 = arith.addf %25, %28 : vector<32x1024xf32>
    %cst_25 = arith.constant 0.000000e+00 : f32
    %30 = vector.broadcast %cst_25 : f32 to vector<32x1024xf32>
    %31 = arith.maximumf %29, %30 : vector<32x1024xf32>
    %c3 = arith.constant 3 : index
    %c0_26 = arith.constant 0 : index
    %c0_27 = arith.constant 0 : index
    %32 = vector.load %arg4[%c3, %c0_26, %c0_27] : memref<5x32x1xf32, #tpu.memory_space<vmem>>, vector<1x32x1xf32>
    %33 = vector.shape_cast %32 : vector<1x32x1xf32> to vector<32x1xf32>
    %c2_28 = arith.constant 2 : index
    %c0_29 = arith.constant 0 : index
    %c0_30 = arith.constant 0 : index
    %34 = vector.load %arg3[%c2_28, %c0_29, %c0_30] : memref<4x32x32xf32, #tpu.memory_space<vmem>>, vector<1x32x32xf32>
    %35 = vector.shape_cast %34 : vector<1x32x32xf32> to vector<32x32xf32>
    %cst_31 = arith.constant dense<0.000000e+00> : vector<32x1024xf32>
    %36 = tpu.matmul %35, %31, %cst_31 {dimension_numbers = #tpu.dot_dimension_numbers<[1], [0], [0], [1], [0, 0, 1, 1], [], []>} : vector<32x32xf32>, vector<32x1024xf32>, vector<32x1024xf32> -> vector<32x1024xf32>
    %37 = vector.broadcast %33 : vector<32x1xf32> to vector<32x1024xf32>
    %38 = arith.addf %37, %36 : vector<32x1024xf32>
    %cst_32 = arith.constant 0.000000e+00 : f32
    %39 = vector.broadcast %cst_32 : f32 to vector<32x1024xf32>
    %40 = arith.maximumf %38, %39 : vector<32x1024xf32>
    %c4 = arith.constant 4 : index
    %c0_33 = arith.constant 0 : index
    %c0_34 = arith.constant 0 : index
    %41 = vector.load %arg4[%c4, %c0_33, %c0_34] : memref<5x32x1xf32, #tpu.memory_space<vmem>>, vector<1x32x1xf32>
    %42 = vector.shape_cast %41 : vector<1x32x1xf32> to vector<32x1xf32>
    %c3_35 = arith.constant 3 : index
    %c0_36 = arith.constant 0 : index
    %c0_37 = arith.constant 0 : index
    %43 = vector.load %arg3[%c3_35, %c0_36, %c0_37] : memref<4x32x32xf32, #tpu.memory_space<vmem>>, vector<1x32x32xf32>
    %44 = vector.shape_cast %43 : vector<1x32x32xf32> to vector<32x32xf32>
    %cst_38 = arith.constant dense<0.000000e+00> : vector<32x1024xf32>
    %45 = tpu.matmul %44, %40, %cst_38 {dimension_numbers = #tpu.dot_dimension_numbers<[1], [0], [0], [1], [0, 0, 1, 1], [], []>} : vector<32x32xf32>, vector<32x1024xf32>, vector<32x1024xf32> -> vector<32x1024xf32>
    %46 = vector.broadcast %42 : vector<32x1xf32> to vector<32x1024xf32>
    %47 = arith.addf %46, %45 : vector<32x1024xf32>
    %48 = vector.extract_strided_slice %47 {offsets = [0, 0], sizes = [4, 1024], strides = [1, 1]} : vector<32x1024xf32> to vector<4x1024xf32>
    %c0_39 = arith.constant 0 : index
    %c0_40 = arith.constant 0 : index
    %49 = vector.load %arg5[%c0_39, %c0_40] : memref<4x1024xf32, #tpu.memory_space<vmem>>, vector<4x1024xf32>
    tpu.vector_store %arg5[%c0_39, %c0_40], %48 {strides = array<i32>} : memref<4x1024xf32, #tpu.memory_space<vmem>>, vector<4x1024xf32>,
    return
  }
  func.func @transform_0(%arg0: i32) -> (i32, i32) {
    %c0_i32 = arith.constant 0 : i32
    %c0_i32_0 = arith.constant 0 : i32
    return %arg0, %c0_i32 : i32, i32
  }
  func.func @transform_1(%arg0: i32) -> (i32, i32, i32) {
    %c0_i32 = arith.constant 0 : i32
    %c0_i32_0 = arith.constant 0 : i32
    %c0_i32_1 = arith.constant 0 : i32
    %c0_i32_2 = arith.constant 0 : i32
    return %c0_i32, %c0_i32_0, %c0_i32_1 : i32, i32, i32
  }
  func.func @transform_2(%arg0: i32) -> (i32, i32, i32) {
    %c0_i32 = arith.constant 0 : i32
    %c0_i32_0 = arith.constant 0 : i32
    %c0_i32_1 = arith.constant 0 : i32
    %c0_i32_2 = arith.constant 0 : i32
    return %c0_i32, %c0_i32_0, %c0_i32_1 : i32, i32, i32
  }
  func.func @transform_3(%arg0: i32) -> (i32, i32, i32) {
    %c0_i32 = arith.constant 0 : i32
    %c0_i32_0 = arith.constant 0 : i32
    %c0_i32_1 = arith.constant 0 : i32
    %c0_i32_2 = arith.constant 0 : i32
    return %c0_i32, %c0_i32_0, %c0_i32_1 : i32, i32, i32
  }
  func.func @transform_4(%arg0: i32) -> (i32, i32) {
    %c0_i32 = arith.constant 0 : i32
    %c0_i32_0 = arith.constant 0 : i32
    return %c0_i32, %arg0 : i32, i32
  }
}

</mosaic_0001>

<llo_original>
// kernel: tpu_custom_call.1
$region0: #{tpu_custom_call.1}
  #allocation0 [shape = 'u32[]', space=smem, size = 0x4, offset = 0x4, fixed_abs, tag = 'smem constant byte address 0x4 - core index']
  #allocation1 [shape = 'u32[144,128]{1,0:T(1,128)}', space=vmem, size = 0x12000, scoped, tag = 'internal scratch']
  %s0 = inlined_call_operand.vmem [shape: f32[2048,4], index: 0, kind: input, shape index: {}]
  %s1 = inlined_call_operand.vmem [shape: f32[2,32,4], index: 1, kind: input, shape index: {}]
  %s2 = inlined_call_operand.vmem [shape: f32[4,32,32], index: 2, kind: input, shape index: {}]
  %s3 = inlined_call_operand.vmem [shape: f32[5,32,1], index: 3, kind: input, shape index: {}]
  %s4 = inlined_call_operand.hbm [shape: f32[4,2048], index: 4, kind: output, shape index: {}]
  %s5 = sld [smem:[#allocation0]]
  $region49: #{tpu_custom_call.1} parent=0
    _
  %s7 = ssub.s32 1, %s5
  %s8 = scalar_select 0, %s7, %s5
  $region1: #{tpu_custom_call.1} parent=0
    #allocation2 [shape = 'u8[32768]{0}', space=vmem, size = 0x8000, scoped, tag = 'output window, operand 0']
    #allocation3 [shape = 's32[2]{0}', space=sflag, size = 0x8, scoped, tag = 'scoped memory for tpu_custom_call.1']
    %9 = vsyncpa [#allocation3], 0
    %s10 = scalar_lea.sflag [#allocation3], 1
    %11 = vsyncpa %s10, 0
    loop: start=0, step=1, limit=4
    $region2: #{tpu_custom_call.1} parent=1 // loop_pre_header
      _
    $region3: #{tpu_custom_call.1} parent=1 // loop_header
      %s13 = sphi 0, %s17
      %p14 = scmp.ge.s32.totalorder %s13, 4
      %s23 = sphi 0, %s25
      %s26 = sphi 0, %s23
      %s27 = sphi 0, %s26
      %s43 = sphi 0, %s27
      %s47 = sphi 0, %s47
      %s49 = sphi 0, %s47
      %s50 = sphi 0, %s49
      %s64 = sphi 0, %s50
      %s68 = sphi 0, %s68
      %s70 = sphi 0, %s68
      %s71 = sphi 0, %s70
      %s85 = sphi 0, %s71
      %s89 = sphi 0, %s89
      %s91 = sphi 0, %s89
      %s92 = sphi 0, %s91
      %s106 = sphi 0, %s92
      %s112 = sphi 0, %s114
      %s115 = sphi 0, %s112
      %s116 = sphi 0, %s115
      %s132 = sphi 0, %s116
    $region4: #{tpu_custom_call.1} parent=1 // loop_header_branch
      %16 = sbr.rel (%p14) target = $region8
    $region5: #{tpu_custom_call.1} parent=1 // loop_body
      %s18 = ssub.s32 %s13, 1
      %s19 = ssub.s32 %s13, 2
      %s20 = sadd.s32 %s13, 1
      %s21 = ssub.s32 %s13, %s20
      %p22 = scmp.eq.s32.totalorder %s21, 0
      %s24 = sadd.s32 %s23, 1
      %s25 = scalar_select %p22, %s23, %s24
      %p28 = pneg %p22
      %p29 = scmp.eq.s32.totalorder %s13, 1
      %p30 = por %p28, %p29
      %p31 = scmp.ne.s32.totalorder %s23, %s26
      %p32 = scmp.eq.s32.totalorder %s13, 0
      %p33 = por %p31, %p32
      %p34 = scmp.ne.s32.totalorder %s23, %s26
      %p35 = scmp.eq.s32.totalorder %s18, 1
      %p36 = por %p34, %p35
      %p37 = scmp.ne.s32.totalorder %s26, %s27
      %p38 = scmp.eq.s32.totalorder %s18, 0
      %p39 = por %p37, %p38
      %p40 = scmp.ne.s32.totalorder %s26, %s27
      %p41 = scmp.eq.s32.totalorder %s19, 1
      %p42 = por %p40, %p41
      %p44 = scmp.ne.s32.totalorder %s27, %s43
      %p45 = scmp.eq.s32.totalorder %s19, 0
      %p46 = por %p44, %p45
      %s48 = sadd.s32 %s47, 1
      %p51 = scmp.eq.s32.totalorder %s13, 1
      %p52 = scmp.ne.s32.totalorder %s47, %s49
      %p53 = scmp.eq.s32.totalorder %s13, 0
      %p54 = por %p52, %p53
      %p55 = scmp.ne.s32.totalorder %s47, %s49
      %p56 = scmp.eq.s32.totalorder %s18, 1
      %p57 = por %p55, %p56
      %p58 = scmp.ne.s32.totalorder %s49, %s50
      %p59 = scmp.eq.s32.totalorder %s18, 0
      %p60 = por %p58, %p59
      %p61 = scmp.ne.s32.totalorder %s49, %s50
      %p62 = scmp.eq.s32.totalorder %s19, 1
      %p63 = por %p61, %p62
      %p65 = scmp.ne.s32.totalorder %s50, %s64
      %p66 = scmp.eq.s32.totalorder %s19, 0
      %p67 = por %p65, %p66
      %s69 = sadd.s32 %s68, 1
      %p72 = scmp.eq.s32.totalorder %s13, 1
      %p73 = scmp.ne.s32.totalorder %s68, %s70
      %p74 = scmp.eq.s32.totalorder %s13, 0
      %p75 = por %p73, %p74
      %p76 = scmp.ne.s32.totalorder %s68, %s70
      %p77 = scmp.eq.s32.totalorder %s18, 1
      %p78 = por %p76, %p77
      %p79 = scmp.ne.s32.totalorder %s70, %s71
      %p80 = scmp.eq.s32.totalorder %s18, 0
      %p81 = por %p79, %p80
      %p82 = scmp.ne.s32.totalorder %s70, %s71
      %p83 = scmp.eq.s32.totalorder %s19, 1
      %p84 = por %p82, %p83
      %p86 = scmp.ne.s32.totalorder %s71, %s85
      %p87 = scmp.eq.s32.totalorder %s19, 0
      %p88 = por %p86, %p87
      %s90 = sadd.s32 %s89, 1
      %p93 = scmp.eq.s32.totalorder %s13, 1
      %p94 = scmp.ne.s32.totalorder %s89, %s91
      %p95 = scmp.eq.s32.totalorder %s13, 0
      %p96 = por %p94, %p95
      %p97 = scmp.ne.s32.totalorder %s89, %s91
      %p98 = scmp.eq.s32.totalorder %s18, 1
      %p99 = por %p97, %p98
      %p100 = scmp.ne.s32.totalorder %s91, %s92
      %p101 = scmp.eq.s32.totalorder %s18, 0
      %p102 = por %p100, %p101
      %p103 = scmp.ne.s32.totalorder %s91, %s92
      %p104 = scmp.eq.s32.totalorder %s19, 1
      %p105 = por %p103, %p104
      %p107 = scmp.ne.s32.totalorder %s92, %s106
      %p108 = scmp.eq.s32.totalorder %s19, 0
      %p109 = por %p107, %p108
      %s110 = ssub.s32 %s13, %s20
      %p111 = scmp.eq.s32.totalorder %s110, 0
      %s113 = sadd.s32 %s112, 1
      %s114 = scalar_select %p111, %s112, %s113
      %p117 = pneg %p111
      %p118 = scmp.eq.s32.totalorder %s13, 1
      %p119 = por %p117, %p118
      %p120 = scmp.ne.s32.totalorder %s112, %s115
      %p121 = scmp.eq.s32.totalorder %s13, 0
      %p122 = por %p120, %p121
      %p123 = scmp.ne.s32.totalorder %s112, %s115
      %p124 = scmp.eq.s32.totalorder %s18, 1
      %p125 = por %p123, %p124
      %p126 = scmp.ne.s32.totalorder %s115, %s116
      %p127 = scmp.eq.s32.totalorder %s18, 0
      %p128 = por %p126, %p127
      %p129 = scmp.ne.s32.totalorder %s115, %s116
      %p130 = scmp.eq.s32.totalorder %s19, 1
      %p131 = por %p129, %p130
      %p133 = scmp.ne.s32.totalorder %s116, %s132
      %p134 = scmp.eq.s32.totalorder %s19, 0
      %p135 = por %p133, %p134
      %p136 = scmp.le.s32.totalorder 1, %s13
      %p137 = scmp.lt.s32.totalorder %s13, 3
      %p138 = pnand %p136, %p137
      %p139 = pneg %p138
      // Predicated region
      $region9: #{tpu_custom_call.1} parent=5 // pred_check
        _
      $region10: #{tpu_custom_call.1} parent=5 // pred_check_branch
        %141 = sbr.rel (%p138) target = $region12
      $region11: #{tpu_custom_call.1} parent=5 // pred_region
        %s142 = ssub.s32 %s13, 1
        // Predicated region
        $region13: #{tpu_custom_call.1} parent=11 // pred_check
          %p143 = pneg %p60
        $region14: #{tpu_custom_call.1} parent=11 // pred_check_branch
          %145 = sbr.rel (%p143) target = $region16
        $region15: #{tpu_custom_call.1} parent=11 // pred_region
          _
        $region16: #{tpu_custom_call.1} parent=11 // pred_fallthru
          _
        // Predicated region
        $region17: #{tpu_custom_call.1} parent=11 // pred_check
          %p146 = pneg %p81
        $region18: #{tpu_custom_call.1} parent=11 // pred_check_branch
          %148 = sbr.rel (%p146) target = $region20
        $region19: #{tpu_custom_call.1} parent=11 // pred_region
          _
        $region20: #{tpu_custom_call.1} parent=11 // pred_fallthru
          _
        // Predicated region
        $region21: #{tpu_custom_call.1} parent=11 // pred_check
          %p149 = pneg %p102
        $region22: #{tpu_custom_call.1} parent=11 // pred_check_branch
          %151 = sbr.rel (%p149) target = $region24
        $region23: #{tpu_custom_call.1} parent=11 // pred_region
          _
        $region24: #{tpu_custom_call.1} parent=11 // pred_fallthru
          _
      $region12: #{tpu_custom_call.1} parent=5 // pred_fallthru
        _
      %p152 = scmp.lt.s32.totalorder %s13, 2
      // Predicated region
      $region25: #{tpu_custom_call.1} parent=5 // pred_check
        %p153 = pneg %p152
      $region26: #{tpu_custom_call.1} parent=5 // pred_check_branch
        %155 = sbr.rel (%p153) target = $region28
      $region27: #{tpu_custom_call.1} parent=5 // pred_region
        // Predicated region
        $region29: #{tpu_custom_call.1} parent=27 // pred_check
          %p156 = pneg %p33
        $region30: #{tpu_custom_call.1} parent=27 // pred_check_branch
          %158 = sbr.rel (%p156) target = $region32
        $region31: #{tpu_custom_call.1} parent=27 // pred_region
          %s159 = smul.u32 128, %s13
          %p160 = scmp.lt.s32.totalorder %s159, 255
          %s161 = scalar_select %p160, %s159, 255
          %s162 = smul.addr %s161, 8
          %s163 = scalar_lea.vmem %s0, %s162
          %s164 = smul.u32 128, %s13
        $region32: #{tpu_custom_call.1} parent=27 // pred_fallthru
          _
      $region28: #{tpu_custom_call.1} parent=5 // pred_fallthru
        _
      %p165 = scmp.le.s32.totalorder 1, %s13
      %p166 = scmp.lt.s32.totalorder %s13, 3
      %p167 = pnand %p165, %p166
      %p168 = pneg %p167
      // Predicated region
      $region33: #{tpu_custom_call.1} parent=5 // pred_check
        _
      $region34: #{tpu_custom_call.1} parent=5 // pred_check_branch
        %170 = sbr.rel (%p167) target = $region36
      $region35: #{tpu_custom_call.1} parent=5 // pred_region
        %s171 = ssub.s32 %s13, 1
        %s172 = smul.u32 128, %s18
        %p173 = scmp.lt.s32.totalorder %s172, 255
        %s174 = scalar_select %p173, %s172, 255
        %s175 = smul.addr %s174, 8
        %s176 = scalar_lea.vmem %s0, %s175
        %p177 = pneg %p39
        %p178 = pneg %p36
        %p179 = pneg %p60
        %p180 = pneg %p57
        %p181 = pneg %p81
        %p182 = pneg %p78
        %p183 = pneg %p102
        %p184 = pneg %p99
        %p185 = pneg %p128
        %p186 = pneg %p125
        %s187 = sand.u32 %s115, 1
        %s188 = scalar_lea.sflag [#allocation3], %s187
        %s189 = sand.u32 %s115, 1
        %s190 = smul.addr %s189, 32
        %s191 = scalar_lea.vmem [#allocation2], %s190
        %s192 = smul.u32 128, %s18
        %p193 = scmp.lt.s32.totalorder %s192, 255
        %s194 = scalar_select %p193, %s192, 255
        %s195 = smul.addr %s194, 8
        %s196 = scalar_lea.vmem %s0, %s195
        %s197 = smul.u32 128, %s18
        %s198 = smul.u32 8, %s18
        %v199 = vld [vmem:[%s196] sm:$0xff]
        %v200 = vld [vmem:[%s196 + $0x8] sm:$0xff]
        %v201 = vld [vmem:[%s196 + $0x10] sm:$0xff]
        %v202 = vld [vmem:[%s196 + $0x18] sm:$0xff]
        %v203 = vld [vmem:[%s196 + $0x20] sm:$0xff]
        %v204 = vld [vmem:[%s196 + $0x28] sm:$0xff]
        %v205 = vld [vmem:[%s196 + $0x30] sm:$0xff]
        %v206 = vld [vmem:[%s196 + $0x38] sm:$0xff]
        %v207 = vld [vmem:[%s196 + $0x40] sm:$0xff]
        %v208 = vld [vmem:[%s196 + $0x48] sm:$0xff]
        %v209 = vld [vmem:[%s196 + $0x50] sm:$0xff]
        %v210 = vld [vmem:[%s196 + $0x58] sm:$0xff]
        %v211 = vld [vmem:[%s196 + $0x60] sm:$0xff]
        %v212 = vld [vmem:[%s196 + $0x68] sm:$0xff]
        %v213 = vld [vmem:[%s196 + $0x70] sm:$0xff]
        %v214 = vld [vmem:[%s196 + $0x78] sm:$0xff]
        %v215 = vld [vmem:[%s196 + $0x80] sm:$0xff]
        %v216 = vld [vmem:[%s196 + $0x88] sm:$0xff]
        %v217 = vld [vmem:[%s196 + $0x90] sm:$0xff]
        %v218 = vld [vmem:[%s196 + $0x98] sm:$0xff]
        %v219 = vld [vmem:[%s196 + $0xa0] sm:$0xff]
        %v220 = vld [vmem:[%s196 + $0xa8] sm:$0xff]
        %v221 = vld [vmem:[%s196 + $0xb0] sm:$0xff]
        %v222 = vld [vmem:[%s196 + $0xb8] sm:$0xff]
        %v223 = vld [vmem:[%s196 + $0xc0] sm:$0xff]
        %v224 = vld [vmem:[%s196 + $0xc8] sm:$0xff]
        %v225 = vld [vmem:[%s196 + $0xd0] sm:$0xff]
        %v226 = vld [vmem:[%s196 + $0xd8] sm:$0xff]
        %v227 = vld [vmem:[%s196 + $0xe0] sm:$0xff]
        %v228 = vld [vmem:[%s196 + $0xe8] sm:$0xff]
        %v229 = vld [vmem:[%s196 + $0xf0] sm:$0xff]
        %v230 = vld [vmem:[%s196 + $0xf8] sm:$0xff]
        %v231 = vld [vmem:[%s196 + $0x100] sm:$0xff]
        %v232 = vld [vmem:[%s196 + $0x108] sm:$0xff]
        %v233 = vld [vmem:[%s196 + $0x110] sm:$0xff]
        %v234 = vld [vmem:[%s196 + $0x118] sm:$0xff]
        %v235 = vld [vmem:[%s196 + $0x120] sm:$0xff]
        %v236 = vld [vmem:[%s196 + $0x128] sm:$0xff]
        %v237 = vld [vmem:[%s196 + $0x130] sm:$0xff]
        %v238 = vld [vmem:[%s196 + $0x138] sm:$0xff]
        %v239 = vld [vmem:[%s196 + $0x140] sm:$0xff]
        %v240 = vld [vmem:[%s196 + $0x148] sm:$0xff]
        %v241 = vld [vmem:[%s196 + $0x150] sm:$0xff]
        %v242 = vld [vmem:[%s196 + $0x158] sm:$0xff]
        %v243 = vld [vmem:[%s196 + $0x160] sm:$0xff]
        %v244 = vld [vmem:[%s196 + $0x168] sm:$0xff]
        %v245 = vld [vmem:[%s196 + $0x170] sm:$0xff]
        %v246 = vld [vmem:[%s196 + $0x178] sm:$0xff]
        %v247 = vld [vmem:[%s196 + $0x180] sm:$0xff]
        %v248 = vld [vmem:[%s196 + $0x188] sm:$0xff]
        %v249 = vld [vmem:[%s196 + $0x190] sm:$0xff]
        %v250 = vld [vmem:[%s196 + $0x198] sm:$0xff]
        %v251 = vld [vmem:[%s196 + $0x1a0] sm:$0xff]
        %v252 = vld [vmem:[%s196 + $0x1a8] sm:$0xff]
        %v253 = vld [vmem:[%s196 + $0x1b0] sm:$0xff]
        %v254 = vld [vmem:[%s196 + $0x1b8] sm:$0xff]
        %v255 = vld [vmem:[%s196 + $0x1c0] sm:$0xff]
        %v256 = vld [vmem:[%s196 + $0x1c8] sm:$0xff]
        %v257 = vld [vmem:[%s196 + $0x1d0] sm:$0xff]
        %v258 = vld [vmem:[%s196 + $0x1d8] sm:$0xff]
        %v259 = vld [vmem:[%s196 + $0x1e0] sm:$0xff]
        %v260 = vld [vmem:[%s196 + $0x1e8] sm:$0xff]
        %v261 = vld [vmem:[%s196 + $0x1f0] sm:$0xff]
        %v262 = vld [vmem:[%s196 + $0x1f8] sm:$0xff]
        %v263 = vld [vmem:[%s196 + $0x200] sm:$0xff]
        %v264 = vld [vmem:[%s196 + $0x208] sm:$0xff]
        %v265 = vld [vmem:[%s196 + $0x210] sm:$0xff]
        %v266 = vld [vmem:[%s196 + $0x218] sm:$0xff]
        %v267 = vld [vmem:[%s196 + $0x220] sm:$0xff]
        %v268 = vld [vmem:[%s196 + $0x228] sm:$0xff]
        %v269 = vld [vmem:[%s196 + $0x230] sm:$0xff]
        %v270 = vld [vmem:[%s196 + $0x238] sm:$0xff]
        %v271 = vld [vmem:[%s196 + $0x240] sm:$0xff]
        %v272 = vld [vmem:[%s196 + $0x248] sm:$0xff]
        %v273 = vld [vmem:[%s196 + $0x250] sm:$0xff]
        %v274 = vld [vmem:[%s196 + $0x258] sm:$0xff]
        %v275 = vld [vmem:[%s196 + $0x260] sm:$0xff]
        %v276 = vld [vmem:[%s196 + $0x268] sm:$0xff]
        %v277 = vld [vmem:[%s196 + $0x270] sm:$0xff]
        %v278 = vld [vmem:[%s196 + $0x278] sm:$0xff]
        %v279 = vld [vmem:[%s196 + $0x280] sm:$0xff]
        %v280 = vld [vmem:[%s196 + $0x288] sm:$0xff]
        %v281 = vld [vmem:[%s196 + $0x290] sm:$0xff]
        %v282 = vld [vmem:[%s196 + $0x298] sm:$0xff]
        %v283 = vld [vmem:[%s196 + $0x2a0] sm:$0xff]
        %v284 = vld [vmem:[%s196 + $0x2a8] sm:$0xff]
        %v285 = vld [vmem:[%s196 + $0x2b0] sm:$0xff]
        %v286 = vld [vmem:[%s196 + $0x2b8] sm:$0xff]
        %v287 = vld [vmem:[%s196 + $0x2c0] sm:$0xff]
        %v288 = vld [vmem:[%s196 + $0x2c8] sm:$0xff]
        %v289 = vld [vmem:[%s196 + $0x2d0] sm:$0xff]
        %v290 = vld [vmem:[%s196 + $0x2d8] sm:$0xff]
        %v291 = vld [vmem:[%s196 + $0x2e0] sm:$0xff]
        %v292 = vld [vmem:[%s196 + $0x2e8] sm:$0xff]
        %v293 = vld [vmem:[%s196 + $0x2f0] sm:$0xff]
        %v294 = vld [vmem:[%s196 + $0x2f8] sm:$0xff]
        %v295 = vld [vmem:[%s196 + $0x300] sm:$0xff]
        %v296 = vld [vmem:[%s196 + $0x308] sm:$0xff]
        %v297 = vld [vmem:[%s196 + $0x310] sm:$0xff]
        %v298 = vld [vmem:[%s196 + $0x318] sm:$0xff]
        %v299 = vld [vmem:[%s196 + $0x320] sm:$0xff]
        %v300 = vld [vmem:[%s196 + $0x328] sm:$0xff]
        %v301 = vld [vmem:[%s196 + $0x330] sm:$0xff]
        %v302 = vld [vmem:[%s196 + $0x338] sm:$0xff]
        %v303 = vld [vmem:[%s196 + $0x340] sm:$0xff]
        %v304 = vld [vmem:[%s196 + $0x348] sm:$0xff]
        %v305 = vld [vmem:[%s196 + $0x350] sm:$0xff]
        %v306 = vld [vmem:[%s196 + $0x358] sm:$0xff]
        %v307 = vld [vmem:[%s196 + $0x360] sm:$0xff]
        %v308 = vld [vmem:[%s196 + $0x368] sm:$0xff]
        %v309 = vld [vmem:[%s196 + $0x370] sm:$0xff]
        %v310 = vld [vmem:[%s196 + $0x378] sm:$0xff]
        %v311 = vld [vmem:[%s196 + $0x380] sm:$0xff]
        %v312 = vld [vmem:[%s196 + $0x388] sm:$0xff]
        %v313 = vld [vmem:[%s196 + $0x390] sm:$0xff]
        %v314 = vld [vmem:[%s196 + $0x398] sm:$0xff]
        %v315 = vld [vmem:[%s196 + $0x3a0] sm:$0xff]
        %v316 = vld [vmem:[%s196 + $0x3a8] sm:$0xff]
        %v317 = vld [vmem:[%s196 + $0x3b0] sm:$0xff]
        %v318 = vld [vmem:[%s196 + $0x3b8] sm:$0xff]
        %v319 = vld [vmem:[%s196 + $0x3c0] sm:$0xff]
        %v320 = vld [vmem:[%s196 + $0x3c8] sm:$0xff]
        %v321 = vld [vmem:[%s196 + $0x3d0] sm:$0xff]
        %v322 = vld [vmem:[%s196 + $0x3d8] sm:$0xff]
        %v323 = vld [vmem:[%s196 + $0x3e0] sm:$0xff]
        %v324 = vld [vmem:[%s196 + $0x3e8] sm:$0xff]
        %v325 = vld [vmem:[%s196 + $0x3f0] sm:$0xff]
        %v326 = vld [vmem:[%s196 + $0x3f8] sm:$0xff]
        %v327 = vld [vmem:[%s3] sm:$0xff]
        %v328 = vld [vmem:[%s3 + $0x8] sm:$0xff]
        %v329 = vld [vmem:[%s3 + $0x10] sm:$0xff]
        %v330 = vld [vmem:[%s3 + $0x18] sm:$0xff]
        %v331 = vld [vmem:[%s1] sm:$0xff]
        %v332 = vld [vmem:[%s1 + $0x8] sm:$0xff]
        %v333 = vld [vmem:[%s1 + $0x10] sm:$0xff]
        %v334 = vld [vmem:[%s1 + $0x18] sm:$0xff]
        %vm335 = vcmask 31744
        %v337 = vsel %vm335, %v331, 0
        %v340 = vsel %vm335, %v332, 0
        %v343 = vsel %vm335, %v333, 0
        %v346 = vsel %vm335, %v334, 0
        %v349 = vsel %vm335, %v199, 0
        %v352 = vsel %vm335, %v200, 0
        %v355 = vsel %vm335, %v201, 0
        %v358 = vsel %vm335, %v202, 0
        %v361 = vsel %vm335, %v203, 0
        %v364 = vsel %vm335, %v204, 0
        %v367 = vsel %vm335, %v205, 0
        %v370 = vsel %vm335, %v206, 0
        %v373 = vsel %vm335, %v207, 0
        %v376 = vsel %vm335, %v208, 0
        %v379 = vsel %vm335, %v209, 0
        %v382 = vsel %vm335, %v210, 0
        %v385 = vsel %vm335, %v211, 0
        %v388 = vsel %vm335, %v212, 0
        %v391 = vsel %vm335, %v213, 0
        %v394 = vsel %vm335, %v214, 0
        %v397 = vsel %vm335, %v215, 0
        %v400 = vsel %vm335, %v216, 0
        %v403 = vsel %vm335, %v217, 0
        %v406 = vsel %vm335, %v218, 0
        %v409 = vsel %vm335, %v219, 0
        %v412 = vsel %vm335, %v220, 0
        %v415 = vsel %vm335, %v221, 0
        %v418 = vsel %vm335, %v222, 0
        %v421 = vsel %vm335, %v223, 0
        %v424 = vsel %vm335, %v224, 0
        %v427 = vsel %vm335, %v225, 0
        %v430 = vsel %vm335, %v226, 0
        %v433 = vsel %vm335, %v227, 0
        %v436 = vsel %vm335, %v228, 0
        %v439 = vsel %vm335, %v229, 0
        %v442 = vsel %vm335, %v230, 0
        %v445 = vsel %vm335, %v231, 0
        %v448 = vsel %vm335, %v232, 0
        %v451 = vsel %vm335, %v233, 0
        %v454 = vsel %vm335, %v234, 0
        %v457 = vsel %vm335, %v235, 0
        %v460 = vsel %vm335, %v236, 0
        %v463 = vsel %vm335, %v237, 0
        %v466 = vsel %vm335, %v238, 0
        %v469 = vsel %vm335, %v239, 0
        %v472 = vsel %vm335, %v240, 0
        %v475 = vsel %vm335, %v241, 0
        %v478 = vsel %vm335, %v242, 0
        %v481 = vsel %vm335, %v243, 0
        %v484 = vsel %vm335, %v244, 0
        %v487 = vsel %vm335, %v245, 0
        %v490 = vsel %vm335, %v246, 0
        %v493 = vsel %vm335, %v247, 0
        %v496 = vsel %vm335, %v248, 0
        %v499 = vsel %vm335, %v249, 0
        %v502 = vsel %vm335, %v250, 0
        %v505 = vsel %vm335, %v251, 0
        %v508 = vsel %vm335, %v252, 0
        %v511 = vsel %vm335, %v253, 0
        %v514 = vsel %vm335, %v254, 0
        %v517 = vsel %vm335, %v255, 0
        %v520 = vsel %vm335, %v256, 0
        %v523 = vsel %vm335, %v257, 0
        %v526 = vsel %vm335, %v258, 0
        %v529 = vsel %vm335, %v259, 0
        %v532 = vsel %vm335, %v260, 0
        %v535 = vsel %vm335, %v261, 0
        %v538 = vsel %vm335, %v262, 0
        %v541 = vsel %vm335, %v263, 0
        %v544 = vsel %vm335, %v264, 0
        %v547 = vsel %vm335, %v265, 0
        %v550 = vsel %vm335, %v266, 0
        %v553 = vsel %vm335, %v267, 0
        %v556 = vsel %vm335, %v268, 0
        %v559 = vsel %vm335, %v269, 0
        %v562 = vsel %vm335, %v270, 0
        %v565 = vsel %vm335, %v271, 0
        %v568 = vsel %vm335, %v272, 0
        %v571 = vsel %vm335, %v273, 0
        %v574 = vsel %vm335, %v274, 0
        %v577 = vsel %vm335, %v275, 0
        %v580 = vsel %vm335, %v276, 0
        %v583 = vsel %vm335, %v277, 0
        %v586 = vsel %vm335, %v278, 0
        %v589 = vsel %vm335, %v279, 0
        %v592 = vsel %vm335, %v280, 0
        %v595 = vsel %vm335, %v281, 0
        %v598 = vsel %vm335, %v282, 0
        %v601 = vsel %vm335, %v283, 0
        %v604 = vsel %vm335, %v284, 0
        %v607 = vsel %vm335, %v285, 0
        %v610 = vsel %vm335, %v286, 0
        %v613 = vsel %vm335, %v287, 0
        %v616 = vsel %vm335, %v288, 0
        %v619 = vsel %vm335, %v289, 0
        %v622 = vsel %vm335, %v290, 0
        %v625 = vsel %vm335, %v291, 0
        %v628 = vsel %vm335, %v292, 0
        %v631 = vsel %vm335, %v293, 0
        %v634 = vsel %vm335, %v294, 0
        %v637 = vsel %vm335, %v295, 0
        %v640 = vsel %vm335, %v296, 0
        %v643 = vsel %vm335, %v297, 0
        %v646 = vsel %vm335, %v298, 0
        %v649 = vsel %vm335, %v299, 0
        %v652 = vsel %vm335, %v300, 0
        %v655 = vsel %vm335, %v301, 0
        %v658 = vsel %vm335, %v302, 0
        %v661 = vsel %vm335, %v303, 0
        %v664 = vsel %vm335, %v304, 0
        %v667 = vsel %vm335, %v305, 0
        %v670 = vsel %vm335, %v306, 0
        %v673 = vsel %vm335, %v307, 0
        %v676 = vsel %vm335, %v308, 0
        %v679 = vsel %vm335, %v309, 0
        %v682 = vsel %vm335, %v310, 0
        %v685 = vsel %vm335, %v311, 0
        %v688 = vsel %vm335, %v312, 0
        %v691 = vsel %vm335, %v313, 0
        %v694 = vsel %vm335, %v314, 0
        %v697 = vsel %vm335, %v315, 0
        %v700 = vsel %vm335, %v316, 0
        %v703 = vsel %vm335, %v317, 0
        %v706 = vsel %vm335, %v318, 0
        %v709 = vsel %vm335, %v319, 0
        %v712 = vsel %vm335, %v320, 0
        %v715 = vsel %vm335, %v321, 0
        %v718 = vsel %vm335, %v322, 0
        %v721 = vsel %vm335, %v323, 0
        %v724 = vsel %vm335, %v324, 0
        %v727 = vsel %vm335, %v325, 0
        %v730 = vsel %vm335, %v326, 0
        %732 = vmatprep.subr.mxu0 0.0
        %733 = vmatpush1.xpose.msra.mxu0 %v349
        %734 = vmatprep.subr.mxu0 0.0
        %735 = vmatpush1.xpose.msra.mxu0 %v352
        %736 = vmatprep.subr.mxu0 0.0
        %737 = vmatpush1.xpose.msra.mxu0 %v355
        %738 = vmatprep.subr.mxu0 0.0
        %739 = vmatpush1.xpose.msra.mxu0 %v358
        %740 = vmatprep.subr.mxu0 0.0
        %741 = vmatpush1.xpose.msra.mxu0 %v361
        %742 = vmatprep.subr.mxu0 0.0
        %743 = vmatpush1.xpose.msra.mxu0 %v364
        %744 = vmatprep.subr.mxu0 0.0
        %745 = vmatpush1.xpose.msra.mxu0 %v367
        %746 = vmatprep.subr.mxu0 0.0
        %747 = vmatpush1.xpose.msra.mxu0 %v370
        %748 = vmatprep.subr.mxu0 0.0
        %749 = vmatpush1.xpose.msra.mxu0 %v373
        %750 = vmatprep.subr.mxu0 0.0
        %751 = vmatpush1.xpose.msra.mxu0 %v376
        %752 = vmatprep.subr.mxu0 0.0
        %753 = vmatpush1.xpose.msra.mxu0 %v379
        %754 = vmatprep.subr.mxu0 0.0
        %755 = vmatpush1.xpose.msra.mxu0 %v382
        %756 = vmatprep.subr.mxu0 0.0
        %757 = vmatpush1.xpose.msra.mxu0 %v385
        %758 = vmatprep.subr.mxu0 0.0
        %759 = vmatpush1.xpose.msra.mxu0 %v388
        %760 = vmatprep.subr.mxu0 0.0
        %761 = vmatpush1.xpose.msra.mxu0 %v391
        %762 = vmatprep.subr.mxu0 0.0
        %763 = vmatpush1.xpose.msra.mxu0 %v394
        %764 = vmatprep.subr.mxu0 0.0
        %765 = vmatpush1.xpose.msra.mxu0 %v397
        %766 = vmatprep.subr.mxu0 0.0
        %767 = vmatpush1.xpose.msra.mxu0 %v400
        %768 = vmatprep.subr.mxu0 0.0
        %769 = vmatpush1.xpose.msra.mxu0 %v403
        %770 = vmatprep.subr.mxu0 0.0
        %771 = vmatpush1.xpose.msra.mxu0 %v406
        %772 = vmatprep.subr.mxu0 0.0
        %773 = vmatpush1.xpose.msra.mxu0 %v409
        %774 = vmatprep.subr.mxu0 0.0
        %775 = vmatpush1.xpose.msra.mxu0 %v412
        %776 = vmatprep.subr.mxu0 0.0
        %777 = vmatpush1.xpose.msra.mxu0 %v415
        %778 = vmatprep.subr.mxu0 0.0
        %779 = vmatpush1.xpose.msra.mxu0 %v418
        %780 = vmatprep.subr.mxu0 0.0
        %781 = vmatpush1.xpose.msra.mxu0 %v421
        %782 = vmatprep.subr.mxu0 0.0
        %783 = vmatpush1.xpose.msra.mxu0 %v424
        %784 = vmatprep.subr.mxu0 0.0
        %785 = vmatpush1.xpose.msra.mxu0 %v427
        %786 = vmatprep.subr.mxu0 0.0
        %787 = vmatpush1.xpose.msra.mxu0 %v430
        %788 = vmatprep.subr.mxu0 0.0
        %789 = vmatpush1.xpose.msra.mxu0 %v433
        %790 = vmatprep.subr.mxu0 0.0
        %791 = vmatpush1.xpose.msra.mxu0 %v436
        %792 = vmatprep.subr.mxu0 0.0
        %793 = vmatpush1.xpose.msra.mxu0 %v439
        %794 = vmatprep.subr.mxu0 0.0
        %795 = vmatpush1.xpose.msra.mxu0 %v442
        %796 = vmatprep.mubr.f32.mxu0 0.0
        %797 = vmatmul.mubr.f32.gmra.mrb[0].mxu0 %v337
        %v798 = vpop.f32.mrb[0].mxu0
        %v799 = vadd.f32 0.0, %v798
        %v800 = vpop.f32.mrb[0].mxu0
        %v801 = vadd.f32 0.0, %v800
        %802 = vmatprep.mubr.f32.mxu0 0.0
        %803 = vmatmul.mubr.f32.gmra.mrb[0].mxu0 %v340
        %v804 = vpop.f32.mrb[0].mxu0
        %v805 = vadd.f32 0.0, %v804
        %v806 = vpop.f32.mrb[0].mxu0
        %v807 = vadd.f32 0.0, %v806
        %808 = vmatprep.mubr.f32.mxu0 0.0
        %809 = vmatmul.mubr.f32.gmra.mrb[0].mxu0 %v343
        %v810 = vpop.f32.mrb[0].mxu0
        %v811 = vadd.f32 0.0, %v810
        %v812 = vpop.f32.mrb[0].mxu0
        %v813 = vadd.f32 0.0, %v812
        %814 = vmatprep.mubr.f32.mxu0 0.0
        %815 = vmatmul.mubr.f32.gmra.mrb[0].mxu0 %v346
        %v816 = vpop.f32.mrb[0].mxu0
        %v817 = vadd.f32 0.0, %v816
        %v818 = vpop.f32.mrb[0].mxu0
        %v819 = vadd.f32 0.0, %v818
        %820 = vdwg.mxu0
        %821 = vmatprep.subr.mxu0 0.0
        %822 = vmatpush1.xpose.msra.mxu0 %v445
        %823 = vmatprep.subr.mxu0 0.0
        %824 = vmatpush1.xpose.msra.mxu0 %v448
        %825 = vmatprep.subr.mxu0 0.0
        %826 = vmatpush1.xpose.msra.mxu0 %v451
        %827 = vmatprep.subr.mxu0 0.0
        %828 = vmatpush1.xpose.msra.mxu0 %v454
        %829 = vmatprep.subr.mxu0 0.0
        %830 = vmatpush1.xpose.msra.mxu0 %v457
        %831 = vmatprep.subr.mxu0 0.0
        %832 = vmatpush1.xpose.msra.mxu0 %v460
        %833 = vmatprep.subr.mxu0 0.0
        %834 = vmatpush1.xpose.msra.mxu0 %v463
        %835 = vmatprep.subr.mxu0 0.0
        %836 = vmatpush1.xpose.msra.mxu0 %v466
        %837 = vmatprep.subr.mxu0 0.0
        %838 = vmatpush1.xpose.msra.mxu0 %v469
        %839 = vmatprep.subr.mxu0 0.0
        %840 = vmatpush1.xpose.msra.mxu0 %v472
        %841 = vmatprep.subr.mxu0 0.0
        %842 = vmatpush1.xpose.msra.mxu0 %v475
        %843 = vmatprep.subr.mxu0 0.0
        %844 = vmatpush1.xpose.msra.mxu0 %v478
        %845 = vmatprep.subr.mxu0 0.0
        %846 = vmatpush1.xpose.msra.mxu0 %v481
        %847 = vmatprep.subr.mxu0 0.0
        %848 = vmatpush1.xpose.msra.mxu0 %v484
        %849 = vmatprep.subr.mxu0 0.0
        %850 = vmatpush1.xpose.msra.mxu0 %v487
        %851 = vmatprep.subr.mxu0 0.0
        %852 = vmatpush1.xpose.msra.mxu0 %v490
        %853 = vmatprep.subr.mxu0 0.0
        %854 = vmatpush1.xpose.msra.mxu0 %v493
        %855 = vmatprep.subr.mxu0 0.0
        %856 = vmatpush1.xpose.msra.mxu0 %v496
        %857 = vmatprep.subr.mxu0 0.0
        %858 = vmatpush1.xpose.msra.mxu0 %v499
        %859 = vmatprep.subr.mxu0 0.0
        %860 = vmatpush1.xpose.msra.mxu0 %v502
        %861 = vmatprep.subr.mxu0 0.0
        %862 = vmatpush1.xpose.msra.mxu0 %v505
        %863 = vmatprep.subr.mxu0 0.0
        %864 = vmatpush1.xpose.msra.mxu0 %v508
        %865 = vmatprep.subr.mxu0 0.0
        %866 = vmatpush1.xpose.msra.mxu0 %v511
        %867 = vmatprep.subr.mxu0 0.0
        %868 = vmatpush1.xpose.msra.mxu0 %v514
        %869 = vmatprep.subr.mxu0 0.0
        %870 = vmatpush1.xpose.msra.mxu0 %v517
        %871 = vmatprep.subr.mxu0 0.0
        %872 = vmatpush1.xpose.msra.mxu0 %v520
        %873 = vmatprep.subr.mxu0 0.0
        %874 = vmatpush1.xpose.msra.mxu0 %v523
        %875 = vmatprep.subr.mxu0 0.0
        %876 = vmatpush1.xpose.msra.mxu0 %v526
        %877 = vmatprep.subr.mxu0 0.0
        %878 = vmatpush1.xpose.msra.mxu0 %v529
        %879 = vmatprep.subr.mxu0 0.0
        %880 = vmatpush1.xpose.msra.mxu0 %v532
        %881 = vmatprep.subr.mxu0 0.0
        %882 = vmatpush1.xpose.msra.mxu0 %v535
        %883 = vmatprep.subr.mxu0 0.0
        %884 = vmatpush1.xpose.msra.mxu0 %v538
        %885 = vmatprep.mubr.f32.mxu0 0.0
        %886 = vmatmul.mubr.f32.gmra.mrb[0].mxu0 %v337
        %v887 = vpop.f32.mrb[0].mxu0
        %v888 = vadd.f32 0.0, %v887
        %v889 = vpop.f32.mrb[0].mxu0
        %v890 = vadd.f32 0.0, %v889
        %891 = vmatprep.mubr.f32.mxu0 0.0
        %892 = vmatmul.mubr.f32.gmra.mrb[0].mxu0 %v340
        %v893 = vpop.f32.mrb[0].mxu0
        %v894 = vadd.f32 0.0, %v893
        %v895 = vpop.f32.mrb[0].mxu0
        %v896 = vadd.f32 0.0, %v895
        %897 = vmatprep.mubr.f32.mxu0 0.0
        %898 = vmatmul.mubr.f32.gmra.mrb[0].mxu0 %v343
        %v899 = vpop.f32.mrb[0].mxu0
        %v900 = vadd.f32 0.0, %v899
        %v901 = vpop.f32.mrb[0].mxu0
        %v902 = vadd.f32 0.0, %v901
        %903 = vmatprep.mubr.f32.mxu0 0.0
        %904 = vmatmul.mubr.f32.gmra.mrb[0].mxu0 %v346
        %v905 = vpop.f32.mrb[0].mxu0
        %v906 = vadd.f32 0.0, %v905
        %v907 = vpop.f32.mrb[0].mxu0
        %v908 = vadd.f32 0.0, %v907
        %909 = vdwg.mxu0
        %910 = vmatprep.subr.mxu0 0.0
        %911 = vmatpush1.xpose.msra.mxu0 %v541
        %912 = vmatprep.subr.mxu0 0.0
        %913 = vmatpush1.xpose.msra.mxu0 %v544
        %914 = vmatprep.subr.mxu0 0.0
        %915 = vmatpush1.xpose.msra.mxu0 %v547
        %916 = vmatprep.subr.mxu0 0.0
        %917 = vmatpush1.xpose.msra.mxu0 %v550
        %918 = vmatprep.subr.mxu0 0.0
        %919 = vmatpush1.xpose.msra.mxu0 %v553
        %920 = vmatprep.subr.mxu0 0.0
        %921 = vmatpush1.xpose.msra.mxu0 %v556
        %922 = vmatprep.subr.mxu0 0.0
        %923 = vmatpush1.xpose.msra.mxu0 %v559
        %924 = vmatprep.subr.mxu0 0.0
        %925 = vmatpush1.xpose.msra.mxu0 %v562
        %926 = vmatprep.subr.mxu0 0.0
        %927 = vmatpush1.xpose.msra.mxu0 %v565
        %928 = vmatprep.subr.mxu0 0.0
        %929 = vmatpush1.xpose.msra.mxu0 %v568
        %930 = vmatprep.subr.mxu0 0.0
        %931 = vmatpush1.xpose.msra.mxu0 %v571
        %932 = vmatprep.subr.mxu0 0.0
        %933 = vmatpush1.xpose.msra.mxu0 %v574
        %934 = vmatprep.subr.mxu0 0.0
        %935 = vmatpush1.xpose.msra.mxu0 %v577
        %936 = vmatprep.subr.mxu0 0.0
        %937 = vmatpush1.xpose.msra.mxu0 %v580
        %938 = vmatprep.subr.mxu0 0.0
        %939 = vmatpush1.xpose.msra.mxu0 %v583
        %940 = vmatprep.subr.mxu0 0.0
        %941 = vmatpush1.xpose.msra.mxu0 %v586
        %942 = vmatprep.subr.mxu0 0.0
        %943 = vmatpush1.xpose.msra.mxu0 %v589
        %944 = vmatprep.subr.mxu0 0.0
        %945 = vmatpush1.xpose.msra.mxu0 %v592
        %946 = vmatprep.subr.mxu0 0.0
        %947 = vmatpush1.xpose.msra.mxu0 %v595
        %948 = vmatprep.subr.mxu0 0.0
        %949 = vmatpush1.xpose.msra.mxu0 %v598
        %950 = vmatprep.subr.mxu0 0.0
        %951 = vmatpush1.xpose.msra.mxu0 %v601
        %952 = vmatprep.subr.mxu0 0.0
        %953 = vmatpush1.xpose.msra.mxu0 %v604
        %954 = vmatprep.subr.mxu0 0.0
        %955 = vmatpush1.xpose.msra.mxu0 %v607
        %956 = vmatprep.subr.mxu0 0.0
        %957 = vmatpush1.xpose.msra.mxu0 %v610
        %958 = vmatprep.subr.mxu0 0.0
        %959 = vmatpush1.xpose.msra.mxu0 %v613
        %960 = vmatprep.subr.mxu0 0.0
        %961 = vmatpush1.xpose.msra.mxu0 %v616
        %962 = vmatprep.subr.mxu0 0.0
        %963 = vmatpush1.xpose.msra.mxu0 %v619
        %964 = vmatprep.subr.mxu0 0.0
        %965 = vmatpush1.xpose.msra.mxu0 %v622
        %966 = vmatprep.subr.mxu0 0.0
        %967 = vmatpush1.xpose.msra.mxu0 %v625
        %968 = vmatprep.subr.mxu0 0.0
        %969 = vmatpush1.xpose.msra.mxu0 %v628
        %970 = vmatprep.subr.mxu0 0.0
        %971 = vmatpush1.xpose.msra.mxu0 %v631
        %972 = vmatprep.subr.mxu0 0.0
        %973 = vmatpush1.xpose.msra.mxu0 %v634
        %974 = vmatprep.mubr.f32.mxu0 0.0
        %975 = vmatmul.mubr.f32.gmra.mrb[0].mxu0 %v337
        %v976 = vpop.f32.mrb[0].mxu0
        %v977 = vadd.f32 0.0, %v976
        %v978 = vpop.f32.mrb[0].mxu0
        %v979 = vadd.f32 0.0, %v978
        %980 = vmatprep.mubr.f32.mxu0 0.0
        %981 = vmatmul.mubr.f32.gmra.mrb[0].mxu0 %v340
        %v982 = vpop.f32.mrb[0].mxu0
        %v983 = vadd.f32 0.0, %v982
        %v984 = vpop.f32.mrb[0].mxu0
        %v985 = vadd.f32 0.0, %v984
        %986 = vmatprep.mubr.f32.mxu0 0.0
        %987 = vmatmul.mubr.f32.gmra.mrb[0].mxu0 %v343
        %v988 = vpop.f32.mrb[0].mxu0
        %v989 = vadd.f32 0.0, %v988
        %v990 = vpop.f32.mrb[0].mxu0
        %v991 = vadd.f32 0.0, %v990
        %992 = vmatprep.mubr.f32.mxu0 0.0
        %993 = vmatmul.mubr.f32.gmra.mrb[0].mxu0 %v346
        %v994 = vpop.f32.mrb[0].mxu0
        %v995 = vadd.f32 0.0, %v994
        %v996 = vpop.f32.mrb[0].mxu0
        %v997 = vadd.f32 0.0, %v996
        %998 = vdwg.mxu0
        %999 = vmatprep.subr.mxu0 0.0
        %1000 = vmatpush1.xpose.msra.mxu0 %v637
        %1001 = vmatprep.subr.mxu0 0.0
        %1002 = vmatpush1.xpose.msra.mxu0 %v640
        %1003 = vmatprep.subr.mxu0 0.0
        %1004 = vmatpush1.xpose.msra.mxu0 %v643
        %1005 = vmatprep.subr.mxu0 0.0
        %1006 = vmatpush1.xpose.msra.mxu0 %v646
        %1007 = vmatprep.subr.mxu0 0.0
        %1008 = vmatpush1.xpose.msra.mxu0 %v649
        %1009 = vmatprep.subr.mxu0 0.0
        %1010 = vmatpush1.xpose.msra.mxu0 %v652
        %1011 = vmatprep.subr.mxu0 0.0
        %1012 = vmatpush1.xpose.msra.mxu0 %v655
        %1013 = vmatprep.subr.mxu0 0.0
        %1014 = vmatpush1.xpose.msra.mxu0 %v658
        %1015 = vmatprep.subr.mxu0 0.0
        %1016 = vmatpush1.xpose.msra.mxu0 %v661
        %1017 = vmatprep.subr.mxu0 0.0
        %1018 = vmatpush1.xpose.msra.mxu0 %v664
        %1019 = vmatprep.subr.mxu0 0.0
        %1020 = vmatpush1.xpose.msra.mxu0 %v667
        %1021 = vmatprep.subr.mxu0 0.0
        %1022 = vmatpush1.xpose.msra.mxu0 %v670
        %1023 = vmatprep.subr.mxu0 0.0
        %1024 = vmatpush1.xpose.msra.mxu0 %v673
        %1025 = vmatprep.subr.mxu0 0.0
        %1026 = vmatpush1.xpose.msra.mxu0 %v676
        %1027 = vmatprep.subr.mxu0 0.0
        %1028 = vmatpush1.xpose.msra.mxu0 %v679
        %1029 = vmatprep.subr.mxu0 0.0
        %1030 = vmatpush1.xpose.msra.mxu0 %v682
        %1031 = vmatprep.subr.mxu0 0.0
        %1032 = vmatpush1.xpose.msra.mxu0 %v685
        %1033 = vmatprep.subr.mxu0 0.0
        %1034 = vmatpush1.xpose.msra.mxu0 %v688
        %1035 = vmatprep.subr.mxu0 0.0
        %1036 = vmatpush1.xpose.msra.mxu0 %v691
        %1037 = vmatprep.subr.mxu0 0.0
        %1038 = vmatpush1.xpose.msra.mxu0 %v694
        %1039 = vmatprep.subr.mxu0 0.0
        %1040 = vmatpush1.xpose.msra.mxu0 %v697
        %1041 = vmatprep.subr.mxu0 0.0
        %1042 = vmatpush1.xpose.msra.mxu0 %v700
        %1043 = vmatprep.subr.mxu0 0.0
        %1044 = vmatpush1.xpose.msra.mxu0 %v703
        %1045 = vmatprep.subr.mxu0 0.0
        %1046 = vmatpush1.xpose.msra.mxu0 %v706
        %1047 = vmatprep.subr.mxu0 0.0
        %1048 = vmatpush1.xpose.msra.mxu0 %v709
        %1049 = vmatprep.subr.mxu0 0.0
        %1050 = vmatpush1.xpose.msra.mxu0 %v712
        %1051 = vmatprep.subr.mxu0 0.0
        %1052 = vmatpush1.xpose.msra.mxu0 %v715
        %1053 = vmatprep.subr.mxu0 0.0
        %1054 = vmatpush1.xpose.msra.mxu0 %v718
        %1055 = vmatprep.subr.mxu0 0.0
        %1056 = vmatpush1.xpose.msra.mxu0 %v721
        %1057 = vmatprep.subr.mxu0 0.0
        %1058 = vmatpush1.xpose.msra.mxu0 %v724
        %1059 = vmatprep.subr.mxu0 0.0
        %1060 = vmatpush1.xpose.msra.mxu0 %v727
        %1061 = vmatprep.subr.mxu0 0.0
        %1062 = vmatpush1.xpose.msra.mxu0 %v730
        %1063 = vmatprep.mubr.f32.mxu0 0.0
        %1064 = vmatmul.mubr.f32.gmra.mrb[0].mxu0 %v337
        %v1065 = vpop.f32.mrb[0].mxu0
        %v1066 = vadd.f32 0.0, %v1065
        %v1067 = vpop.f32.mrb[0].mxu0
        %v1068 = vadd.f32 0.0, %v1067
        %1069 = vmatprep.mubr.f32.mxu0 0.0
        %1070 = vmatmul.mubr.f32.gmra.mrb[0].mxu0 %v340
        %v1071 = vpop.f32.mrb[0].mxu0
        %v1072 = vadd.f32 0.0, %v1071
        %v1073 = vpop.f32.mrb[0].mxu0
        %v1074 = vadd.f32 0.0, %v1073
        %1075 = vmatprep.mubr.f32.mxu0 0.0
        %1076 = vmatmul.mubr.f32.gmra.mrb[0].mxu0 %v343
        %v1077 = vpop.f32.mrb[0].mxu0
        %v1078 = vadd.f32 0.0, %v1077
        %v1079 = vpop.f32.mrb[0].mxu0
        %v1080 = vadd.f32 0.0, %v1079
        %1081 = vmatprep.mubr.f32.mxu0 0.0
        %1082 = vmatmul.mubr.f32.gmra.mrb[0].mxu0 %v346
        %v1083 = vpop.f32.mrb[0].mxu0
        %v1084 = vadd.f32 0.0, %v1083
        %v1085 = vpop.f32.mrb[0].mxu0
        %v1086 = vadd.f32 0.0, %v1085
        %1087 = vdwg.mxu0
        %1089 = vset.pattern.permute.xlu0 0
        %1090 = vperm.xlu0 %1089, %v327
        %v1091 = vpop.permute.xlu0 %1090
        %1094 = vset.pattern.permute.xlu0 0
        %1095 = vperm.xlu0 %1094, %v328
        %v1096 = vpop.permute.xlu0 %1095
        %1099 = vset.pattern.permute.xlu0 0
        %1100 = vperm.xlu0 %1099, %v329
        %v1101 = vpop.permute.xlu0 %1100
        %1104 = vset.pattern.permute.xlu0 0
        %1105 = vperm.xlu0 %1104, %v330
        %v1106 = vpop.permute.xlu0 %1105
        %v1108 = vadd.f32 %v1091, %v799
        %v1109 = vadd.f32 %v1091, %v801
        %v1110 = vadd.f32 %v1091, %v888
        %v1111 = vadd.f32 %v1091, %v890
        %v1112 = vadd.f32 %v1091, %v977
        %v1113 = vadd.f32 %v1091, %v979
        %v1114 = vadd.f32 %v1091, %v1066
        %v1115 = vadd.f32 %v1091, %v1068
        %v1116 = vadd.f32 %v1096, %v805
        %v1117 = vadd.f32 %v1096, %v807
        %v1118 = vadd.f32 %v1096, %v894
        %v1119 = vadd.f32 %v1096, %v896
        %v1120 = vadd.f32 %v1096, %v983
        %v1121 = vadd.f32 %v1096, %v985
        %v1122 = vadd.f32 %v1096, %v1072
        %v1123 = vadd.f32 %v1096, %v1074
        %v1124 = vadd.f32 %v1101, %v811
        %v1125 = vadd.f32 %v1101, %v813
        %v1126 = vadd.f32 %v1101, %v900
        %v1127 = vadd.f32 %v1101, %v902
        %v1128 = vadd.f32 %v1101, %v989
        %v1129 = vadd.f32 %v1101, %v991
        %v1130 = vadd.f32 %v1101, %v1078
        %v1131 = vadd.f32 %v1101, %v1080
        %v1132 = vadd.f32 %v1106, %v817
        %v1133 = vadd.f32 %v1106, %v819
        %v1134 = vadd.f32 %v1106, %v906
        %v1135 = vadd.f32 %v1106, %v908
        %v1136 = vadd.f32 %v1106, %v995
        %v1137 = vadd.f32 %v1106, %v997
        %v1138 = vadd.f32 %v1106, %v1084
        %v1139 = vadd.f32 %v1106, %v1086
        %v1140 = vmax.f32 %v1108, 0.0
        %v1141 = vmax.f32 %v1109, 0.0
        %v1142 = vmax.f32 %v1110, 0.0
        %v1143 = vmax.f32 %v1111, 0.0
        %v1144 = vmax.f32 %v1112, 0.0
        %v1145 = vmax.f32 %v1113, 0.0
        %v1146 = vmax.f32 %v1114, 0.0
        %v1147 = vmax.f32 %v1115, 0.0
        %v1148 = vmax.f32 %v1116, 0.0
        %v1149 = vmax.f32 %v1117, 0.0
        %v1150 = vmax.f32 %v1118, 0.0
        %v1151 = vmax.f32 %v1119, 0.0
        %v1152 = vmax.f32 %v1120, 0.0
        %v1153 = vmax.f32 %v1121, 0.0
        %v1154 = vmax.f32 %v1122, 0.0
        %v1155 = vmax.f32 %v1123, 0.0
        %v1156 = vmax.f32 %v1124, 0.0
        %v1157 = vmax.f32 %v1125, 0.0
        %v1158 = vmax.f32 %v1126, 0.0
        %v1159 = vmax.f32 %v1127, 0.0
        %v1160 = vmax.f32 %v1128, 0.0
        %v1161 = vmax.f32 %v1129, 0.0
        %v1162 = vmax.f32 %v1130, 0.0
        %v1163 = vmax.f32 %v1131, 0.0
        %v1164 = vmax.f32 %v1132, 0.0
        %v1165 = vmax.f32 %v1133, 0.0
        %v1166 = vmax.f32 %v1134, 0.0
        %v1167 = vmax.f32 %v1135, 0.0
        %v1168 = vmax.f32 %v1136, 0.0
        %v1169 = vmax.f32 %v1137, 0.0
        %v1170 = vmax.f32 %v1138, 0.0
        %v1171 = vmax.f32 %v1139, 0.0
        %s1172 = scalar_lea.vmem %s3, 32
        %v1173 = vld [vmem:[%s1172] sm:$0xff]
        %v1174 = vld [vmem:[%s1172 + $0x8] sm:$0xff]
        %v1175 = vld [vmem:[%s1172 + $0x10] sm:$0xff]
        %v1176 = vld [vmem:[%s1172 + $0x18] sm:$0xff]
        %v1177 = vld [vmem:[%s2] sm:$0xff]
        %v1178 = vld [vmem:[%s2 + $0x8] sm:$0xff]
        %v1179 = vld [vmem:[%s2 + $0x10] sm:$0xff]
        %v1180 = vld [vmem:[%s2 + $0x18] sm:$0xff]
        %vm1181 = vcmask 261120
        %v1183 = vsel %vm1181, %v1177, 0
        %v1186 = vsel %vm1181, %v1178, 0
        %v1189 = vsel %vm1181, %v1179, 0
        %v1192 = vsel %vm1181, %v1180, 0
        %1194 = vmatprep.subr.mxu0 %v1141
        %1195 = vmatpush1.msra.mxu0 %v1140
        %1196 = vmatprep.subr.mxu0 %v1149
        %1197 = vmatpush1.msra.mxu0 %v1148
        %1198 = vmatprep.subr.mxu0 %v1157
        %1199 = vmatpush1.msra.mxu0 %v1156
        %1200 = vmatprep.subr.mxu0 %v1165
        %1201 = vmatpush1.msra.mxu0 %v1164
        %1202 = vmatprep.subr.mxu0 0.0
        %1203 = vmatpush1.msra.mxu0 0.0
        %1204 = vmatprep.subr.mxu0 0.0
        %1205 = vmatpush1.msra.mxu0 0.0
        %1206 = vmatprep.subr.mxu0 0.0
        %1207 = vmatpush1.msra.mxu0 0.0
        %1208 = vmatprep.subr.mxu0 0.0
        %1209 = vmatpush1.msra.mxu0 0.0
        %1210 = vmatprep.subr.mxu0 0.0
        %1211 = vmatpush1.msra.mxu0 0.0
        %1212 = vmatprep.subr.mxu0 0.0
        %1213 = vmatpush1.msra.mxu0 0.0
        %1214 = vmatprep.subr.mxu0 0.0
        %1215 = vmatpush1.msra.mxu0 0.0
        %1216 = vmatprep.subr.mxu0 0.0
        %1217 = vmatpush1.msra.mxu0 0.0
        %1218 = vmatprep.subr.mxu0 0.0
        %1219 = vmatpush1.msra.mxu0 0.0
        %1220 = vmatprep.subr.mxu0 0.0
        %1221 = vmatpush1.msra.mxu0 0.0
        %1222 = vmatprep.subr.mxu0 0.0
        %1223 = vmatpush1.msra.mxu0 0.0
        %1224 = vmatprep.subr.mxu0 0.0
        %1225 = vmatpush1.msra.mxu0 0.0
        %1226 = vmatprep.subr.mxu0 0.0
        %1227 = vmatpush1.msra.mxu0 0.0
        %1228 = vmatprep.subr.mxu0 0.0
        %1229 = vmatpush1.msra.mxu0 0.0
        %1230 = vmatprep.subr.mxu0 0.0
        %1231 = vmatpush1.msra.mxu0 0.0
        %1232 = vmatprep.subr.mxu0 0.0
        %1233 = vmatpush1.msra.mxu0 0.0
        %1234 = vmatprep.subr.mxu0 0.0
        %1235 = vmatpush1.msra.mxu0 0.0
        %1236 = vmatprep.subr.mxu0 0.0
        %1237 = vmatpush1.msra.mxu0 0.0
        %1238 = vmatprep.subr.mxu0 0.0
        %1239 = vmatpush1.msra.mxu0 0.0
        %1240 = vmatprep.subr.mxu0 0.0
        %1241 = vmatpush1.msra.mxu0 0.0
        %1242 = vmatprep.subr.mxu0 0.0
        %1243 = vmatpush1.msra.mxu0 0.0
        %1244 = vmatprep.subr.mxu0 0.0
        %1245 = vmatpush1.msra.mxu0 0.0
        %1246 = vmatprep.subr.mxu0 0.0
        %1247 = vmatpush1.msra.mxu0 0.0
        %1248 = vmatprep.subr.mxu0 0.0
        %1249 = vmatpush1.msra.mxu0 0.0
        %1250 = vmatprep.subr.mxu0 0.0
        %1251 = vmatpush1.msra.mxu0 0.0
        %1252 = vmatprep.subr.mxu0 0.0
        %1253 = vmatpush1.msra.mxu0 0.0
        %1254 = vmatprep.subr.mxu0 0.0
        %1255 = vmatpush1.msra.mxu0 0.0
        %1256 = vmatprep.subr.mxu0 0.0
        %1257 = vmatpush1.msra.mxu0 0.0
        %1258 = vmatprep.mubr.f32.mxu0 0.0
        %1259 = vmatmul.mubr.f32.gmra.mrb[0].mxu0 %v1183
        %v1260 = vpop.f32.mrb[0].mxu0
        %v1261 = vadd.f32 0.0, %v1260
        %v1262 = vpop.f32.mrb[0].mxu0
        %v1263 = vadd.f32 0.0, %v1262
        %1264 = vmatprep.mubr.f32.mxu0 0.0
        %1265 = vmatmul.mubr.f32.gmra.mrb[0].mxu0 %v1186
        %v1266 = vpop.f32.mrb[0].mxu0
        %v1267 = vadd.f32 0.0, %v1266
        %v1268 = vpop.f32.mrb[0].mxu0
        %v1269 = vadd.f32 0.0, %v1268
        %1270 = vmatprep.mubr.f32.mxu0 0.0
        %1271 = vmatmul.mubr.f32.gmra.mrb[0].mxu0 %v1189
        %v1272 = vpop.f32.mrb[0].mxu0
        %v1273 = vadd.f32 0.0, %v1272
        %v1274 = vpop.f32.mrb[0].mxu0
        %v1275 = vadd.f32 0.0, %v1274
        %1276 = vmatprep.mubr.f32.mxu0 0.0
        %1277 = vmatmul.mubr.f32.gmra.mrb[0].mxu0 %v1192
        %v1278 = vpop.f32.mrb[0].mxu0
        %v1279 = vadd.f32 0.0, %v1278
        %v1280 = vpop.f32.mrb[0].mxu0
        %v1281 = vadd.f32 0.0, %v1280
        %1282 = vdwg.mxu0
        %1283 = vmatprep.subr.mxu0 %v1143
        %1284 = vmatpush1.msra.mxu0 %v1142
        %1285 = vmatprep.subr.mxu0 %v1151
        %1286 = vmatpush1.msra.mxu0 %v1150
        %1287 = vmatprep.subr.mxu0 %v1159
        %1288 = vmatpush1.msra.mxu0 %v1158
        %1289 = vmatprep.subr.mxu0 %v1167
        %1290 = vmatpush1.msra.mxu0 %v1166
        %1291 = vmatprep.subr.mxu0 0.0
        %1292 = vmatpush1.msra.mxu0 0.0
        %1293 = vmatprep.subr.mxu0 0.0
        %1294 = vmatpush1.msra.mxu0 0.0
        %1295 = vmatprep.subr.mxu0 0.0
        %1296 = vmatpush1.msra.mxu0 0.0
        %1297 = vmatprep.subr.mxu0 0.0
        %1298 = vmatpush1.msra.mxu0 0.0
        %1299 = vmatprep.subr.mxu0 0.0
        %1300 = vmatpush1.msra.mxu0 0.0
        %1301 = vmatprep.subr.mxu0 0.0
        %1302 = vmatpush1.msra.mxu0 0.0
        %1303 = vmatprep.subr.mxu0 0.0
        %1304 = vmatpush1.msra.mxu0 0.0
        %1305 = vmatprep.subr.mxu0 0.0
        %1306 = vmatpush1.msra.mxu0 0.0
        %1307 = vmatprep.subr.mxu0 0.0
        %1308 = vmatpush1.msra.mxu0 0.0
        %1309 = vmatprep.subr.mxu0 0.0
        %1310 = vmatpush1.msra.mxu0 0.0
        %1311 = vmatprep.subr.mxu0 0.0
        %1312 = vmatpush1.msra.mxu0 0.0
        %1313 = vmatprep.subr.mxu0 0.0
        %1314 = vmatpush1.msra.mxu0 0.0
        %1315 = vmatprep.subr.mxu0 0.0
        %1316 = vmatpush1.msra.mxu0 0.0
        %1317 = vmatprep.subr.mxu0 0.0
        %1318 = vmatpush1.msra.mxu0 0.0
        %1319 = vmatprep.subr.mxu0 0.0
        %1320 = vmatpush1.msra.mxu0 0.0
        %1321 = vmatprep.subr.mxu0 0.0
        %1322 = vmatpush1.msra.mxu0 0.0
        %1323 = vmatprep.subr.mxu0 0.0
        %1324 = vmatpush1.msra.mxu0 0.0
        %1325 = vmatprep.subr.mxu0 0.0
        %1326 = vmatpush1.msra.mxu0 0.0
        %1327 = vmatprep.subr.mxu0 0.0
        %1328 = vmatpush1.msra.mxu0 0.0
        %1329 = vmatprep.subr.mxu0 0.0
        %1330 = vmatpush1.msra.mxu0 0.0
        %1331 = vmatprep.subr.mxu0 0.0
        %1332 = vmatpush1.msra.mxu0 0.0
        %1333 = vmatprep.subr.mxu0 0.0
        %1334 = vmatpush1.msra.mxu0 0.0
        %1335 = vmatprep.subr.mxu0 0.0
        %1336 = vmatpush1.msra.mxu0 0.0
        %1337 = vmatprep.subr.mxu0 0.0
        %1338 = vmatpush1.msra.mxu0 0.0
        %1339 = vmatprep.subr.mxu0 0.0
        %1340 = vmatpush1.msra.mxu0 0.0
        %1341 = vmatprep.subr.mxu0 0.0
        %1342 = vmatpush1.msra.mxu0 0.0
        %1343 = vmatprep.subr.mxu0 0.0
        %1344 = vmatpush1.msra.mxu0 0.0
        %1345 = vmatprep.subr.mxu0 0.0
        %1346 = vmatpush1.msra.mxu0 0.0
        %1347 = vmatprep.mubr.f32.mxu0 0.0
        %1348 = vmatmul.mubr.f32.gmra.mrb[0].mxu0 %v1183
        %v1349 = vpop.f32.mrb[0].mxu0
        %v1350 = vadd.f32 0.0, %v1349
        %v1351 = vpop.f32.mrb[0].mxu0
        %v1352 = vadd.f32 0.0, %v1351
        %1353 = vmatprep.mubr.f32.mxu0 0.0
        %1354 = vmatmul.mubr.f32.gmra.mrb[0].mxu0 %v1186
        %v1355 = vpop.f32.mrb[0].mxu0
        %v1356 = vadd.f32 0.0, %v1355
        %v1357 = vpop.f32.mrb[0].mxu0
        %v1358 = vadd.f32 0.0, %v1357
        %1359 = vmatprep.mubr.f32.mxu0 0.0
        %1360 = vmatmul.mubr.f32.gmra.mrb[0].mxu0 %v1189
        %v1361 = vpop.f32.mrb[0].mxu0
        %v1362 = vadd.f32 0.0, %v1361
        %v1363 = vpop.f32.mrb[0].mxu0
        %v1364 = vadd.f32 0.0, %v1363
        %1365 = vmatprep.mubr.f32.mxu0 0.0
        %1366 = vmatmul.mubr.f32.gmra.mrb[0].mxu0 %v1192
        %v1367 = vpop.f32.mrb[0].mxu0
        %v1368 = vadd.f32 0.0, %v1367
        %v1369 = vpop.f32.mrb[0].mxu0
        %v1370 = vadd.f32 0.0, %v1369
        %1371 = vdwg.mxu0
        %1372 = vmatprep.subr.mxu0 %v1145
        %1373 = vmatpush1.msra.mxu0 %v1144
        %1374 = vmatprep.subr.mxu0 %v1153
        %1375 = vmatpush1.msra.mxu0 %v1152
        %1376 = vmatprep.subr.mxu0 %v1161
        %1377 = vmatpush1.msra.mxu0 %v1160
        %1378 = vmatprep.subr.mxu0 %v1169
        %1379 = vmatpush1.msra.mxu0 %v1168
        %1380 = vmatprep.subr.mxu0 0.0
        %1381 = vmatpush1.msra.mxu0 0.0
        %1382 = vmatprep.subr.mxu0 0.0
        %1383 = vmatpush1.msra.mxu0 0.0
        %1384 = vmatprep.subr.mxu0 0.0
        %1385 = vmatpush1.msra.mxu0 0.0
        %1386 = vmatprep.subr.mxu0 0.0
        %1387 = vmatpush1.msra.mxu0 0.0
        %1388 = vmatprep.subr.mxu0 0.0
        %1389 = vmatpush1.msra.mxu0 0.0
        %1390 = vmatprep.subr.mxu0 0.0
        %1391 = vmatpush1.msra.mxu0 0.0
        %1392 = vmatprep.subr.mxu0 0.0
        %1393 = vmatpush1.msra.mxu0 0.0
        %1394 = vmatprep.subr.mxu0 0.0
        %1395 = vmatpush1.msra.mxu0 0.0
        %1396 = vmatprep.subr.mxu0 0.0
        %1397 = vmatpush1.msra.mxu0 0.0
        %1398 = vmatprep.subr.mxu0 0.0
        %1399 = vmatpush1.msra.mxu0 0.0
        %1400 = vmatprep.subr.mxu0 0.0
        %1401 = vmatpush1.msra.mxu0 0.0
        %1402 = vmatprep.subr.mxu0 0.0
        %1403 = vmatpush1.msra.mxu0 0.0
        %1404 = vmatprep.subr.mxu0 0.0
        %1405 = vmatpush1.msra.mxu0 0.0
        %1406 = vmatprep.subr.mxu0 0.0
        %1407 = vmatpush1.msra.mxu0 0.0
        %1408 = vmatprep.subr.mxu0 0.0
        %1409 = vmatpush1.msra.mxu0 0.0
        %1410 = vmatprep.subr.mxu0 0.0
        %1411 = vmatpush1.msra.mxu0 0.0
        %1412 = vmatprep.subr.mxu0 0.0
        %1413 = vmatpush1.msra.mxu0 0.0
        %1414 = vmatprep.subr.mxu0 0.0
        %1415 = vmatpush1.msra.mxu0 0.0
        %1416 = vmatprep.subr.mxu0 0.0
        %1417 = vmatpush1.msra.mxu0 0.0
        %1418 = vmatprep.subr.mxu0 0.0
        %1419 = vmatpush1.msra.mxu0 0.0
        %1420 = vmatprep.subr.mxu0 0.0
        %1421 = vmatpush1.msra.mxu0 0.0
        %1422 = vmatprep.subr.mxu0 0.0
        %1423 = vmatpush1.msra.mxu0 0.0
        %1424 = vmatprep.subr.mxu0 0.0
        %1425 = vmatpush1.msra.mxu0 0.0
        %1426 = vmatprep.subr.mxu0 0.0
        %1427 = vmatpush1.msra.mxu0 0.0
        %1428 = vmatprep.subr.mxu0 0.0
        %1429 = vmatpush1.msra.mxu0 0.0
        %1430 = vmatprep.subr.mxu0 0.0
        %1431 = vmatpush1.msra.mxu0 0.0
        %1432 = vmatprep.subr.mxu0 0.0
        %1433 = vmatpush1.msra.mxu0 0.0
        %1434 = vmatprep.subr.mxu0 0.0
        %1435 = vmatpush1.msra.mxu0 0.0
        %1436 = vmatprep.mubr.f32.mxu0 0.0
        %1437 = vmatmul.mubr.f32.gmra.mrb[0].mxu0 %v1183
        %v1438 = vpop.f32.mrb[0].mxu0
        %v1439 = vadd.f32 0.0, %v1438
        %v1440 = vpop.f32.mrb[0].mxu0
        %v1441 = vadd.f32 0.0, %v1440
        %1442 = vmatprep.mubr.f32.mxu0 0.0
        %1443 = vmatmul.mubr.f32.gmra.mrb[0].mxu0 %v1186
        %v1444 = vpop.f32.mrb[0].mxu0
        %v1445 = vadd.f32 0.0, %v1444
        %v1446 = vpop.f32.mrb[0].mxu0
        %v1447 = vadd.f32 0.0, %v1446
        %1448 = vmatprep.mubr.f32.mxu0 0.0
        %1449 = vmatmul.mubr.f32.gmra.mrb[0].mxu0 %v1189
        %v1450 = vpop.f32.mrb[0].mxu0
        %v1451 = vadd.f32 0.0, %v1450
        %v1452 = vpop.f32.mrb[0].mxu0
        %v1453 = vadd.f32 0.0, %v1452
        %1454 = vmatprep.mubr.f32.mxu0 0.0
        %1455 = vmatmul.mubr.f32.gmra.mrb[0].mxu0 %v1192
        %v1456 = vpop.f32.mrb[0].mxu0
        %v1457 = vadd.f32 0.0, %v1456
        %v1458 = vpop.f32.mrb[0].mxu0
        %v1459 = vadd.f32 0.0, %v1458
        %1460 = vdwg.mxu0
        %1461 = vmatprep.subr.mxu0 %v1147
        %1462 = vmatpush1.msra.mxu0 %v1146
        %1463 = vmatprep.subr.mxu0 %v1155
        %1464 = vmatpush1.msra.mxu0 %v1154
        %1465 = vmatprep.subr.mxu0 %v1163
        %1466 = vmatpush1.msra.mxu0 %v1162
        %1467 = vmatprep.subr.mxu0 %v1171
        %1468 = vmatpush1.msra.mxu0 %v1170
        %1469 = vmatprep.subr.mxu0 0.0
        %1470 = vmatpush1.msra.mxu0 0.0
        %1471 = vmatprep.subr.mxu0 0.0
        %1472 = vmatpush1.msra.mxu0 0.0
        %1473 = vmatprep.subr.mxu0 0.0
        %1474 = vmatpush1.msra.mxu0 0.0
        %1475 = vmatprep.subr.mxu0 0.0
        %1476 = vmatpush1.msra.mxu0 0.0
        %1477 = vmatprep.subr.mxu0 0.0
        %1478 = vmatpush1.msra.mxu0 0.0
        %1479 = vmatprep.subr.mxu0 0.0
        %1480 = vmatpush1.msra.mxu0 0.0
        %1481 = vmatprep.subr.mxu0 0.0
        %1482 = vmatpush1.msra.mxu0 0.0
        %1483 = vmatprep.subr.mxu0 0.0
        %1484 = vmatpush1.msra.mxu0 0.0
        %1485 = vmatprep.subr.mxu0 0.0
        %1486 = vmatpush1.msra.mxu0 0.0
        %1487 = vmatprep.subr.mxu0 0.0
        %1488 = vmatpush1.msra.mxu0 0.0
        %1489 = vmatprep.subr.mxu0 0.0
        %1490 = vmatpush1.msra.mxu0 0.0
        %1491 = vmatprep.subr.mxu0 0.0
        %1492 = vmatpush1.msra.mxu0 0.0
        %1493 = vmatprep.subr.mxu0 0.0
        %1494 = vmatpush1.msra.mxu0 0.0
        %1495 = vmatprep.subr.mxu0 0.0
        %1496 = vmatpush1.msra.mxu0 0.0
        %1497 = vmatprep.subr.mxu0 0.0
        %1498 = vmatpush1.msra.mxu0 0.0
        %1499 = vmatprep.subr.mxu0 0.0
        %1500 = vmatpush1.msra.mxu0 0.0
        %1501 = vmatprep.subr.mxu0 0.0
        %1502 = vmatpush1.msra.mxu0 0.0
        %1503 = vmatprep.subr.mxu0 0.0
        %1504 = vmatpush1.msra.mxu0 0.0
        %1505 = vmatprep.subr.mxu0 0.0
        %1506 = vmatpush1.msra.mxu0 0.0
        %1507 = vmatprep.subr.mxu0 0.0
        %1508 = vmatpush1.msra.mxu0 0.0
        %1509 = vmatprep.subr.mxu0 0.0
        %1510 = vmatpush1.msra.mxu0 0.0
        %1511 = vmatprep.subr.mxu0 0.0
        %1512 = vmatpush1.msra.mxu0 0.0
        %1513 = vmatprep.subr.mxu0 0.0
        %1514 = vmatpush1.msra.mxu0 0.0
        %1515 = vmatprep.subr.mxu0 0.0
        %1516 = vmatpush1.msra.mxu0 0.0
        %1517 = vmatprep.subr.mxu0 0.0
        %1518 = vmatpush1.msra.mxu0 0.0
        %1519 = vmatprep.subr.mxu0 0.0
        %1520 = vmatpush1.msra.mxu0 0.0
        %1521 = vmatprep.subr.mxu0 0.0
        %1522 = vmatpush1.msra.mxu0 0.0
        %1523 = vmatprep.subr.mxu0 0.0
        %1524 = vmatpush1.msra.mxu0 0.0
        %1525 = vmatprep.mubr.f32.mxu0 0.0
        %1526 = vmatmul.mubr.f32.gmra.mrb[0].mxu0 %v1183
        %v1527 = vpop.f32.mrb[0].mxu0
        %v1528 = vadd.f32 0.0, %v1527
        %v1529 = vpop.f32.mrb[0].mxu0
        %v1530 = vadd.f32 0.0, %v1529
        %1531 = vmatprep.mubr.f32.mxu0 0.0
        %1532 = vmatmul.mubr.f32.gmra.mrb[0].mxu0 %v1186
        %v1533 = vpop.f32.mrb[0].mxu0
        %v1534 = vadd.f32 0.0, %v1533
        %v1535 = vpop.f32.mrb[0].mxu0
        %v1536 = vadd.f32 0.0, %v1535
        %1537 = vmatprep.mubr.f32.mxu0 0.0
        %1538 = vmatmul.mubr.f32.gmra.mrb[0].mxu0 %v1189
        %v1539 = vpop.f32.mrb[0].mxu0
        %v1540 = vadd.f32 0.0, %v1539
        %v1541 = vpop.f32.mrb[0].mxu0
        %v1542 = vadd.f32 0.0, %v1541
        %1543 = vmatprep.mubr.f32.mxu0 0.0
        %1544 = vmatmul.mubr.f32.gmra.mrb[0].mxu0 %v1192
        %v1545 = vpop.f32.mrb[0].mxu0
        %v1546 = vadd.f32 0.0, %v1545
        %v1547 = vpop.f32.mrb[0].mxu0
        %v1548 = vadd.f32 0.0, %v1547
        %1549 = vdwg.mxu0
        %1551 = vset.pattern.permute.xlu0 0
        %1552 = vperm.xlu0 %1551, %v1173
        %v1553 = vpop.permute.xlu0 %1552
        %1556 = vset.pattern.permute.xlu0 0
        %1557 = vperm.xlu0 %1556, %v1174
        %v1558 = vpop.permute.xlu0 %1557
        %1561 = vset.pattern.permute.xlu0 0
        %1562 = vperm.xlu0 %1561, %v1175
        %v1563 = vpop.permute.xlu0 %1562
        %1566 = vset.pattern.permute.xlu0 0
        %1567 = vperm.xlu0 %1566, %v1176
        %v1568 = vpop.permute.xlu0 %1567
        %v1570 = vadd.f32 %v1553, %v1261
        %v1571 = vadd.f32 %v1553, %v1263
        %v1572 = vadd.f32 %v1553, %v1350
        %v1573 = vadd.f32 %v1553, %v1352
        %v1574 = vadd.f32 %v1553, %v1439
        %v1575 = vadd.f32 %v1553, %v1441
        %v1576 = vadd.f32 %v1553, %v1528
        %v1577 = vadd.f32 %v1553, %v1530
        %v1578 = vadd.f32 %v1558, %v1267
        %v1579 = vadd.f32 %v1558, %v1269
        %v1580 = vadd.f32 %v1558, %v1356
        %v1581 = vadd.f32 %v1558, %v1358
        %v1582 = vadd.f32 %v1558, %v1445
        %v1583 = vadd.f32 %v1558, %v1447
        %v1584 = vadd.f32 %v1558, %v1534
        %v1585 = vadd.f32 %v1558, %v1536
        %v1586 = vadd.f32 %v1563, %v1273
        %v1587 = vadd.f32 %v1563, %v1275
        %v1588 = vadd.f32 %v1563, %v1362
        %v1589 = vadd.f32 %v1563, %v1364
        %v1590 = vadd.f32 %v1563, %v1451
        %v1591 = vadd.f32 %v1563, %v1453
        %v1592 = vadd.f32 %v1563, %v1540
        %v1593 = vadd.f32 %v1563, %v1542
        %v1594 = vadd.f32 %v1568, %v1279
        %v1595 = vadd.f32 %v1568, %v1281
        %v1596 = vadd.f32 %v1568, %v1368
        %v1597 = vadd.f32 %v1568, %v1370
        %v1598 = vadd.f32 %v1568, %v1457
        %v1599 = vadd.f32 %v1568, %v1459
        %v1600 = vadd.f32 %v1568, %v1546
        %v1601 = vadd.f32 %v1568, %v1548
        %v1602 = vmax.f32 %v1570, 0.0
        %v1603 = vmax.f32 %v1571, 0.0
        %v1604 = vmax.f32 %v1572, 0.0
        %v1605 = vmax.f32 %v1573, 0.0
        %v1606 = vmax.f32 %v1574, 0.0
        %v1607 = vmax.f32 %v1575, 0.0
        %v1608 = vmax.f32 %v1576, 0.0
        %v1609 = vmax.f32 %v1577, 0.0
        %v1610 = vmax.f32 %v1578, 0.0
        %v1611 = vmax.f32 %v1579, 0.0
        %v1612 = vmax.f32 %v1580, 0.0
        %v1613 = vmax.f32 %v1581, 0.0
        %v1614 = vmax.f32 %v1582, 0.0
        %v1615 = vmax.f32 %v1583, 0.0
        %v1616 = vmax.f32 %v1584, 0.0
        %v1617 = vmax.f32 %v1585, 0.0
        %v1618 = vmax.f32 %v1586, 0.0
        %v1619 = vmax.f32 %v1587, 0.0
        %v1620 = vmax.f32 %v1588, 0.0
        %v1621 = vmax.f32 %v1589, 0.0
        %v1622 = vmax.f32 %v1590, 0.0
        %v1623 = vmax.f32 %v1591, 0.0
        %v1624 = vmax.f32 %v1592, 0.0
        %v1625 = vmax.f32 %v1593, 0.0
        %v1626 = vmax.f32 %v1594, 0.0
        %v1627 = vmax.f32 %v1595, 0.0
        %v1628 = vmax.f32 %v1596, 0.0
        %v1629 = vmax.f32 %v1597, 0.0
        %v1630 = vmax.f32 %v1598, 0.0
        %v1631 = vmax.f32 %v1599, 0.0
        %v1632 = vmax.f32 %v1600, 0.0
        %v1633 = vmax.f32 %v1601, 0.0
        %s1634 = scalar_lea.vmem %s3, 64
        %v1635 = vld [vmem:[%s1634] sm:$0xff]
        %v1636 = vld [vmem:[%s1634 + $0x8] sm:$0xff]
        %v1637 = vld [vmem:[%s1634 + $0x10] sm:$0xff]
        %v1638 = vld [vmem:[%s1634 + $0x18] sm:$0xff]
        %s1639 = scalar_lea.vmem %s1, 32
        %v1640 = vld [vmem:[%s1639] sm:$0xff]
        %v1641 = vld [vmem:[%s1639 + $0x8] sm:$0xff]
        %v1642 = vld [vmem:[%s1639 + $0x10] sm:$0xff]
        %v1643 = vld [vmem:[%s1639 + $0x18] sm:$0xff]
        %v1645 = vsel %vm335, %v1640, 0
        %v1648 = vsel %vm335, %v1641, 0
        %v1651 = vsel %vm335, %v1642, 0
        %v1654 = vsel %vm335, %v1643, 0
        %1656 = vmatprep.subr.mxu0 0.0
        %1657 = vmatpush1.xpose.msra.mxu0 %v349
        %1658 = vmatprep.subr.mxu0 0.0
        %1659 = vmatpush1.xpose.msra.mxu0 %v352
        %1660 = vmatprep.subr.mxu0 0.0
        %1661 = vmatpush1.xpose.msra.mxu0 %v355
        %1662 = vmatprep.subr.mxu0 0.0
        %1663 = vmatpush1.xpose.msra.mxu0 %v358
        %1664 = vmatprep.subr.mxu0 0.0
        %1665 = vmatpush1.xpose.msra.mxu0 %v361
        %1666 = vmatprep.subr.mxu0 0.0
        %1667 = vmatpush1.xpose.msra.mxu0 %v364
        %1668 = vmatprep.subr.mxu0 0.0
        %1669 = vmatpush1.xpose.msra.mxu0 %v367
        %1670 = vmatprep.subr.mxu0 0.0
        %1671 = vmatpush1.xpose.msra.mxu0 %v370
        %1672 = vmatprep.subr.mxu0 0.0
        %1673 = vmatpush1.xpose.msra.mxu0 %v373
        %1674 = vmatprep.subr.mxu0 0.0
        %1675 = vmatpush1.xpose.msra.mxu0 %v376
        %1676 = vmatprep.subr.mxu0 0.0
        %1677 = vmatpush1.xpose.msra.mxu0 %v379
        %1678 = vmatprep.subr.mxu0 0.0
        %1679 = vmatpush1.xpose.msra.mxu0 %v382
        %1680 = vmatprep.subr.mxu0 0.0
        %1681 = vmatpush1.xpose.msra.mxu0 %v385
        %1682 = vmatprep.subr.mxu0 0.0
        %1683 = vmatpush1.xpose.msra.mxu0 %v388
        %1684 = vmatprep.subr.mxu0 0.0
        %1685 = vmatpush1.xpose.msra.mxu0 %v391
        %1686 = vmatprep.subr.mxu0 0.0
        %1687 = vmatpush1.xpose.msra.mxu0 %v394
        %1688 = vmatprep.subr.mxu0 0.0
        %1689 = vmatpush1.xpose.msra.mxu0 %v397
        %1690 = vmatprep.subr.mxu0 0.0
        %1691 = vmatpush1.xpose.msra.mxu0 %v400
        %1692 = vmatprep.subr.mxu0 0.0
        %1693 = vmatpush1.xpose.msra.mxu0 %v403
        %1694 = vmatprep.subr.mxu0 0.0
        %1695 = vmatpush1.xpose.msra.mxu0 %v406
        %1696 = vmatprep.subr.mxu0 0.0
        %1697 = vmatpush1.xpose.msra.mxu0 %v409
        %1698 = vmatprep.subr.mxu0 0.0
        %1699 = vmatpush1.xpose.msra.mxu0 %v412
        %1700 = vmatprep.subr.mxu0 0.0
        %1701 = vmatpush1.xpose.msra.mxu0 %v415
        %1702 = vmatprep.subr.mxu0 0.0
        %1703 = vmatpush1.xpose.msra.mxu0 %v418
        %1704 = vmatprep.subr.mxu0 0.0
        %1705 = vmatpush1.xpose.msra.mxu0 %v421
        %1706 = vmatprep.subr.mxu0 0.0
        %1707 = vmatpush1.xpose.msra.mxu0 %v424
        %1708 = vmatprep.subr.mxu0 0.0
        %1709 = vmatpush1.xpose.msra.mxu0 %v427
        %1710 = vmatprep.subr.mxu0 0.0
        %1711 = vmatpush1.xpose.msra.mxu0 %v430
        %1712 = vmatprep.subr.mxu0 0.0
        %1713 = vmatpush1.xpose.msra.mxu0 %v433
        %1714 = vmatprep.subr.mxu0 0.0
        %1715 = vmatpush1.xpose.msra.mxu0 %v436
        %1716 = vmatprep.subr.mxu0 0.0
        %1717 = vmatpush1.xpose.msra.mxu0 %v439
        %1718 = vmatprep.subr.mxu0 0.0
        %1719 = vmatpush1.xpose.msra.mxu0 %v442
        %1720 = vmatprep.mubr.f32.mxu0 0.0
        %1721 = vmatmul.mubr.f32.gmra.mrb[0].mxu0 %v1645
        %v1722 = vpop.f32.mrb[0].mxu0
        %v1723 = vadd.f32 0.0, %v1722
        %v1724 = vpop.f32.mrb[0].mxu0
        %v1725 = vadd.f32 0.0, %v1724
        %1726 = vmatprep.mubr.f32.mxu0 0.0
        %1727 = vmatmul.mubr.f32.gmra.mrb[0].mxu0 %v1648
        %v1728 = vpop.f32.mrb[0].mxu0
        %v1729 = vadd.f32 0.0, %v1728
        %v1730 = vpop.f32.mrb[0].mxu0
        %v1731 = vadd.f32 0.0, %v1730
        %1732 = vmatprep.mubr.f32.mxu0 0.0
        %1733 = vmatmul.mubr.f32.gmra.mrb[0].mxu0 %v1651
        %v1734 = vpop.f32.mrb[0].mxu0
        %v1735 = vadd.f32 0.0, %v1734
        %v1736 = vpop.f32.mrb[0].mxu0
        %v1737 = vadd.f32 0.0, %v1736
        %1738 = vmatprep.mubr.f32.mxu0 0.0
        %1739 = vmatmul.mubr.f32.gmra.mrb[0].mxu0 %v1654
        %v1740 = vpop.f32.mrb[0].mxu0
        %v1741 = vadd.f32 0.0, %v1740
        %v1742 = vpop.f32.mrb[0].mxu0
        %v1743 = vadd.f32 0.0, %v1742
        %1744 = vdwg.mxu0
        %1745 = vmatprep.subr.mxu0 0.0
        %1746 = vmatpush1.xpose.msra.mxu0 %v445
        %1747 = vmatprep.subr.mxu0 0.0
        %1748 = vmatpush1.xpose.msra.mxu0 %v448
        %1749 = vmatprep.subr.mxu0 0.0
        %1750 = vmatpush1.xpose.msra.mxu0 %v451
        %1751 = vmatprep.subr.mxu0 0.0
        %1752 = vmatpush1.xpose.msra.mxu0 %v454
        %1753 = vmatprep.subr.mxu0 0.0
        %1754 = vmatpush1.xpose.msra.mxu0 %v457
        %1755 = vmatprep.subr.mxu0 0.0
        %1756 = vmatpush1.xpose.msra.mxu0 %v460
        %1757 = vmatprep.subr.mxu0 0.0
        %1758 = vmatpush1.xpose.msra.mxu0 %v463
        %1759 = vmatprep.subr.mxu0 0.0
        %1760 = vmatpush1.xpose.msra.mxu0 %v466
        %1761 = vmatprep.subr.mxu0 0.0
        %1762 = vmatpush1.xpose.msra.mxu0 %v469
        %1763 = vmatprep.subr.mxu0 0.0
        %1764 = vmatpush1.xpose.msra.mxu0 %v472
        %1765 = vmatprep.subr.mxu0 0.0
        %1766 = vmatpush1.xpose.msra.mxu0 %v475
        %1767 = vmatprep.subr.mxu0 0.0
        %1768 = vmatpush1.xpose.msra.mxu0 %v478
        %1769 = vmatprep.subr.mxu0 0.0
        %1770 = vmatpush1.xpose.msra.mxu0 %v481
        %1771 = vmatprep.subr.mxu0 0.0
        %1772 = vmatpush1.xpose.msra.mxu0 %v484
        %1773 = vmatprep.subr.mxu0 0.0
        %1774 = vmatpush1.xpose.msra.mxu0 %v487
        %1775 = vmatprep.subr.mxu0 0.0
        %1776 = vmatpush1.xpose.msra.mxu0 %v490
        %1777 = vmatprep.subr.mxu0 0.0
        %1778 = vmatpush1.xpose.msra.mxu0 %v493
        %1779 = vmatprep.subr.mxu0 0.0
        %1780 = vmatpush1.xpose.msra.mxu0 %v496
        %1781 = vmatprep.subr.mxu0 0.0
        %1782 = vmatpush1.xpose.msra.mxu0 %v499
        %1783 = vmatprep.subr.mxu0 0.0
        %1784 = vmatpush1.xpose.msra.mxu0 %v502
        %1785 = vmatprep.subr.mxu0 0.0
        %1786 = vmatpush1.xpose.msra.mxu0 %v505
        %1787 = vmatprep.subr.mxu0 0.0
        %1788 = vmatpush1.xpose.msra.mxu0 %v508
        %1789 = vmatprep.subr.mxu0 0.0
        %1790 = vmatpush1.xpose.msra.mxu0 %v511
        %1791 = vmatprep.subr.mxu0 0.0
        %1792 = vmatpush1.xpose.msra.mxu0 %v514
        %1793 = vmatprep.subr.mxu0 0.0
        %1794 = vmatpush1.xpose.msra.mxu0 %v517
        %1795 = vmatprep.subr.mxu0 0.0
        %1796 = vmatpush1.xpose.msra.mxu0 %v520
        %1797 = vmatprep.subr.mxu0 0.0
        %1798 = vmatpush1.xpose.msra.mxu0 %v523
        %1799 = vmatprep.subr.mxu0 0.0
        %1800 = vmatpush1.xpose.msra.mxu0 %v526
        %1801 = vmatprep.subr.mxu0 0.0
        %1802 = vmatpush1.xpose.msra.mxu0 %v529
        %1803 = vmatprep.subr.mxu0 0.0
        %1804 = vmatpush1.xpose.msra.mxu0 %v532
        %1805 = vmatprep.subr.mxu0 0.0
        %1806 = vmatpush1.xpose.msra.mxu0 %v535
        %1807 = vmatprep.subr.mxu0 0.0
        %1808 = vmatpush1.xpose.msra.mxu0 %v538
        %1809 = vmatprep.mubr.f32.mxu0 0.0
        %1810 = vmatmul.mubr.f32.gmra.mrb[0].mxu0 %v1645
        %v1811 = vpop.f32.mrb[0].mxu0
        %v1812 = vadd.f32 0.0, %v1811
        %v1813 = vpop.f32.mrb[0].mxu0
        %v1814 = vadd.f32 0.0, %v1813
        %1815 = vmatprep.mubr.f32.mxu0 0.0
        %1816 = vmatmul.mubr.f32.gmra.mrb[0].mxu0 %v1648
        %v1817 = vpop.f32.mrb[0].mxu0
        %v1818 = vadd.f32 0.0, %v1817
        %v1819 = vpop.f32.mrb[0].mxu0
        %v1820 = vadd.f32 0.0, %v1819
        %1821 = vmatprep.mubr.f32.mxu0 0.0
        %1822 = vmatmul.mubr.f32.gmra.mrb[0].mxu0 %v1651
        %v1823 = vpop.f32.mrb[0].mxu0
        %v1824 = vadd.f32 0.0, %v1823
        %v1825 = vpop.f32.mrb[0].mxu0
        %v1826 = vadd.f32 0.0, %v1825
        %1827 = vmatprep.mubr.f32.mxu0 0.0
        %1828 = vmatmul.mubr.f32.gmra.mrb[0].mxu0 %v1654
        %v1829 = vpop.f32.mrb[0].mxu0
        %v1830 = vadd.f32 0.0, %v1829
        %v1831 = vpop.f32.mrb[0].mxu0
        %v1832 = vadd.f32 0.0, %v1831
        %1833 = vdwg.mxu0
        %1834 = vmatprep.subr.mxu0 0.0
        %1835 = vmatpush1.xpose.msra.mxu0 %v541
        %1836 = vmatprep.subr.mxu0 0.0
        %1837 = vmatpush1.xpose.msra.mxu0 %v544
        %1838 = vmatprep.subr.mxu0 0.0
        %1839 = vmatpush1.xpose.msra.mxu0 %v547
        %1840 = vmatprep.subr.mxu0 0.0
        %1841 = vmatpush1.xpose.msra.mxu0 %v550
        %1842 = vmatprep.subr.mxu0 0.0
        %1843 = vmatpush1.xpose.msra.mxu0 %v553
        %1844 = vmatprep.subr.mxu0 0.0
        %1845 = vmatpush1.xpose.msra.mxu0 %v556
        %1846 = vmatprep.subr.mxu0 0.0
        %1847 = vmatpush1.xpose.msra.mxu0 %v559
        %1848 = vmatprep.subr.mxu0 0.0
        %1849 = vmatpush1.xpose.msra.mxu0 %v562
        %1850 = vmatprep.subr.mxu0 0.0
        %1851 = vmatpush1.xpose.msra.mxu0 %v565
        %1852 = vmatprep.subr.mxu0 0.0
        %1853 = vmatpush1.xpose.msra.mxu0 %v568
        %1854 = vmatprep.subr.mxu0 0.0
        %1855 = vmatpush1.xpose.msra.mxu0 %v571
        %1856 = vmatprep.subr.mxu0 0.0
        %1857 = vmatpush1.xpose.msra.mxu0 %v574
        %1858 = vmatprep.subr.mxu0 0.0
        %1859 = vmatpush1.xpose.msra.mxu0 %v577
        %1860 = vmatprep.subr.mxu0 0.0
        %1861 = vmatpush1.xpose.msra.mxu0 %v580
        %1862 = vmatprep.subr.mxu0 0.0
        %1863 = vmatpush1.xpose.msra.mxu0 %v583
        %1864 = vmatprep.subr.mxu0 0.0
        %1865 = vmatpush1.xpose.msra.mxu0 %v586
        %1866 = vmatprep.subr.mxu0 0.0
        %1867 = vmatpush1.xpose.msra.mxu0 %v589
        %1868 = vmatprep.subr.mxu0 0.0
        %1869 = vmatpush1.xpose.msra.mxu0 %v592
        %1870 = vmatprep.subr.mxu0 0.0
        %1871 = vmatpush1.xpose.msra.mxu0 %v595
        %1872 = vmatprep.subr.mxu0 0.0
        %1873 = vmatpush1.xpose.msra.mxu0 %v598
        %1874 = vmatprep.subr.mxu0 0.0
        %1875 = vmatpush1.xpose.msra.mxu0 %v601
        %1876 = vmatprep.subr.mxu0 0.0
        %1877 = vmatpush1.xpose.msra.mxu0 %v604
        %1878 = vmatprep.subr.mxu0 0.0
        %1879 = vmatpush1.xpose.msra.mxu0 %v607
        %1880 = vmatprep.subr.mxu0 0.0
        %1881 = vmatpush1.xpose.msra.mxu0 %v610
        %1882 = vmatprep.subr.mxu0 0.0
        %1883 = vmatpush1.xpose.msra.mxu0 %v613
        %1884 = vmatprep.subr.mxu0 0.0
        %1885 = vmatpush1.xpose.msra.mxu0 %v616
        %1886 = vmatprep.subr.mxu0 0.0
        %1887 = vmatpush1.xpose.msra.mxu0 %v619
        %1888 = vmatprep.subr.mxu0 0.0
        %1889 = vmatpush1.xpose.msra.mxu0 %v622
        %1890 = vmatprep.subr.mxu0 0.0
        %1891 = vmatpush1.xpose.msra.mxu0 %v625
        %1892 = vmatprep.subr.mxu0 0.0
        %1893 = vmatpush1.xpose.msra.mxu0 %v628
        %1894 = vmatprep.subr.mxu0 0.0
        %1895 = vmatpush1.xpose.msra.mxu0 %v631
        %1896 = vmatprep.subr.mxu0 0.0
        %1897 = vmatpush1.xpose.msra.mxu0 %v634
        %1898 = vmatprep.mubr.f32.mxu0 0.0
        %1899 = vmatmul.mubr.f32.gmra.mrb[0].mxu0 %v1645
        %v1900 = vpop.f32.mrb[0].mxu0
        %v1901 = vadd.f32 0.0, %v1900
        %v1902 = vpop.f32.mrb[0].mxu0
        %v1903 = vadd.f32 0.0, %v1902
        %1904 = vmatprep.mubr.f32.mxu0 0.0
        %1905 = vmatmul.mubr.f32.gmra.mrb[0].mxu0 %v1648
        %v1906 = vpop.f32.mrb[0].mxu0
        %v1907 = vadd.f32 0.0, %v1906
        %v1908 = vpop.f32.mrb[0].mxu0
        %v1909 = vadd.f32 0.0, %v1908
        %1910 = vmatprep.mubr.f32.mxu0 0.0
        %1911 = vmatmul.mubr.f32.gmra.mrb[0].mxu0 %v1651
        %v1912 = vpop.f32.mrb[0].mxu0
        %v1913 = vadd.f32 0.0, %v1912
        %v1914 = vpop.f32.mrb[0].mxu0
        %v1915 = vadd.f32 0.0, %v1914
        %1916 = vmatprep.mubr.f32.mxu0 0.0
        %1917 = vmatmul.mubr.f32.gmra.mrb[0].mxu0 %v1654
        %v1918 = vpop.f32.mrb[0].mxu0
        %v1919 = vadd.f32 0.0, %v1918
        %v1920 = vpop.f32.mrb[0].mxu0
        %v1921 = vadd.f32 0.0, %v1920
        %1922 = vdwg.mxu0
        %1923 = vmatprep.subr.mxu0 0.0
        %1924 = vmatpush1.xpose.msra.mxu0 %v637
        %1925 = vmatprep.subr.mxu0 0.0
        %1926 = vmatpush1.xpose.msra.mxu0 %v640
        %1927 = vmatprep.subr.mxu0 0.0
        %1928 = vmatpush1.xpose.msra.mxu0 %v643
        %1929 = vmatprep.subr.mxu0 0.0
        %1930 = vmatpush1.xpose.msra.mxu0 %v646
        %1931 = vmatprep.subr.mxu0 0.0
        %1932 = vmatpush1.xpose.msra.mxu0 %v649
        %1933 = vmatprep.subr.mxu0 0.0
        %1934 = vmatpush1.xpose.msra.mxu0 %v652
        %1935 = vmatprep.subr.mxu0 0.0
        %1936 = vmatpush1.xpose.msra.mxu0 %v655
        %1937 = vmatprep.subr.mxu0 0.0
        %1938 = vmatpush1.xpose.msra.mxu0 %v658
        %1939 = vmatprep.subr.mxu0 0.0
        %1940 = vmatpush1.xpose.msra.mxu0 %v661
        %1941 = vmatprep.subr.mxu0 0.0
        %1942 = vmatpush1.xpose.msra.mxu0 %v664
        %1943 = vmatprep.subr.mxu0 0.0
        %1944 = vmatpush1.xpose.msra.mxu0 %v667
        %1945 = vmatprep.subr.mxu0 0.0
        %1946 = vmatpush1.xpose.msra.mxu0 %v670
        %1947 = vmatprep.subr.mxu0 0.0
        %1948 = vmatpush1.xpose.msra.mxu0 %v673
        %1949 = vmatprep.subr.mxu0 0.0
        %1950 = vmatpush1.xpose.msra.mxu0 %v676
        %1951 = vmatprep.subr.mxu0 0.0
        %1952 = vmatpush1.xpose.msra.mxu0 %v679
        %1953 = vmatprep.subr.mxu0 0.0
        %1954 = vmatpush1.xpose.msra.mxu0 %v682
        %1955 = vmatprep.subr.mxu0 0.0
        %1956 = vmatpush1.xpose.msra.mxu0 %v685
        %1957 = vmatprep.subr.mxu0 0.0
        %1958 = vmatpush1.xpose.msra.mxu0 %v688
        %1959 = vmatprep.subr.mxu0 0.0
        %1960 = vmatpush1.xpose.msra.mxu0 %v691
        %1961 = vmatprep.subr.mxu0 0.0
        %1962 = vmatpush1.xpose.msra.mxu0 %v694
        %1963 = vmatprep.subr.mxu0 0.0
        %1964 = vmatpush1.xpose.msra.mxu0 %v697
        %1965 = vmatprep.subr.mxu0 0.0
        %1966 = vmatpush1.xpose.msra.mxu0 %v700
        %1967 = vmatprep.subr.mxu0 0.0
        %1968 = vmatpush1.xpose.msra.mxu0 %v703
        %1969 = vmatprep.subr.mxu0 0.0
        %1970 = vmatpush1.xpose.msra.mxu0 %v706
        %1971 = vmatprep.subr.mxu0 0.0
        %1972 = vmatpush1.xpose.msra.mxu0 %v709
        %1973 = vmatprep.subr.mxu0 0.0
        %1974 = vmatpush1.xpose.msra.mxu0 %v712
        %1975 = vmatprep.subr.mxu0 0.0
        %1976 = vmatpush1.xpose.msra.mxu0 %v715
        %1977 = vmatprep.subr.mxu0 0.0
        %1978 = vmatpush1.xpose.msra.mxu0 %v718
        %1979 = vmatprep.subr.mxu0 0.0
        %1980 = vmatpush1.xpose.msra.mxu0 %v721
        %1981 = vmatprep.subr.mxu0 0.0
        %1982 = vmatpush1.xpose.msra.mxu0 %v724
        %1983 = vmatprep.subr.mxu0 0.0
        %1984 = vmatpush1.xpose.msra.mxu0 %v727
        %1985 = vmatprep.subr.mxu0 0.0
        %1986 = vmatpush1.xpose.msra.mxu0 %v730
        %1987 = vmatprep.mubr.f32.mxu0 0.0
        %1988 = vmatmul.mubr.f32.gmra.mrb[0].mxu0 %v1645
        %v1989 = vpop.f32.mrb[0].mxu0
        %v1990 = vadd.f32 0.0, %v1989
        %v1991 = vpop.f32.mrb[0].mxu0
        %v1992 = vadd.f32 0.0, %v1991
        %1993 = vmatprep.mubr.f32.mxu0 0.0
        %1994 = vmatmul.mubr.f32.gmra.mrb[0].mxu0 %v1648
        %v1995 = vpop.f32.mrb[0].mxu0
        %v1996 = vadd.f32 0.0, %v1995
        %v1997 = vpop.f32.mrb[0].mxu0
        %v1998 = vadd.f32 0.0, %v1997
        %1999 = vmatprep.mubr.f32.mxu0 0.0
        %2000 = vmatmul.mubr.f32.gmra.mrb[0].mxu0 %v1651
        %v2001 = vpop.f32.mrb[0].mxu0
        %v2002 = vadd.f32 0.0, %v2001
        %v2003 = vpop.f32.mrb[0].mxu0
        %v2004 = vadd.f32 0.0, %v2003
        %2005 = vmatprep.mubr.f32.mxu0 0.0
        %2006 = vmatmul.mubr.f32.gmra.mrb[0].mxu0 %v1654
        %v2007 = vpop.f32.mrb[0].mxu0
        %v2008 = vadd.f32 0.0, %v2007
        %v2009 = vpop.f32.mrb[0].mxu0
        %v2010 = vadd.f32 0.0, %v2009
        %2011 = vdwg.mxu0
        %2013 = vset.pattern.permute.xlu0 0
        %2014 = vperm.xlu0 %2013, %v1635
        %v2015 = vpop.permute.xlu0 %2014
        %2018 = vset.pattern.permute.xlu0 0
        %2019 = vperm.xlu0 %2018, %v1636
        %v2020 = vpop.permute.xlu0 %2019
        %2023 = vset.pattern.permute.xlu0 0
        %2024 = vperm.xlu0 %2023, %v1637
        %v2025 = vpop.permute.xlu0 %2024
        %2028 = vset.pattern.permute.xlu0 0
        %2029 = vperm.xlu0 %2028, %v1638
        %v2030 = vpop.permute.xlu0 %2029
        %v2032 = vadd.f32 %v2015, %v1723
        %v2033 = vadd.f32 %v2015, %v1725
        %v2034 = vadd.f32 %v2015, %v1812
        %v2035 = vadd.f32 %v2015, %v1814
        %v2036 = vadd.f32 %v2015, %v1901
        %v2037 = vadd.f32 %v2015, %v1903
        %v2038 = vadd.f32 %v2015, %v1990
        %v2039 = vadd.f32 %v2015, %v1992
        %v2040 = vadd.f32 %v2020, %v1729
        %v2041 = vadd.f32 %v2020, %v1731
        %v2042 = vadd.f32 %v2020, %v1818
        %v2043 = vadd.f32 %v2020, %v1820
        %v2044 = vadd.f32 %v2020, %v1907
        %v2045 = vadd.f32 %v2020, %v1909
        %v2046 = vadd.f32 %v2020, %v1996
        %v2047 = vadd.f32 %v2020, %v1998
        %v2048 = vadd.f32 %v2025, %v1735
        %v2049 = vadd.f32 %v2025, %v1737
        %v2050 = vadd.f32 %v2025, %v1824
        %v2051 = vadd.f32 %v2025, %v1826
        %v2052 = vadd.f32 %v2025, %v1913
        %v2053 = vadd.f32 %v2025, %v1915
        %v2054 = vadd.f32 %v2025, %v2002
        %v2055 = vadd.f32 %v2025, %v2004
        %v2056 = vadd.f32 %v2030, %v1741
        %v2057 = vadd.f32 %v2030, %v1743
        %v2058 = vadd.f32 %v2030, %v1830
        %v2059 = vadd.f32 %v2030, %v1832
        %v2060 = vadd.f32 %v2030, %v1919
        %v2061 = vadd.f32 %v2030, %v1921
        %v2062 = vadd.f32 %v2030, %v2008
        %v2063 = vadd.f32 %v2030, %v2010
        %s2064 = scalar_lea.vmem %s2, 32
        %v2065 = vld [vmem:[%s2064] sm:$0xff]
        %v2066 = vld [vmem:[%s2064 + $0x8] sm:$0xff]
        %v2067 = vld [vmem:[%s2064 + $0x10] sm:$0xff]
        %v2068 = vld [vmem:[%s2064 + $0x18] sm:$0xff]
        %v2070 = vsel %vm1181, %v2065, 0
        %v2073 = vsel %vm1181, %v2066, 0
        %v2076 = vsel %vm1181, %v2067, 0
        %v2079 = vsel %vm1181, %v2068, 0
        %2081 = vmatprep.subr.mxu0 %v1603
        %2082 = vmatpush1.msra.mxu0 %v1602
        %2083 = vmatprep.subr.mxu0 %v1611
        %2084 = vmatpush1.msra.mxu0 %v1610
        %2085 = vmatprep.subr.mxu0 %v1619
        %2086 = vmatpush1.msra.mxu0 %v1618
        %2087 = vmatprep.subr.mxu0 %v1627
        %2088 = vmatpush1.msra.mxu0 %v1626
        %2089 = vmatprep.subr.mxu0 0.0
        %2090 = vmatpush1.msra.mxu0 0.0
        %2091 = vmatprep.subr.mxu0 0.0
        %2092 = vmatpush1.msra.mxu0 0.0
        %2093 = vmatprep.subr.mxu0 0.0
        %2094 = vmatpush1.msra.mxu0 0.0
        %2095 = vmatprep.subr.mxu0 0.0
        %2096 = vmatpush1.msra.mxu0 0.0
        %2097 = vmatprep.subr.mxu0 0.0
        %2098 = vmatpush1.msra.mxu0 0.0
        %2099 = vmatprep.subr.mxu0 0.0
        %2100 = vmatpush1.msra.mxu0 0.0
        %2101 = vmatprep.subr.mxu0 0.0
        %2102 = vmatpush1.msra.mxu0 0.0
        %2103 = vmatprep.subr.mxu0 0.0
        %2104 = vmatpush1.msra.mxu0 0.0
        %2105 = vmatprep.subr.mxu0 0.0
        %2106 = vmatpush1.msra.mxu0 0.0
        %2107 = vmatprep.subr.mxu0 0.0
        %2108 = vmatpush1.msra.mxu0 0.0
        %2109 = vmatprep.subr.mxu0 0.0
        %2110 = vmatpush1.msra.mxu0 0.0
        %2111 = vmatprep.subr.mxu0 0.0
        %2112 = vmatpush1.msra.mxu0 0.0
        %2113 = vmatprep.subr.mxu0 0.0
        %2114 = vmatpush1.msra.mxu0 0.0
        %2115 = vmatprep.subr.mxu0 0.0
        %2116 = vmatpush1.msra.mxu0 0.0
        %2117 = vmatprep.subr.mxu0 0.0
        %2118 = vmatpush1.msra.mxu0 0.0
        %2119 = vmatprep.subr.mxu0 0.0
        %2120 = vmatpush1.msra.mxu0 0.0
        %2121 = vmatprep.subr.mxu0 0.0
        %2122 = vmatpush1.msra.mxu0 0.0
        %2123 = vmatprep.subr.mxu0 0.0
        %2124 = vmatpush1.msra.mxu0 0.0
        %2125 = vmatprep.subr.mxu0 0.0
        %2126 = vmatpush1.msra.mxu0 0.0
        %2127 = vmatprep.subr.mxu0 0.0
        %2128 = vmatpush1.msra.mxu0 0.0
        %2129 = vmatprep.subr.mxu0 0.0
        %2130 = vmatpush1.msra.mxu0 0.0
        %2131 = vmatprep.subr.mxu0 0.0
        %2132 = vmatpush1.msra.mxu0 0.0
        %2133 = vmatprep.subr.mxu0 0.0
        %2134 = vmatpush1.msra.mxu0 0.0
        %2135 = vmatprep.subr.mxu0 0.0
        %2136 = vmatpush1.msra.mxu0 0.0
        %2137 = vmatprep.subr.mxu0 0.0
        %2138 = vmatpush1.msra.mxu0 0.0
        %2139 = vmatprep.subr.mxu0 0.0
        %2140 = vmatpush1.msra.mxu0 0.0
        %2141 = vmatprep.subr.mxu0 0.0
        %2142 = vmatpush1.msra.mxu0 0.0
        %2143 = vmatprep.subr.mxu0 0.0
        %2144 = vmatpush1.msra.mxu0 0.0
        %2145 = vmatprep.mubr.f32.mxu0 0.0
        %2146 = vmatmul.mubr.f32.gmra.mrb[0].mxu0 %v2070
        %v2147 = vpop.f32.mrb[0].mxu0
        %v2148 = vadd.f32 0.0, %v2147
        %v2149 = vpop.f32.mrb[0].mxu0
        %v2150 = vadd.f32 0.0, %v2149
        %2151 = vmatprep.mubr.f32.mxu0 0.0
        %2152 = vmatmul.mubr.f32.gmra.mrb[0].mxu0 %v2073
        %v2153 = vpop.f32.mrb[0].mxu0
        %v2154 = vadd.f32 0.0, %v2153
        %v2155 = vpop.f32.mrb[0].mxu0
        %v2156 = vadd.f32 0.0, %v2155
        %2157 = vmatprep.mubr.f32.mxu0 0.0
        %2158 = vmatmul.mubr.f32.gmra.mrb[0].mxu0 %v2076
        %v2159 = vpop.f32.mrb[0].mxu0
        %v2160 = vadd.f32 0.0, %v2159
        %v2161 = vpop.f32.mrb[0].mxu0
        %v2162 = vadd.f32 0.0, %v2161
        %2163 = vmatprep.mubr.f32.mxu0 0.0
        %2164 = vmatmul.mubr.f32.gmra.mrb[0].mxu0 %v2079
        %v2165 = vpop.f32.mrb[0].mxu0
        %v2166 = vadd.f32 0.0, %v2165
        %v2167 = vpop.f32.mrb[0].mxu0
        %v2168 = vadd.f32 0.0, %v2167
        %2169 = vdwg.mxu0
        %2170 = vmatprep.subr.mxu0 %v1605
        %2171 = vmatpush1.msra.mxu0 %v1604
        %2172 = vmatprep.subr.mxu0 %v1613
        %2173 = vmatpush1.msra.mxu0 %v1612
        %2174 = vmatprep.subr.mxu0 %v1621
        %2175 = vmatpush1.msra.mxu0 %v1620
        %2176 = vmatprep.subr.mxu0 %v1629
        %2177 = vmatpush1.msra.mxu0 %v1628
        %2178 = vmatprep.subr.mxu0 0.0
        %2179 = vmatpush1.msra.mxu0 0.0
        %2180 = vmatprep.subr.mxu0 0.0
        %2181 = vmatpush1.msra.mxu0 0.0
        %2182 = vmatprep.subr.mxu0 0.0
        %2183 = vmatpush1.msra.mxu0 0.0
        %2184 = vmatprep.subr.mxu0 0.0
        %2185 = vmatpush1.msra.mxu0 0.0
        %2186 = vmatprep.subr.mxu0 0.0
        %2187 = vmatpush1.msra.mxu0 0.0
        %2188 = vmatprep.subr.mxu0 0.0
        %2189 = vmatpush1.msra.mxu0 0.0
        %2190 = vmatprep.subr.mxu0 0.0
        %2191 = vmatpush1.msra.mxu0 0.0
        %2192 = vmatprep.subr.mxu0 0.0
        %2193 = vmatpush1.msra.mxu0 0.0
        %2194 = vmatprep.subr.mxu0 0.0
        %2195 = vmatpush1.msra.mxu0 0.0
        %2196 = vmatprep.subr.mxu0 0.0
        %2197 = vmatpush1.msra.mxu0 0.0
        %2198 = vmatprep.subr.mxu0 0.0
        %2199 = vmatpush1.msra.mxu0 0.0
        %2200 = vmatprep.subr.mxu0 0.0
        %2201 = vmatpush1.msra.mxu0 0.0
        %2202 = vmatprep.subr.mxu0 0.0
        %2203 = vmatpush1.msra.mxu0 0.0
        %2204 = vmatprep.subr.mxu0 0.0
        %2205 = vmatpush1.msra.mxu0 0.0
        %2206 = vmatprep.subr.mxu0 0.0
        %2207 = vmatpush1.msra.mxu0 0.0
        %2208 = vmatprep.subr.mxu0 0.0
        %2209 = vmatpush1.msra.mxu0 0.0
        %2210 = vmatprep.subr.mxu0 0.0
        %2211 = vmatpush1.msra.mxu0 0.0
        %2212 = vmatprep.subr.mxu0 0.0
        %2213 = vmatpush1.msra.mxu0 0.0
        %2214 = vmatprep.subr.mxu0 0.0
        %2215 = vmatpush1.msra.mxu0 0.0
        %2216 = vmatprep.subr.mxu0 0.0
        %2217 = vmatpush1.msra.mxu0 0.0
        %2218 = vmatprep.subr.mxu0 0.0
        %2219 = vmatpush1.msra.mxu0 0.0
        %2220 = vmatprep.subr.mxu0 0.0
        %2221 = vmatpush1.msra.mxu0 0.0
        %2222 = vmatprep.subr.mxu0 0.0
        %2223 = vmatpush1.msra.mxu0 0.0
        %2224 = vmatprep.subr.mxu0 0.0
        %2225 = vmatpush1.msra.mxu0 0.0
        %2226 = vmatprep.subr.mxu0 0.0
        %2227 = vmatpush1.msra.mxu0 0.0
        %2228 = vmatprep.subr.mxu0 0.0
        %2229 = vmatpush1.msra.mxu0 0.0
        %2230 = vmatprep.subr.mxu0 0.0
        %2231 = vmatpush1.msra.mxu0 0.0
        %2232 = vmatprep.subr.mxu0 0.0
        %2233 = vmatpush1.msra.mxu0 0.0
        %2234 = vmatprep.mubr.f32.mxu0 0.0
        %2235 = vmatmul.mubr.f32.gmra.mrb[0].mxu0 %v2070
        %v2236 = vpop.f32.mrb[0].mxu0
        %v2237 = vadd.f32 0.0, %v2236
        %v2238 = vpop.f32.mrb[0].mxu0
        %v2239 = vadd.f32 0.0, %v2238
        %2240 = vmatprep.mubr.f32.mxu0 0.0
        %2241 = vmatmul.mubr.f32.gmra.mrb[0].mxu0 %v2073
        %v2242 = vpop.f32.mrb[0].mxu0
        %v2243 = vadd.f32 0.0, %v2242
        %v2244 = vpop.f32.mrb[0].mxu0
        %v2245 = vadd.f32 0.0, %v2244
        %2246 = vmatprep.mubr.f32.mxu0 0.0
        %2247 = vmatmul.mubr.f32.gmra.mrb[0].mxu0 %v2076
        %v2248 = vpop.f32.mrb[0].mxu0
        %v2249 = vadd.f32 0.0, %v2248
        %v2250 = vpop.f32.mrb[0].mxu0
        %v2251 = vadd.f32 0.0, %v2250
        %2252 = vmatprep.mubr.f32.mxu0 0.0
        %2253 = vmatmul.mubr.f32.gmra.mrb[0].mxu0 %v2079
        %v2254 = vpop.f32.mrb[0].mxu0
        %v2255 = vadd.f32 0.0, %v2254
        %v2256 = vpop.f32.mrb[0].mxu0
        %v2257 = vadd.f32 0.0, %v2256
        %2258 = vdwg.mxu0
        %2259 = vmatprep.subr.mxu0 %v1607
        %2260 = vmatpush1.msra.mxu0 %v1606
        %2261 = vmatprep.subr.mxu0 %v1615
        %2262 = vmatpush1.msra.mxu0 %v1614
        %2263 = vmatprep.subr.mxu0 %v1623
        %2264 = vmatpush1.msra.mxu0 %v1622
        %2265 = vmatprep.subr.mxu0 %v1631
        %2266 = vmatpush1.msra.mxu0 %v1630
        %2267 = vmatprep.subr.mxu0 0.0
        %2268 = vmatpush1.msra.mxu0 0.0
        %2269 = vmatprep.subr.mxu0 0.0
        %2270 = vmatpush1.msra.mxu0 0.0
        %2271 = vmatprep.subr.mxu0 0.0
        %2272 = vmatpush1.msra.mxu0 0.0
        %2273 = vmatprep.subr.mxu0 0.0
        %2274 = vmatpush1.msra.mxu0 0.0
        %2275 = vmatprep.subr.mxu0 0.0
        %2276 = vmatpush1.msra.mxu0 0.0
        %2277 = vmatprep.subr.mxu0 0.0
        %2278 = vmatpush1.msra.mxu0 0.0
        %2279 = vmatprep.subr.mxu0 0.0
        %2280 = vmatpush1.msra.mxu0 0.0
        %2281 = vmatprep.subr.mxu0 0.0
        %2282 = vmatpush1.msra.mxu0 0.0
        %2283 = vmatprep.subr.mxu0 0.0
        %2284 = vmatpush1.msra.mxu0 0.0
        %2285 = vmatprep.subr.mxu0 0.0
        %2286 = vmatpush1.msra.mxu0 0.0
        %2287 = vmatprep.subr.mxu0 0.0
        %2288 = vmatpush1.msra.mxu0 0.0
        %2289 = vmatprep.subr.mxu0 0.0
        %2290 = vmatpush1.msra.mxu0 0.0
        %2291 = vmatprep.subr.mxu0 0.0
        %2292 = vmatpush1.msra.mxu0 0.0
        %2293 = vmatprep.subr.mxu0 0.0
        %2294 = vmatpush1.msra.mxu0 0.0
        %2295 = vmatprep.subr.mxu0 0.0
        %2296 = vmatpush1.msra.mxu0 0.0
        %2297 = vmatprep.subr.mxu0 0.0
        %2298 = vmatpush1.msra.mxu0 0.0
        %2299 = vmatprep.subr.mxu0 0.0
        %2300 = vmatpush1.msra.mxu0 0.0
        %2301 = vmatprep.subr.mxu0 0.0
        %2302 = vmatpush1.msra.mxu0 0.0
        %2303 = vmatprep.subr.mxu0 0.0
        %2304 = vmatpush1.msra.mxu0 0.0
        %2305 = vmatprep.subr.mxu0 0.0
        %2306 = vmatpush1.msra.mxu0 0.0
        %2307 = vmatprep.subr.mxu0 0.0
        %2308 = vmatpush1.msra.mxu0 0.0
        %2309 = vmatprep.subr.mxu0 0.0
        %2310 = vmatpush1.msra.mxu0 0.0
        %2311 = vmatprep.subr.mxu0 0.0
        %2312 = vmatpush1.msra.mxu0 0.0
        %2313 = vmatprep.subr.mxu0 0.0
        %2314 = vmatpush1.msra.mxu0 0.0
        %2315 = vmatprep.subr.mxu0 0.0
        %2316 = vmatpush1.msra.mxu0 0.0
        %2317 = vmatprep.subr.mxu0 0.0
        %2318 = vmatpush1.msra.mxu0 0.0
        %2319 = vmatprep.subr.mxu0 0.0
        %2320 = vmatpush1.msra.mxu0 0.0
        %2321 = vmatprep.subr.mxu0 0.0
        %2322 = vmatpush1.msra.mxu0 0.0
        %2323 = vmatprep.mubr.f32.mxu0 0.0
        %2324 = vmatmul.mubr.f32.gmra.mrb[0].mxu0 %v2070
        %v2325 = vpop.f32.mrb[0].mxu0
        %v2326 = vadd.f32 0.0, %v2325
        %v2327 = vpop.f32.mrb[0].mxu0
        %v2328 = vadd.f32 0.0, %v2327
        %2329 = vmatprep.mubr.f32.mxu0 0.0
        %2330 = vmatmul.mubr.f32.gmra.mrb[0].mxu0 %v2073
        %v2331 = vpop.f32.mrb[0].mxu0
        %v2332 = vadd.f32 0.0, %v2331
        %v2333 = vpop.f32.mrb[0].mxu0
        %v2334 = vadd.f32 0.0, %v2333
        %2335 = vmatprep.mubr.f32.mxu0 0.0
        %2336 = vmatmul.mubr.f32.gmra.mrb[0].mxu0 %v2076
        %v2337 = vpop.f32.mrb[0].mxu0
        %v2338 = vadd.f32 0.0, %v2337
        %v2339 = vpop.f32.mrb[0].mxu0
        %v2340 = vadd.f32 0.0, %v2339
        %2341 = vmatprep.mubr.f32.mxu0 0.0
        %2342 = vmatmul.mubr.f32.gmra.mrb[0].mxu0 %v2079
        %v2343 = vpop.f32.mrb[0].mxu0
        %v2344 = vadd.f32 0.0, %v2343
        %v2345 = vpop.f32.mrb[0].mxu0
        %v2346 = vadd.f32 0.0, %v2345
        %2347 = vdwg.mxu0
        %2348 = vmatprep.subr.mxu0 %v1609
        %2349 = vmatpush1.msra.mxu0 %v1608
        %2350 = vmatprep.subr.mxu0 %v1617
        %2351 = vmatpush1.msra.mxu0 %v1616
        %2352 = vmatprep.subr.mxu0 %v1625
        %2353 = vmatpush1.msra.mxu0 %v1624
        %2354 = vmatprep.subr.mxu0 %v1633
        %2355 = vmatpush1.msra.mxu0 %v1632
        %2356 = vmatprep.subr.mxu0 0.0
        %2357 = vmatpush1.msra.mxu0 0.0
        %2358 = vmatprep.subr.mxu0 0.0
        %2359 = vmatpush1.msra.mxu0 0.0
        %2360 = vmatprep.subr.mxu0 0.0
        %2361 = vmatpush1.msra.mxu0 0.0
        %2362 = vmatprep.subr.mxu0 0.0
        %2363 = vmatpush1.msra.mxu0 0.0
        %2364 = vmatprep.subr.mxu0 0.0
        %2365 = vmatpush1.msra.mxu0 0.0
        %2366 = vmatprep.subr.mxu0 0.0
        %2367 = vmatpush1.msra.mxu0 0.0
        %2368 = vmatprep.subr.mxu0 0.0
        %2369 = vmatpush1.msra.mxu0 0.0
        %2370 = vmatprep.subr.mxu0 0.0
        %2371 = vmatpush1.msra.mxu0 0.0
        %2372 = vmatprep.subr.mxu0 0.0
        %2373 = vmatpush1.msra.mxu0 0.0
        %2374 = vmatprep.subr.mxu0 0.0
        %2375 = vmatpush1.msra.mxu0 0.0
        %2376 = vmatprep.subr.mxu0 0.0
        %2377 = vmatpush1.msra.mxu0 0.0
        %2378 = vmatprep.subr.mxu0 0.0
        %2379 = vmatpush1.msra.mxu0 0.0
        %2380 = vmatprep.subr.mxu0 0.0
        %2381 = vmatpush1.msra.mxu0 0.0
        %2382 = vmatprep.subr.mxu0 0.0
        %2383 = vmatpush1.msra.mxu0 0.0
        %2384 = vmatprep.subr.mxu0 0.0
        %2385 = vmatpush1.msra.mxu0 0.0
        %2386 = vmatprep.subr.mxu0 0.0
        %2387 = vmatpush1.msra.mxu0 0.0
        %2388 = vmatprep.subr.mxu0 0.0
        %2389 = vmatpush1.msra.mxu0 0.0
        %2390 = vmatprep.subr.mxu0 0.0
        %2391 = vmatpush1.msra.mxu0 0.0
        %2392 = vmatprep.subr.mxu0 0.0
        %2393 = vmatpush1.msra.mxu0 0.0
        %2394 = vmatprep.subr.mxu0 0.0
        %2395 = vmatpush1.msra.mxu0 0.0
        %2396 = vmatprep.subr.mxu0 0.0
        %2397 = vmatpush1.msra.mxu0 0.0
        %2398 = vmatprep.subr.mxu0 0.0
        %2399 = vmatpush1.msra.mxu0 0.0
        %2400 = vmatprep.subr.mxu0 0.0
        %2401 = vmatpush1.msra.mxu0 0.0
        %2402 = vmatprep.subr.mxu0 0.0
        %2403 = vmatpush1.msra.mxu0 0.0
        %2404 = vmatprep.subr.mxu0 0.0
        %2405 = vmatpush1.msra.mxu0 0.0
        %2406 = vmatprep.subr.mxu0 0.0
        %2407 = vmatpush1.msra.mxu0 0.0
        %2408 = vmatprep.subr.mxu0 0.0
        %2409 = vmatpush1.msra.mxu0 0.0
        %2410 = vmatprep.subr.mxu0 0.0
        %2411 = vmatpush1.msra.mxu0 0.0
        %2412 = vmatprep.mubr.f32.mxu0 0.0
        %2413 = vmatmul.mubr.f32.gmra.mrb[0].mxu0 %v2070
        %v2414 = vpop.f32.mrb[0].mxu0
        %v2415 = vadd.f32 0.0, %v2414
        %v2416 = vpop.f32.mrb[0].mxu0
        %v2417 = vadd.f32 0.0, %v2416
        %2418 = vmatprep.mubr.f32.mxu0 0.0
        %2419 = vmatmul.mubr.f32.gmra.mrb[0].mxu0 %v2073
        %v2420 = vpop.f32.mrb[0].mxu0
        %v2421 = vadd.f32 0.0, %v2420
        %v2422 = vpop.f32.mrb[0].mxu0
        %v2423 = vadd.f32 0.0, %v2422
        %2424 = vmatprep.mubr.f32.mxu0 0.0
        %2425 = vmatmul.mubr.f32.gmra.mrb[0].mxu0 %v2076
        %v2426 = vpop.f32.mrb[0].mxu0
        %v2427 = vadd.f32 0.0, %v2426
        %v2428 = vpop.f32.mrb[0].mxu0
        %v2429 = vadd.f32 0.0, %v2428
        %2430 = vmatprep.mubr.f32.mxu0 0.0
        %2431 = vmatmul.mubr.f32.gmra.mrb[0].mxu0 %v2079
        %v2432 = vpop.f32.mrb[0].mxu0
        %v2433 = vadd.f32 0.0, %v2432
        %v2434 = vpop.f32.mrb[0].mxu0
        %v2435 = vadd.f32 0.0, %v2434
        %2436 = vdwg.mxu0
        %v2437 = vadd.f32 %v2032, %v2148
        %v2438 = vadd.f32 %v2033, %v2150
        %v2439 = vadd.f32 %v2034, %v2237
        %v2440 = vadd.f32 %v2035, %v2239
        %v2441 = vadd.f32 %v2036, %v2326
        %v2442 = vadd.f32 %v2037, %v2328
        %v2443 = vadd.f32 %v2038, %v2415
        %v2444 = vadd.f32 %v2039, %v2417
        %v2445 = vadd.f32 %v2040, %v2154
        %v2446 = vadd.f32 %v2041, %v2156
        %v2447 = vadd.f32 %v2042, %v2243
        %v2448 = vadd.f32 %v2043, %v2245
        %v2449 = vadd.f32 %v2044, %v2332
        %v2450 = vadd.f32 %v2045, %v2334
        %v2451 = vadd.f32 %v2046, %v2421
        %v2452 = vadd.f32 %v2047, %v2423
        %v2453 = vadd.f32 %v2048, %v2160
        %v2454 = vadd.f32 %v2049, %v2162
        %v2455 = vadd.f32 %v2050, %v2249
        %v2456 = vadd.f32 %v2051, %v2251
        %v2457 = vadd.f32 %v2052, %v2338
        %v2458 = vadd.f32 %v2053, %v2340
        %v2459 = vadd.f32 %v2054, %v2427
        %v2460 = vadd.f32 %v2055, %v2429
        %v2461 = vadd.f32 %v2056, %v2166
        %v2462 = vadd.f32 %v2057, %v2168
        %v2463 = vadd.f32 %v2058, %v2255
        %v2464 = vadd.f32 %v2059, %v2257
        %v2465 = vadd.f32 %v2060, %v2344
        %v2466 = vadd.f32 %v2061, %v2346
        %v2467 = vadd.f32 %v2062, %v2433
        %v2468 = vadd.f32 %v2063, %v2435
        %v2469 = vmax.f32 %v2437, 0.0
        %v2470 = vmax.f32 %v2438, 0.0
        %v2471 = vmax.f32 %v2439, 0.0
        %v2472 = vmax.f32 %v2440, 0.0
        %v2473 = vmax.f32 %v2441, 0.0
        %v2474 = vmax.f32 %v2442, 0.0
        %v2475 = vmax.f32 %v2443, 0.0
        %v2476 = vmax.f32 %v2444, 0.0
        %v2477 = vmax.f32 %v2445, 0.0
        %v2478 = vmax.f32 %v2446, 0.0
        %v2479 = vmax.f32 %v2447, 0.0
        %v2480 = vmax.f32 %v2448, 0.0
        %v2481 = vmax.f32 %v2449, 0.0
        %v2482 = vmax.f32 %v2450, 0.0
        %v2483 = vmax.f32 %v2451, 0.0
        %v2484 = vmax.f32 %v2452, 0.0
        %v2485 = vmax.f32 %v2453, 0.0
        %v2486 = vmax.f32 %v2454, 0.0
        %v2487 = vmax.f32 %v2455, 0.0
        %v2488 = vmax.f32 %v2456, 0.0
        %v2489 = vmax.f32 %v2457, 0.0
        %v2490 = vmax.f32 %v2458, 0.0
        %v2491 = vmax.f32 %v2459, 0.0
        %v2492 = vmax.f32 %v2460, 0.0
        %v2493 = vmax.f32 %v2461, 0.0
        %v2494 = vmax.f32 %v2462, 0.0
        %v2495 = vmax.f32 %v2463, 0.0
        %v2496 = vmax.f32 %v2464, 0.0
        %v2497 = vmax.f32 %v2465, 0.0
        %v2498 = vmax.f32 %v2466, 0.0
        %v2499 = vmax.f32 %v2467, 0.0
        %v2500 = vmax.f32 %v2468, 0.0
        %s2501 = scalar_lea.vmem %s3, 96
        %v2502 = vld [vmem:[%s2501] sm:$0xff]
        %v2503 = vld [vmem:[%s2501 + $0x8] sm:$0xff]
        %v2504 = vld [vmem:[%s2501 + $0x10] sm:$0xff]
        %v2505 = vld [vmem:[%s2501 + $0x18] sm:$0xff]
        %s2506 = scalar_lea.vmem %s2, 64
        %v2507 = vld [vmem:[%s2506] sm:$0xff]
        %v2508 = vld [vmem:[%s2506 + $0x8] sm:$0xff]
        %v2509 = vld [vmem:[%s2506 + $0x10] sm:$0xff]
        %v2510 = vld [vmem:[%s2506 + $0x18] sm:$0xff]
        %v2512 = vsel %vm1181, %v2507, 0
        %v2515 = vsel %vm1181, %v2508, 0
        %v2518 = vsel %vm1181, %v2509, 0
        %v2521 = vsel %vm1181, %v2510, 0
        %2523 = vmatprep.subr.mxu0 %v2470
        %2524 = vmatpush1.msra.mxu0 %v2469
        %2525 = vmatprep.subr.mxu0 %v2478
        %2526 = vmatpush1.msra.mxu0 %v2477
        %2527 = vmatprep.subr.mxu0 %v2486
        %2528 = vmatpush1.msra.mxu0 %v2485
        %2529 = vmatprep.subr.mxu0 %v2494
        %2530 = vmatpush1.msra.mxu0 %v2493
        %2531 = vmatprep.subr.mxu0 0.0
        %2532 = vmatpush1.msra.mxu0 0.0
        %2533 = vmatprep.subr.mxu0 0.0
        %2534 = vmatpush1.msra.mxu0 0.0
        %2535 = vmatprep.subr.mxu0 0.0
        %2536 = vmatpush1.msra.mxu0 0.0
        %2537 = vmatprep.subr.mxu0 0.0
        %2538 = vmatpush1.msra.mxu0 0.0
        %2539 = vmatprep.subr.mxu0 0.0
        %2540 = vmatpush1.msra.mxu0 0.0
        %2541 = vmatprep.subr.mxu0 0.0
        %2542 = vmatpush1.msra.mxu0 0.0
        %2543 = vmatprep.subr.mxu0 0.0
        %2544 = vmatpush1.msra.mxu0 0.0
        %2545 = vmatprep.subr.mxu0 0.0
        %2546 = vmatpush1.msra.mxu0 0.0
        %2547 = vmatprep.subr.mxu0 0.0
        %2548 = vmatpush1.msra.mxu0 0.0
        %2549 = vmatprep.subr.mxu0 0.0
        %2550 = vmatpush1.msra.mxu0 0.0
        %2551 = vmatprep.subr.mxu0 0.0
        %2552 = vmatpush1.msra.mxu0 0.0
        %2553 = vmatprep.subr.mxu0 0.0
        %2554 = vmatpush1.msra.mxu0 0.0
        %2555 = vmatprep.subr.mxu0 0.0
        %2556 = vmatpush1.msra.mxu0 0.0
        %2557 = vmatprep.subr.mxu0 0.0
        %2558 = vmatpush1.msra.mxu0 0.0
        %2559 = vmatprep.subr.mxu0 0.0
        %2560 = vmatpush1.msra.mxu0 0.0
        %2561 = vmatprep.subr.mxu0 0.0
        %2562 = vmatpush1.msra.mxu0 0.0
        %2563 = vmatprep.subr.mxu0 0.0
        %2564 = vmatpush1.msra.mxu0 0.0
        %2565 = vmatprep.subr.mxu0 0.0
        %2566 = vmatpush1.msra.mxu0 0.0
        %2567 = vmatprep.subr.mxu0 0.0
        %2568 = vmatpush1.msra.mxu0 0.0
        %2569 = vmatprep.subr.mxu0 0.0
        %2570 = vmatpush1.msra.mxu0 0.0
        %2571 = vmatprep.subr.mxu0 0.0
        %2572 = vmatpush1.msra.mxu0 0.0
        %2573 = vmatprep.subr.mxu0 0.0
        %2574 = vmatpush1.msra.mxu0 0.0
        %2575 = vmatprep.subr.mxu0 0.0
        %2576 = vmatpush1.msra.mxu0 0.0
        %2577 = vmatprep.subr.mxu0 0.0
        %2578 = vmatpush1.msra.mxu0 0.0
        %2579 = vmatprep.subr.mxu0 0.0
        %2580 = vmatpush1.msra.mxu0 0.0
        %2581 = vmatprep.subr.mxu0 0.0
        %2582 = vmatpush1.msra.mxu0 0.0
        %2583 = vmatprep.subr.mxu0 0.0
        %2584 = vmatpush1.msra.mxu0 0.0
        %2585 = vmatprep.subr.mxu0 0.0
        %2586 = vmatpush1.msra.mxu0 0.0
        %2587 = vmatprep.mubr.f32.mxu0 0.0
        %2588 = vmatmul.mubr.f32.gmra.mrb[0].mxu0 %v2512
        %v2589 = vpop.f32.mrb[0].mxu0
        %v2590 = vadd.f32 0.0, %v2589
        %v2591 = vpop.f32.mrb[0].mxu0
        %v2592 = vadd.f32 0.0, %v2591
        %2593 = vmatprep.mubr.f32.mxu0 0.0
        %2594 = vmatmul.mubr.f32.gmra.mrb[0].mxu0 %v2515
        %v2595 = vpop.f32.mrb[0].mxu0
        %v2596 = vadd.f32 0.0, %v2595
        %v2597 = vpop.f32.mrb[0].mxu0
        %v2598 = vadd.f32 0.0, %v2597
        %2599 = vmatprep.mubr.f32.mxu0 0.0
        %2600 = vmatmul.mubr.f32.gmra.mrb[0].mxu0 %v2518
        %v2601 = vpop.f32.mrb[0].mxu0
        %v2602 = vadd.f32 0.0, %v2601
        %v2603 = vpop.f32.mrb[0].mxu0
        %v2604 = vadd.f32 0.0, %v2603
        %2605 = vmatprep.mubr.f32.mxu0 0.0
        %2606 = vmatmul.mubr.f32.gmra.mrb[0].mxu0 %v2521
        %v2607 = vpop.f32.mrb[0].mxu0
        %v2608 = vadd.f32 0.0, %v2607
        %v2609 = vpop.f32.mrb[0].mxu0
        %v2610 = vadd.f32 0.0, %v2609
        %2611 = vdwg.mxu0
        %2612 = vmatprep.subr.mxu0 %v2472
        %2613 = vmatpush1.msra.mxu0 %v2471
        %2614 = vmatprep.subr.mxu0 %v2480
        %2615 = vmatpush1.msra.mxu0 %v2479
        %2616 = vmatprep.subr.mxu0 %v2488
        %2617 = vmatpush1.msra.mxu0 %v2487
        %2618 = vmatprep.subr.mxu0 %v2496
        %2619 = vmatpush1.msra.mxu0 %v2495
        %2620 = vmatprep.subr.mxu0 0.0
        %2621 = vmatpush1.msra.mxu0 0.0
        %2622 = vmatprep.subr.mxu0 0.0
        %2623 = vmatpush1.msra.mxu0 0.0
        %2624 = vmatprep.subr.mxu0 0.0
        %2625 = vmatpush1.msra.mxu0 0.0
        %2626 = vmatprep.subr.mxu0 0.0
        %2627 = vmatpush1.msra.mxu0 0.0
        %2628 = vmatprep.subr.mxu0 0.0
        %2629 = vmatpush1.msra.mxu0 0.0
        %2630 = vmatprep.subr.mxu0 0.0
        %2631 = vmatpush1.msra.mxu0 0.0
        %2632 = vmatprep.subr.mxu0 0.0
        %2633 = vmatpush1.msra.mxu0 0.0
        %2634 = vmatprep.subr.mxu0 0.0
        %2635 = vmatpush1.msra.mxu0 0.0
        %2636 = vmatprep.subr.mxu0 0.0
        %2637 = vmatpush1.msra.mxu0 0.0
        %2638 = vmatprep.subr.mxu0 0.0
        %2639 = vmatpush1.msra.mxu0 0.0
        %2640 = vmatprep.subr.mxu0 0.0
        %2641 = vmatpush1.msra.mxu0 0.0
        %2642 = vmatprep.subr.mxu0 0.0
        %2643 = vmatpush1.msra.mxu0 0.0
        %2644 = vmatprep.subr.mxu0 0.0
        %2645 = vmatpush1.msra.mxu0 0.0
        %2646 = vmatprep.subr.mxu0 0.0
        %2647 = vmatpush1.msra.mxu0 0.0
        %2648 = vmatprep.subr.mxu0 0.0
        %2649 = vmatpush1.msra.mxu0 0.0
        %2650 = vmatprep.subr.mxu0 0.0
        %2651 = vmatpush1.msra.mxu0 0.0
        %2652 = vmatprep.subr.mxu0 0.0
        %2653 = vmatpush1.msra.mxu0 0.0
        %2654 = vmatprep.subr.mxu0 0.0
        %2655 = vmatpush1.msra.mxu0 0.0
        %2656 = vmatprep.subr.mxu0 0.0
        %2657 = vmatpush1.msra.mxu0 0.0
        %2658 = vmatprep.subr.mxu0 0.0
        %2659 = vmatpush1.msra.mxu0 0.0
        %2660 = vmatprep.subr.mxu0 0.0
        %2661 = vmatpush1.msra.mxu0 0.0
        %2662 = vmatprep.subr.mxu0 0.0
        %2663 = vmatpush1.msra.mxu0 0.0
        %2664 = vmatprep.subr.mxu0 0.0
        %2665 = vmatpush1.msra.mxu0 0.0
        %2666 = vmatprep.subr.mxu0 0.0
        %2667 = vmatpush1.msra.mxu0 0.0
        %2668 = vmatprep.subr.mxu0 0.0
        %2669 = vmatpush1.msra.mxu0 0.0
        %2670 = vmatprep.subr.mxu0 0.0
        %2671 = vmatpush1.msra.mxu0 0.0
        %2672 = vmatprep.subr.mxu0 0.0
        %2673 = vmatpush1.msra.mxu0 0.0
        %2674 = vmatprep.subr.mxu0 0.0
        %2675 = vmatpush1.msra.mxu0 0.0
        %2676 = vmatprep.mubr.f32.mxu0 0.0
        %2677 = vmatmul.mubr.f32.gmra.mrb[0].mxu0 %v2512
        %v2678 = vpop.f32.mrb[0].mxu0
        %v2679 = vadd.f32 0.0, %v2678
        %v2680 = vpop.f32.mrb[0].mxu0
        %v2681 = vadd.f32 0.0, %v2680
        %2682 = vmatprep.mubr.f32.mxu0 0.0
        %2683 = vmatmul.mubr.f32.gmra.mrb[0].mxu0 %v2515
        %v2684 = vpop.f32.mrb[0].mxu0
        %v2685 = vadd.f32 0.0, %v2684
        %v2686 = vpop.f32.mrb[0].mxu0
        %v2687 = vadd.f32 0.0, %v2686
        %2688 = vmatprep.mubr.f32.mxu0 0.0
        %2689 = vmatmul.mubr.f32.gmra.mrb[0].mxu0 %v2518
        %v2690 = vpop.f32.mrb[0].mxu0
        %v2691 = vadd.f32 0.0, %v2690
        %v2692 = vpop.f32.mrb[0].mxu0
        %v2693 = vadd.f32 0.0, %v2692
        %2694 = vmatprep.mubr.f32.mxu0 0.0
        %2695 = vmatmul.mubr.f32.gmra.mrb[0].mxu0 %v2521
        %v2696 = vpop.f32.mrb[0].mxu0
        %v2697 = vadd.f32 0.0, %v2696
        %v2698 = vpop.f32.mrb[0].mxu0
        %v2699 = vadd.f32 0.0, %v2698
        %2700 = vdwg.mxu0
        %2701 = vmatprep.subr.mxu0 %v2474
        %2702 = vmatpush1.msra.mxu0 %v2473
        %2703 = vmatprep.subr.mxu0 %v2482
        %2704 = vmatpush1.msra.mxu0 %v2481
        %2705 = vmatprep.subr.mxu0 %v2490
        %2706 = vmatpush1.msra.mxu0 %v2489
        %2707 = vmatprep.subr.mxu0 %v2498
        %2708 = vmatpush1.msra.mxu0 %v2497
        %2709 = vmatprep.subr.mxu0 0.0
        %2710 = vmatpush1.msra.mxu0 0.0
        %2711 = vmatprep.subr.mxu0 0.0
        %2712 = vmatpush1.msra.mxu0 0.0
        %2713 = vmatprep.subr.mxu0 0.0
        %2714 = vmatpush1.msra.mxu0 0.0
        %2715 = vmatprep.subr.mxu0 0.0
        %2716 = vmatpush1.msra.mxu0 0.0
        %2717 = vmatprep.subr.mxu0 0.0
        %2718 = vmatpush1.msra.mxu0 0.0
        %2719 = vmatprep.subr.mxu0 0.0
        %2720 = vmatpush1.msra.mxu0 0.0
        %2721 = vmatprep.subr.mxu0 0.0
        %2722 = vmatpush1.msra.mxu0 0.0
        %2723 = vmatprep.subr.mxu0 0.0
        %2724 = vmatpush1.msra.mxu0 0.0
        %2725 = vmatprep.subr.mxu0 0.0
        %2726 = vmatpush1.msra.mxu0 0.0
        %2727 = vmatprep.subr.mxu0 0.0
        %2728 = vmatpush1.msra.mxu0 0.0
        %2729 = vmatprep.subr.mxu0 0.0
        %2730 = vmatpush1.msra.mxu0 0.0
        %2731 = vmatprep.subr.mxu0 0.0
        %2732 = vmatpush1.msra.mxu0 0.0
        %2733 = vmatprep.subr.mxu0 0.0
        %2734 = vmatpush1.msra.mxu0 0.0
        %2735 = vmatprep.subr.mxu0 0.0
        %2736 = vmatpush1.msra.mxu0 0.0
        %2737 = vmatprep.subr.mxu0 0.0
        %2738 = vmatpush1.msra.mxu0 0.0
        %2739 = vmatprep.subr.mxu0 0.0
        %2740 = vmatpush1.msra.mxu0 0.0
        %2741 = vmatprep.subr.mxu0 0.0
        %2742 = vmatpush1.msra.mxu0 0.0
        %2743 = vmatprep.subr.mxu0 0.0
        %2744 = vmatpush1.msra.mxu0 0.0
        %2745 = vmatprep.subr.mxu0 0.0
        %2746 = vmatpush1.msra.mxu0 0.0
        %2747 = vmatprep.subr.mxu0 0.0
        %2748 = vmatpush1.msra.mxu0 0.0
        %2749 = vmatprep.subr.mxu0 0.0
        %2750 = vmatpush1.msra.mxu0 0.0
        %2751 = vmatprep.subr.mxu0 0.0
        %2752 = vmatpush1.msra.mxu0 0.0
        %2753 = vmatprep.subr.mxu0 0.0
        %2754 = vmatpush1.msra.mxu0 0.0
        %2755 = vmatprep.subr.mxu0 0.0
        %2756 = vmatpush1.msra.mxu0 0.0
        %2757 = vmatprep.subr.mxu0 0.0
        %2758 = vmatpush1.msra.mxu0 0.0
        %2759 = vmatprep.subr.mxu0 0.0
        %2760 = vmatpush1.msra.mxu0 0.0
        %2761 = vmatprep.subr.mxu0 0.0
        %2762 = vmatpush1.msra.mxu0 0.0
        %2763 = vmatprep.subr.mxu0 0.0
        %2764 = vmatpush1.msra.mxu0 0.0
        %2765 = vmatprep.mubr.f32.mxu0 0.0
        %2766 = vmatmul.mubr.f32.gmra.mrb[0].mxu0 %v2512
        %v2767 = vpop.f32.mrb[0].mxu0
        %v2768 = vadd.f32 0.0, %v2767
        %v2769 = vpop.f32.mrb[0].mxu0
        %v2770 = vadd.f32 0.0, %v2769
        %2771 = vmatprep.mubr.f32.mxu0 0.0
        %2772 = vmatmul.mubr.f32.gmra.mrb[0].mxu0 %v2515
        %v2773 = vpop.f32.mrb[0].mxu0
        %v2774 = vadd.f32 0.0, %v2773
        %v2775 = vpop.f32.mrb[0].mxu0
        %v2776 = vadd.f32 0.0, %v2775
        %2777 = vmatprep.mubr.f32.mxu0 0.0
        %2778 = vmatmul.mubr.f32.gmra.mrb[0].mxu0 %v2518
        %v2779 = vpop.f32.mrb[0].mxu0
        %v2780 = vadd.f32 0.0, %v2779
        %v2781 = vpop.f32.mrb[0].mxu0
        %v2782 = vadd.f32 0.0, %v2781
        %2783 = vmatprep.mubr.f32.mxu0 0.0
        %2784 = vmatmul.mubr.f32.gmra.mrb[0].mxu0 %v2521
        %v2785 = vpop.f32.mrb[0].mxu0
        %v2786 = vadd.f32 0.0, %v2785
        %v2787 = vpop.f32.mrb[0].mxu0
        %v2788 = vadd.f32 0.0, %v2787
        %2789 = vdwg.mxu0
        %2790 = vmatprep.subr.mxu0 %v2476
        %2791 = vmatpush1.msra.mxu0 %v2475
        %2792 = vmatprep.subr.mxu0 %v2484
        %2793 = vmatpush1.msra.mxu0 %v2483
        %2794 = vmatprep.subr.mxu0 %v2492
        %2795 = vmatpush1.msra.mxu0 %v2491
        %2796 = vmatprep.subr.mxu0 %v2500
        %2797 = vmatpush1.msra.mxu0 %v2499
        %2798 = vmatprep.subr.mxu0 0.0
        %2799 = vmatpush1.msra.mxu0 0.0
        %2800 = vmatprep.subr.mxu0 0.0
        %2801 = vmatpush1.msra.mxu0 0.0
        %2802 = vmatprep.subr.mxu0 0.0
        %2803 = vmatpush1.msra.mxu0 0.0
        %2804 = vmatprep.subr.mxu0 0.0
        %2805 = vmatpush1.msra.mxu0 0.0
        %2806 = vmatprep.subr.mxu0 0.0
        %2807 = vmatpush1.msra.mxu0 0.0
        %2808 = vmatprep.subr.mxu0 0.0
        %2809 = vmatpush1.msra.mxu0 0.0
        %2810 = vmatprep.subr.mxu0 0.0
        %2811 = vmatpush1.msra.mxu0 0.0
        %2812 = vmatprep.subr.mxu0 0.0
        %2813 = vmatpush1.msra.mxu0 0.0
        %2814 = vmatprep.subr.mxu0 0.0
        %2815 = vmatpush1.msra.mxu0 0.0
        %2816 = vmatprep.subr.mxu0 0.0
        %2817 = vmatpush1.msra.mxu0 0.0
        %2818 = vmatprep.subr.mxu0 0.0
        %2819 = vmatpush1.msra.mxu0 0.0
        %2820 = vmatprep.subr.mxu0 0.0
        %2821 = vmatpush1.msra.mxu0 0.0
        %2822 = vmatprep.subr.mxu0 0.0
        %2823 = vmatpush1.msra.mxu0 0.0
        %2824 = vmatprep.subr.mxu0 0.0
        %2825 = vmatpush1.msra.mxu0 0.0
        %2826 = vmatprep.subr.mxu0 0.0
        %2827 = vmatpush1.msra.mxu0 0.0
        %2828 = vmatprep.subr.mxu0 0.0
        %2829 = vmatpush1.msra.mxu0 0.0
        %2830 = vmatprep.subr.mxu0 0.0
        %2831 = vmatpush1.msra.mxu0 0.0
        %2832 = vmatprep.subr.mxu0 0.0
        %2833 = vmatpush1.msra.mxu0 0.0
        %2834 = vmatprep.subr.mxu0 0.0
        %2835 = vmatpush1.msra.mxu0 0.0
        %2836 = vmatprep.subr.mxu0 0.0
        %2837 = vmatpush1.msra.mxu0 0.0
        %2838 = vmatprep.subr.mxu0 0.0
        %2839 = vmatpush1.msra.mxu0 0.0
        %2840 = vmatprep.subr.mxu0 0.0
        %2841 = vmatpush1.msra.mxu0 0.0
        %2842 = vmatprep.subr.mxu0 0.0
        %2843 = vmatpush1.msra.mxu0 0.0
        %2844 = vmatprep.subr.mxu0 0.0
        %2845 = vmatpush1.msra.mxu0 0.0
        %2846 = vmatprep.subr.mxu0 0.0
        %2847 = vmatpush1.msra.mxu0 0.0
        %2848 = vmatprep.subr.mxu0 0.0
        %2849 = vmatpush1.msra.mxu0 0.0
        %2850 = vmatprep.subr.mxu0 0.0
        %2851 = vmatpush1.msra.mxu0 0.0
        %2852 = vmatprep.subr.mxu0 0.0
        %2853 = vmatpush1.msra.mxu0 0.0
        %2854 = vmatprep.mubr.f32.mxu0 0.0
        %2855 = vmatmul.mubr.f32.gmra.mrb[0].mxu0 %v2512
        %v2856 = vpop.f32.mrb[0].mxu0
        %v2857 = vadd.f32 0.0, %v2856
        %v2858 = vpop.f32.mrb[0].mxu0
        %v2859 = vadd.f32 0.0, %v2858
        %2860 = vmatprep.mubr.f32.mxu0 0.0
        %2861 = vmatmul.mubr.f32.gmra.mrb[0].mxu0 %v2515
        %v2862 = vpop.f32.mrb[0].mxu0
        %v2863 = vadd.f32 0.0, %v2862
        %v2864 = vpop.f32.mrb[0].mxu0
        %v2865 = vadd.f32 0.0, %v2864
        %2866 = vmatprep.mubr.f32.mxu0 0.0
        %2867 = vmatmul.mubr.f32.gmra.mrb[0].mxu0 %v2518
        %v2868 = vpop.f32.mrb[0].mxu0
        %v2869 = vadd.f32 0.0, %v2868
        %v2870 = vpop.f32.mrb[0].mxu0
        %v2871 = vadd.f32 0.0, %v2870
        %2872 = vmatprep.mubr.f32.mxu0 0.0
        %2873 = vmatmul.mubr.f32.gmra.mrb[0].mxu0 %v2521
        %v2874 = vpop.f32.mrb[0].mxu0
        %v2875 = vadd.f32 0.0, %v2874
        %v2876 = vpop.f32.mrb[0].mxu0
        %v2877 = vadd.f32 0.0, %v2876
        %2878 = vdwg.mxu0
        %2880 = vset.pattern.permute.xlu0 0
        %2881 = vperm.xlu0 %2880, %v2502
        %v2882 = vpop.permute.xlu0 %2881
        %2885 = vset.pattern.permute.xlu0 0
        %2886 = vperm.xlu0 %2885, %v2503
        %v2887 = vpop.permute.xlu0 %2886
        %2890 = vset.pattern.permute.xlu0 0
        %2891 = vperm.xlu0 %2890, %v2504
        %v2892 = vpop.permute.xlu0 %2891
        %2895 = vset.pattern.permute.xlu0 0
        %2896 = vperm.xlu0 %2895, %v2505
        %v2897 = vpop.permute.xlu0 %2896
        %v2899 = vadd.f32 %v2882, %v2590
        %v2900 = vadd.f32 %v2882, %v2592
        %v2901 = vadd.f32 %v2882, %v2679
        %v2902 = vadd.f32 %v2882, %v2681
        %v2903 = vadd.f32 %v2882, %v2768
        %v2904 = vadd.f32 %v2882, %v2770
        %v2905 = vadd.f32 %v2882, %v2857
        %v2906 = vadd.f32 %v2882, %v2859
        %v2907 = vadd.f32 %v2887, %v2596
        %v2908 = vadd.f32 %v2887, %v2598
        %v2909 = vadd.f32 %v2887, %v2685
        %v2910 = vadd.f32 %v2887, %v2687
        %v2911 = vadd.f32 %v2887, %v2774
        %v2912 = vadd.f32 %v2887, %v2776
        %v2913 = vadd.f32 %v2887, %v2863
        %v2914 = vadd.f32 %v2887, %v2865
        %v2915 = vadd.f32 %v2892, %v2602
        %v2916 = vadd.f32 %v2892, %v2604
        %v2917 = vadd.f32 %v2892, %v2691
        %v2918 = vadd.f32 %v2892, %v2693
        %v2919 = vadd.f32 %v2892, %v2780
        %v2920 = vadd.f32 %v2892, %v2782
        %v2921 = vadd.f32 %v2892, %v2869
        %v2922 = vadd.f32 %v2892, %v2871
        %v2923 = vadd.f32 %v2897, %v2608
        %v2924 = vadd.f32 %v2897, %v2610
        %v2925 = vadd.f32 %v2897, %v2697
        %v2926 = vadd.f32 %v2897, %v2699
        %v2927 = vadd.f32 %v2897, %v2786
        %v2928 = vadd.f32 %v2897, %v2788
        %v2929 = vadd.f32 %v2897, %v2875
        %v2930 = vadd.f32 %v2897, %v2877
        %v2931 = vmax.f32 %v2899, 0.0
        %v2932 = vmax.f32 %v2900, 0.0
        %v2933 = vmax.f32 %v2901, 0.0
        %v2934 = vmax.f32 %v2902, 0.0
        %v2935 = vmax.f32 %v2903, 0.0
        %v2936 = vmax.f32 %v2904, 0.0
        %v2937 = vmax.f32 %v2905, 0.0
        %v2938 = vmax.f32 %v2906, 0.0
        %v2939 = vmax.f32 %v2907, 0.0
        %v2940 = vmax.f32 %v2908, 0.0
        %v2941 = vmax.f32 %v2909, 0.0
        %v2942 = vmax.f32 %v2910, 0.0
        %v2943 = vmax.f32 %v2911, 0.0
        %v2944 = vmax.f32 %v2912, 0.0
        %v2945 = vmax.f32 %v2913, 0.0
        %v2946 = vmax.f32 %v2914, 0.0
        %v2947 = vmax.f32 %v2915, 0.0
        %v2948 = vmax.f32 %v2916, 0.0
        %v2949 = vmax.f32 %v2917, 0.0
        %v2950 = vmax.f32 %v2918, 0.0
        %v2951 = vmax.f32 %v2919, 0.0
        %v2952 = vmax.f32 %v2920, 0.0
        %v2953 = vmax.f32 %v2921, 0.0
        %v2954 = vmax.f32 %v2922, 0.0
        %v2955 = vmax.f32 %v2923, 0.0
        %v2956 = vmax.f32 %v2924, 0.0
        %v2957 = vmax.f32 %v2925, 0.0
        %v2958 = vmax.f32 %v2926, 0.0
        %v2959 = vmax.f32 %v2927, 0.0
        %v2960 = vmax.f32 %v2928, 0.0
        %v2961 = vmax.f32 %v2929, 0.0
        %v2962 = vmax.f32 %v2930, 0.0
        %s2963 = scalar_lea.vmem %s3, 128
        %v2964 = vld [vmem:[%s2963] sm:$0xff]
        %s2965 = scalar_lea.vmem %s2, 96
        %v2966 = vld [vmem:[%s2965] sm:$0xff]
        %v2967 = vld [vmem:[%s2965 + $0x8] sm:$0xff]
        %v2968 = vld [vmem:[%s2965 + $0x10] sm:$0xff]
        %v2969 = vld [vmem:[%s2965 + $0x18] sm:$0xff]
        %v2971 = vsel %vm1181, %v2966, 0
        %v2974 = vsel %vm1181, %v2967, 0
        %v2977 = vsel %vm1181, %v2968, 0
        %v2980 = vsel %vm1181, %v2969, 0
        %2982 = vmatprep.subr.mxu0 %v2932
        %2983 = vmatpush1.msra.mxu0 %v2931
        %2984 = vmatprep.subr.mxu0 %v2940
        %2985 = vmatpush1.msra.mxu0 %v2939
        %2986 = vmatprep.subr.mxu0 %v2948
        %2987 = vmatpush1.msra.mxu0 %v2947
        %2988 = vmatprep.subr.mxu0 %v2956
        %2989 = vmatpush1.msra.mxu0 %v2955
        %2990 = vmatprep.subr.mxu0 0.0
        %2991 = vmatpush1.msra.mxu0 0.0
        %2992 = vmatprep.subr.mxu0 0.0
        %2993 = vmatpush1.msra.mxu0 0.0
        %2994 = vmatprep.subr.mxu0 0.0
        %2995 = vmatpush1.msra.mxu0 0.0
        %2996 = vmatprep.subr.mxu0 0.0
        %2997 = vmatpush1.msra.mxu0 0.0
        %2998 = vmatprep.subr.mxu0 0.0
        %2999 = vmatpush1.msra.mxu0 0.0
        %3000 = vmatprep.subr.mxu0 0.0
        %3001 = vmatpush1.msra.mxu0 0.0
        %3002 = vmatprep.subr.mxu0 0.0
        %3003 = vmatpush1.msra.mxu0 0.0
        %3004 = vmatprep.subr.mxu0 0.0
        %3005 = vmatpush1.msra.mxu0 0.0
        %3006 = vmatprep.subr.mxu0 0.0
        %3007 = vmatpush1.msra.mxu0 0.0
        %3008 = vmatprep.subr.mxu0 0.0
        %3009 = vmatpush1.msra.mxu0 0.0
        %3010 = vmatprep.subr.mxu0 0.0
        %3011 = vmatpush1.msra.mxu0 0.0
        %3012 = vmatprep.subr.mxu0 0.0
        %3013 = vmatpush1.msra.mxu0 0.0
        %3014 = vmatprep.subr.mxu0 0.0
        %3015 = vmatpush1.msra.mxu0 0.0
        %3016 = vmatprep.subr.mxu0 0.0
        %3017 = vmatpush1.msra.mxu0 0.0
        %3018 = vmatprep.subr.mxu0 0.0
        %3019 = vmatpush1.msra.mxu0 0.0
        %3020 = vmatprep.subr.mxu0 0.0
        %3021 = vmatpush1.msra.mxu0 0.0
        %3022 = vmatprep.subr.mxu0 0.0
        %3023 = vmatpush1.msra.mxu0 0.0
        %3024 = vmatprep.subr.mxu0 0.0
        %3025 = vmatpush1.msra.mxu0 0.0
        %3026 = vmatprep.subr.mxu0 0.0
        %3027 = vmatpush1.msra.mxu0 0.0
        %3028 = vmatprep.subr.mxu0 0.0
        %3029 = vmatpush1.msra.mxu0 0.0
        %3030 = vmatprep.subr.mxu0 0.0
        %3031 = vmatpush1.msra.mxu0 0.0
        %3032 = vmatprep.subr.mxu0 0.0
        %3033 = vmatpush1.msra.mxu0 0.0
        %3034 = vmatprep.subr.mxu0 0.0
        %3035 = vmatpush1.msra.mxu0 0.0
        %3036 = vmatprep.subr.mxu0 0.0
        %3037 = vmatpush1.msra.mxu0 0.0
        %3038 = vmatprep.subr.mxu0 0.0
        %3039 = vmatpush1.msra.mxu0 0.0
        %3040 = vmatprep.subr.mxu0 0.0
        %3041 = vmatpush1.msra.mxu0 0.0
        %3042 = vmatprep.subr.mxu0 0.0
        %3043 = vmatpush1.msra.mxu0 0.0
        %3044 = vmatprep.subr.mxu0 0.0
        %3045 = vmatpush1.msra.mxu0 0.0
        %3046 = vmatprep.mubr.f32.mxu0 0.0
        %3047 = vmatmul.mubr.f32.gmra.mrb[0].mxu0 %v2971
        %v3048 = vpop.f32.mrb[0].mxu0
        %v3049 = vadd.f32 0.0, %v3048
        %v3050 = vpop.f32.mrb[0].mxu0
        %v3051 = vadd.f32 0.0, %v3050
        %3052 = vmatprep.mubr.f32.mxu0 0.0
        %3053 = vmatmul.mubr.f32.gmra.mrb[0].mxu0 %v2974
        %v3054 = vpop.f32.mrb[0].mxu0
        %v3055 = vpop.f32.mrb[0].mxu0
        %3056 = vmatprep.mubr.f32.mxu0 0.0
        %3057 = vmatmul.mubr.f32.gmra.mrb[0].mxu0 %v2977
        %v3058 = vpop.f32.mrb[0].mxu0
        %v3059 = vpop.f32.mrb[0].mxu0
        %3060 = vmatprep.mubr.f32.mxu0 0.0
        %3061 = vmatmul.mubr.f32.gmra.mrb[0].mxu0 %v2980
        %v3062 = vpop.f32.mrb[0].mxu0
        %v3063 = vpop.f32.mrb[0].mxu0
        %3064 = vdwg.mxu0
        %3065 = vmatprep.subr.mxu0 %v2934
        %3066 = vmatpush1.msra.mxu0 %v2933
        %3067 = vmatprep.subr.mxu0 %v2942
        %3068 = vmatpush1.msra.mxu0 %v2941
        %3069 = vmatprep.subr.mxu0 %v2950
        %3070 = vmatpush1.msra.mxu0 %v2949
        %3071 = vmatprep.subr.mxu0 %v2958
        %3072 = vmatpush1.msra.mxu0 %v2957
        %3073 = vmatprep.subr.mxu0 0.0
        %3074 = vmatpush1.msra.mxu0 0.0
        %3075 = vmatprep.subr.mxu0 0.0
        %3076 = vmatpush1.msra.mxu0 0.0
        %3077 = vmatprep.subr.mxu0 0.0
        %3078 = vmatpush1.msra.mxu0 0.0
        %3079 = vmatprep.subr.mxu0 0.0
        %3080 = vmatpush1.msra.mxu0 0.0
        %3081 = vmatprep.subr.mxu0 0.0
        %3082 = vmatpush1.msra.mxu0 0.0
        %3083 = vmatprep.subr.mxu0 0.0
        %3084 = vmatpush1.msra.mxu0 0.0
        %3085 = vmatprep.subr.mxu0 0.0
        %3086 = vmatpush1.msra.mxu0 0.0
        %3087 = vmatprep.subr.mxu0 0.0
        %3088 = vmatpush1.msra.mxu0 0.0
        %3089 = vmatprep.subr.mxu0 0.0
        %3090 = vmatpush1.msra.mxu0 0.0
        %3091 = vmatprep.subr.mxu0 0.0
        %3092 = vmatpush1.msra.mxu0 0.0
        %3093 = vmatprep.subr.mxu0 0.0
        %3094 = vmatpush1.msra.mxu0 0.0
        %3095 = vmatprep.subr.mxu0 0.0
        %3096 = vmatpush1.msra.mxu0 0.0
        %3097 = vmatprep.subr.mxu0 0.0
        %3098 = vmatpush1.msra.mxu0 0.0
        %3099 = vmatprep.subr.mxu0 0.0
        %3100 = vmatpush1.msra.mxu0 0.0
        %3101 = vmatprep.subr.mxu0 0.0
        %3102 = vmatpush1.msra.mxu0 0.0
        %3103 = vmatprep.subr.mxu0 0.0
        %3104 = vmatpush1.msra.mxu0 0.0
        %3105 = vmatprep.subr.mxu0 0.0
        %3106 = vmatpush1.msra.mxu0 0.0
        %3107 = vmatprep.subr.mxu0 0.0
        %3108 = vmatpush1.msra.mxu0 0.0
        %3109 = vmatprep.subr.mxu0 0.0
        %3110 = vmatpush1.msra.mxu0 0.0
        %3111 = vmatprep.subr.mxu0 0.0
        %3112 = vmatpush1.msra.mxu0 0.0
        %3113 = vmatprep.subr.mxu0 0.0
        %3114 = vmatpush1.msra.mxu0 0.0
        %3115 = vmatprep.subr.mxu0 0.0
        %3116 = vmatpush1.msra.mxu0 0.0
        %3117 = vmatprep.subr.mxu0 0.0
        %3118 = vmatpush1.msra.mxu0 0.0
        %3119 = vmatprep.subr.mxu0 0.0
        %3120 = vmatpush1.msra.mxu0 0.0
        %3121 = vmatprep.subr.mxu0 0.0
        %3122 = vmatpush1.msra.mxu0 0.0
        %3123 = vmatprep.subr.mxu0 0.0
        %3124 = vmatpush1.msra.mxu0 0.0
        %3125 = vmatprep.subr.mxu0 0.0
        %3126 = vmatpush1.msra.mxu0 0.0
        %3127 = vmatprep.subr.mxu0 0.0
        %3128 = vmatpush1.msra.mxu0 0.0
        %3129 = vmatprep.mubr.f32.mxu0 0.0
        %3130 = vmatmul.mubr.f32.gmra.mrb[0].mxu0 %v2971
        %v3131 = vpop.f32.mrb[0].mxu0
        %v3132 = vadd.f32 0.0, %v3131
        %v3133 = vpop.f32.mrb[0].mxu0
        %v3134 = vadd.f32 0.0, %v3133
        %3135 = vmatprep.mubr.f32.mxu0 0.0
        %3136 = vmatmul.mubr.f32.gmra.mrb[0].mxu0 %v2974
        %v3137 = vpop.f32.mrb[0].mxu0
        %v3138 = vpop.f32.mrb[0].mxu0
        %3139 = vmatprep.mubr.f32.mxu0 0.0
        %3140 = vmatmul.mubr.f32.gmra.mrb[0].mxu0 %v2977
        %v3141 = vpop.f32.mrb[0].mxu0
        %v3142 = vpop.f32.mrb[0].mxu0
        %3143 = vmatprep.mubr.f32.mxu0 0.0
        %3144 = vmatmul.mubr.f32.gmra.mrb[0].mxu0 %v2980
        %v3145 = vpop.f32.mrb[0].mxu0
        %v3146 = vpop.f32.mrb[0].mxu0
        %3147 = vdwg.mxu0
        %3148 = vmatprep.subr.mxu0 %v2936
        %3149 = vmatpush1.msra.mxu0 %v2935
        %3150 = vmatprep.subr.mxu0 %v2944
        %3151 = vmatpush1.msra.mxu0 %v2943
        %3152 = vmatprep.subr.mxu0 %v2952
        %3153 = vmatpush1.msra.mxu0 %v2951
        %3154 = vmatprep.subr.mxu0 %v2960
        %3155 = vmatpush1.msra.mxu0 %v2959
        %3156 = vmatprep.subr.mxu0 0.0
        %3157 = vmatpush1.msra.mxu0 0.0
        %3158 = vmatprep.subr.mxu0 0.0
        %3159 = vmatpush1.msra.mxu0 0.0
        %3160 = vmatprep.subr.mxu0 0.0
        %3161 = vmatpush1.msra.mxu0 0.0
        %3162 = vmatprep.subr.mxu0 0.0
        %3163 = vmatpush1.msra.mxu0 0.0
        %3164 = vmatprep.subr.mxu0 0.0
        %3165 = vmatpush1.msra.mxu0 0.0
        %3166 = vmatprep.subr.mxu0 0.0
        %3167 = vmatpush1.msra.mxu0 0.0
        %3168 = vmatprep.subr.mxu0 0.0
        %3169 = vmatpush1.msra.mxu0 0.0
        %3170 = vmatprep.subr.mxu0 0.0
        %3171 = vmatpush1.msra.mxu0 0.0
        %3172 = vmatprep.subr.mxu0 0.0
        %3173 = vmatpush1.msra.mxu0 0.0
        %3174 = vmatprep.subr.mxu0 0.0
        %3175 = vmatpush1.msra.mxu0 0.0
        %3176 = vmatprep.subr.mxu0 0.0
        %3177 = vmatpush1.msra.mxu0 0.0
        %3178 = vmatprep.subr.mxu0 0.0
        %3179 = vmatpush1.msra.mxu0 0.0
        %3180 = vmatprep.subr.mxu0 0.0
        %3181 = vmatpush1.msra.mxu0 0.0
        %3182 = vmatprep.subr.mxu0 0.0
        %3183 = vmatpush1.msra.mxu0 0.0
        %3184 = vmatprep.subr.mxu0 0.0
        %3185 = vmatpush1.msra.mxu0 0.0
        %3186 = vmatprep.subr.mxu0 0.0
        %3187 = vmatpush1.msra.mxu0 0.0
        %3188 = vmatprep.subr.mxu0 0.0
        %3189 = vmatpush1.msra.mxu0 0.0
        %3190 = vmatprep.subr.mxu0 0.0
        %3191 = vmatpush1.msra.mxu0 0.0
        %3192 = vmatprep.subr.mxu0 0.0
        %3193 = vmatpush1.msra.mxu0 0.0
        %3194 = vmatprep.subr.mxu0 0.0
        %3195 = vmatpush1.msra.mxu0 0.0
        %3196 = vmatprep.subr.mxu0 0.0
        %3197 = vmatpush1.msra.mxu0 0.0
        %3198 = vmatprep.subr.mxu0 0.0
        %3199 = vmatpush1.msra.mxu0 0.0
        %3200 = vmatprep.subr.mxu0 0.0
        %3201 = vmatpush1.msra.mxu0 0.0
        %3202 = vmatprep.subr.mxu0 0.0
        %3203 = vmatpush1.msra.mxu0 0.0
        %3204 = vmatprep.subr.mxu0 0.0
        %3205 = vmatpush1.msra.mxu0 0.0
        %3206 = vmatprep.subr.mxu0 0.0
        %3207 = vmatpush1.msra.mxu0 0.0
        %3208 = vmatprep.subr.mxu0 0.0
        %3209 = vmatpush1.msra.mxu0 0.0
        %3210 = vmatprep.subr.mxu0 0.0
        %3211 = vmatpush1.msra.mxu0 0.0
        %3212 = vmatprep.mubr.f32.mxu0 0.0
        %3213 = vmatmul.mubr.f32.gmra.mrb[0].mxu0 %v2971
        %v3214 = vpop.f32.mrb[0].mxu0
        %v3215 = vadd.f32 0.0, %v3214
        %v3216 = vpop.f32.mrb[0].mxu0
        %v3217 = vadd.f32 0.0, %v3216
        %3218 = vmatprep.mubr.f32.mxu0 0.0
        %3219 = vmatmul.mubr.f32.gmra.mrb[0].mxu0 %v2974
        %v3220 = vpop.f32.mrb[0].mxu0
        %v3221 = vpop.f32.mrb[0].mxu0
        %3222 = vmatprep.mubr.f32.mxu0 0.0
        %3223 = vmatmul.mubr.f32.gmra.mrb[0].mxu0 %v2977
        %v3224 = vpop.f32.mrb[0].mxu0
        %v3225 = vpop.f32.mrb[0].mxu0
        %3226 = vmatprep.mubr.f32.mxu0 0.0
        %3227 = vmatmul.mubr.f32.gmra.mrb[0].mxu0 %v2980
        %v3228 = vpop.f32.mrb[0].mxu0
        %v3229 = vpop.f32.mrb[0].mxu0
        %3230 = vdwg.mxu0
        %3231 = vmatprep.subr.mxu0 %v2938
        %3232 = vmatpush1.msra.mxu0 %v2937
        %3233 = vmatprep.subr.mxu0 %v2946
        %3234 = vmatpush1.msra.mxu0 %v2945
        %3235 = vmatprep.subr.mxu0 %v2954
        %3236 = vmatpush1.msra.mxu0 %v2953
        %3237 = vmatprep.subr.mxu0 %v2962
        %3238 = vmatpush1.msra.mxu0 %v2961
        %3239 = vmatprep.subr.mxu0 0.0
        %3240 = vmatpush1.msra.mxu0 0.0
        %3241 = vmatprep.subr.mxu0 0.0
        %3242 = vmatpush1.msra.mxu0 0.0
        %3243 = vmatprep.subr.mxu0 0.0
        %3244 = vmatpush1.msra.mxu0 0.0
        %3245 = vmatprep.subr.mxu0 0.0
        %3246 = vmatpush1.msra.mxu0 0.0
        %3247 = vmatprep.subr.mxu0 0.0
        %3248 = vmatpush1.msra.mxu0 0.0
        %3249 = vmatprep.subr.mxu0 0.0
        %3250 = vmatpush1.msra.mxu0 0.0
        %3251 = vmatprep.subr.mxu0 0.0
        %3252 = vmatpush1.msra.mxu0 0.0
        %3253 = vmatprep.subr.mxu0 0.0
        %3254 = vmatpush1.msra.mxu0 0.0
        %3255 = vmatprep.subr.mxu0 0.0
        %3256 = vmatpush1.msra.mxu0 0.0
        %3257 = vmatprep.subr.mxu0 0.0
        %3258 = vmatpush1.msra.mxu0 0.0
        %3259 = vmatprep.subr.mxu0 0.0
        %3260 = vmatpush1.msra.mxu0 0.0
        %3261 = vmatprep.subr.mxu0 0.0
        %3262 = vmatpush1.msra.mxu0 0.0
        %3263 = vmatprep.subr.mxu0 0.0
        %3264 = vmatpush1.msra.mxu0 0.0
        %3265 = vmatprep.subr.mxu0 0.0
        %3266 = vmatpush1.msra.mxu0 0.0
        %3267 = vmatprep.subr.mxu0 0.0
        %3268 = vmatpush1.msra.mxu0 0.0
        %3269 = vmatprep.subr.mxu0 0.0
        %3270 = vmatpush1.msra.mxu0 0.0
        %3271 = vmatprep.subr.mxu0 0.0
        %3272 = vmatpush1.msra.mxu0 0.0
        %3273 = vmatprep.subr.mxu0 0.0
        %3274 = vmatpush1.msra.mxu0 0.0
        %3275 = vmatprep.subr.mxu0 0.0
        %3276 = vmatpush1.msra.mxu0 0.0
        %3277 = vmatprep.subr.mxu0 0.0
        %3278 = vmatpush1.msra.mxu0 0.0
        %3279 = vmatprep.subr.mxu0 0.0
        %3280 = vmatpush1.msra.mxu0 0.0
        %3281 = vmatprep.subr.mxu0 0.0
        %3282 = vmatpush1.msra.mxu0 0.0
        %3283 = vmatprep.subr.mxu0 0.0
        %3284 = vmatpush1.msra.mxu0 0.0
        %3285 = vmatprep.subr.mxu0 0.0
        %3286 = vmatpush1.msra.mxu0 0.0
        %3287 = vmatprep.subr.mxu0 0.0
        %3288 = vmatpush1.msra.mxu0 0.0
        %3289 = vmatprep.subr.mxu0 0.0
        %3290 = vmatpush1.msra.mxu0 0.0
        %3291 = vmatprep.subr.mxu0 0.0
        %3292 = vmatpush1.msra.mxu0 0.0
        %3293 = vmatprep.subr.mxu0 0.0
        %3294 = vmatpush1.msra.mxu0 0.0
        %3295 = vmatprep.mubr.f32.mxu0 0.0
        %3296 = vmatmul.mubr.f32.gmra.mrb[0].mxu0 %v2971
        %v3297 = vpop.f32.mrb[0].mxu0
        %v3298 = vadd.f32 0.0, %v3297
        %v3299 = vpop.f32.mrb[0].mxu0
        %v3300 = vadd.f32 0.0, %v3299
        %3301 = vmatprep.mubr.f32.mxu0 0.0
        %3302 = vmatmul.mubr.f32.gmra.mrb[0].mxu0 %v2974
        %v3303 = vpop.f32.mrb[0].mxu0
        %v3304 = vpop.f32.mrb[0].mxu0
        %3305 = vmatprep.mubr.f32.mxu0 0.0
        %3306 = vmatmul.mubr.f32.gmra.mrb[0].mxu0 %v2977
        %v3307 = vpop.f32.mrb[0].mxu0
        %v3308 = vpop.f32.mrb[0].mxu0
        %3309 = vmatprep.mubr.f32.mxu0 0.0
        %3310 = vmatmul.mubr.f32.gmra.mrb[0].mxu0 %v2980
        %v3311 = vpop.f32.mrb[0].mxu0
        %v3312 = vpop.f32.mrb[0].mxu0
        %3313 = vdwg.mxu0
        %3315 = vset.pattern.permute.xlu0 0
        %3316 = vperm.xlu0 %3315, %v2964
        %v3317 = vpop.permute.xlu0 %3316
        %v3319 = vadd.f32 %v3317, %v3049
        %v3320 = vadd.f32 %v3317, %v3051
        %v3321 = vadd.f32 %v3317, %v3132
        %v3322 = vadd.f32 %v3317, %v3134
        %v3323 = vadd.f32 %v3317, %v3215
        %v3324 = vadd.f32 %v3317, %v3217
        %v3325 = vadd.f32 %v3317, %v3298
        %v3326 = vadd.f32 %v3317, %v3300
        %v3335 = vcombine.low %v3319, %v3320
        %v3336 = vcombine.low %v3321, %v3322
        %v3337 = vcombine.low %v3323, %v3324
        %v3338 = vcombine.low %v3325, %v3326
        %3343 = vst [vmem:[%s191] sm:$0xff] %v3335
        %3344 = vst [vmem:[%s191 + $0x8] sm:$0xff] %v3336
        %3345 = vst [vmem:[%s191 + $0x10] sm:$0xff] %v3337
        %3346 = vst [vmem:[%s191 + $0x18] sm:$0xff] %v3338
        %s3347 = sand.u32 %s115, 1
        %s3348 = scalar_lea.sflag [#allocation3], %s3347
        %s3349 = sand.u32 %s115, 1
        %s3350 = smul.addr %s3349, 32
        %s3351 = scalar_lea.vmem [#allocation2], %s3350
        // Predicated region
        $region37: #{tpu_custom_call.1} parent=35 // pred_check
          %p3352 = pneg %p125
        $region38: #{tpu_custom_call.1} parent=35 // pred_check_branch
          %3354 = sbr.rel (%p3352) target = $region40
        $region39: #{tpu_custom_call.1} parent=35 // pred_region
          %s3355 = smul.u32 8, %s18
          %s3357 = ssub.s32 512, 512
          %3358 = vsyncadd %s3348, %s3357
          %s3359 = smul.addr %s3355, 64
          %s3360 = scalar_lea.hbm %s4, %s3359
          %s3362 = sshll.u32 %s3351, 4
          %s3363 = int_to_ptr.vmem [resolvable:$true] %s3362
          %3365 = dma.vmem_to_hbm [thread:$0]  %s3363, 512, %s3360, %s3348
        $region40: #{tpu_custom_call.1} parent=35 // pred_fallthru
          _
      $region36: #{tpu_custom_call.1} parent=5 // pred_fallthru
        _
      %p3366 = scmp.le.s32.totalorder 2, %s13
      // Predicated region
      $region41: #{tpu_custom_call.1} parent=5 // pred_check
        %p3367 = pneg %p3366
      $region42: #{tpu_custom_call.1} parent=5 // pred_check_branch
        %3369 = sbr.rel (%p3367) target = $region44
      $region43: #{tpu_custom_call.1} parent=5 // pred_region
        %s3370 = ssub.s32 %s13, 2
        // Predicated region
        $region45: #{tpu_custom_call.1} parent=43 // pred_check
          %p3371 = pneg %p131
        $region46: #{tpu_custom_call.1} parent=43 // pred_check_branch
          %3373 = sbr.rel (%p3371) target = $region48
        $region47: #{tpu_custom_call.1} parent=43 // pred_region
          %s3374 = sand.u32 %s116, 1
          %s3375 = scalar_lea.sflag [#allocation3], %s3374
          %s3376 = sand.u32 %s116, 1
          %s3377 = smul.addr %s3376, 32
          %s3378 = scalar_lea.vmem [#allocation2], %s3377
          %3379 = dma.done %s3375, 512
        $region48: #{tpu_custom_call.1} parent=43 // pred_fallthru
          _
      $region44: #{tpu_custom_call.1} parent=5 // pred_fallthru
        _
    $region6: #{tpu_custom_call.1} parent=1 // loop_footer
      %s17 = sadd.s32 1, %s13
    $region7: #{tpu_custom_call.1} parent=1 // loop_footer_branch
      %12 = sbr.rel target = $region3
    $region8: #{tpu_custom_call.1} parent=1 // loop_exit
      _
    %3380 = vsyncpa [#allocation3], 1
    %s3381 = scalar_lea.sflag [#allocation3], 1
    %3382 = vsyncpa %s3381, 1

</llo_original>
